<compile_context>
chip_gen: v7x
topology: tpu7x:2x2x1
jax: 0.10.0
libtpu: 0.0.40
codegen_flags: <defaults>
</compile_context>

<pallas_src>
import functools

import jax
import jax.numpy as jnp
from jax.experimental import pallas as pl
from jax.experimental.pallas import tpu as pltpu


# ---------------------------------------------------------------------------
# Pallas kernel: one MultiHeadCrossAttentionLayer step for one modality pair,
# whole batch in the block. Layer index is the inner ("arbitrary") grid axis;
# activations are carried in the output refs across layer steps.
# ---------------------------------------------------------------------------
def _mhca_layer_kernel(m1_ref, m2_ref, mask_ref,        # (1,B,S,D), (1,B,S,D), (H,1,D)
                       wqkvo_ref, bqkvo_ref,            # (1,1,6,D,D) bf16, (1,1,6,D) f32
                       wfi_ref, bfi_ref,                # (1,1,2,D,F) bf16, (1,1,2,F) f32
                       wfo_ref, bfo_ref,                # (1,1,2,F,D) bf16, (1,1,2,D) f32
                       lng_ref, lnb_ref,                # (1,1,2,D), (1,1,2,D)
                       out1_ref, out2_ref,              # (1,B,S,D) each — also the carries
                       *, num_heads, head_dim):
    l = pl.program_id(1)

    # Layer 0: seed the carried activations from the pair's input block.
    @pl.when(l == 0)
    def _():
        out1_ref[...] = m1_ref[...]
        out2_ref[...] = m2_ref[...]

    m1 = out1_ref[0]                    # (B, S, D) f32
    m2 = out2_ref[0]
    B, S, D = m1.shape
    H, hd = num_heads, head_dim
    BH = B * H

    def lin(x, w, b):
        # x: (..., Din) f32, w: (Din, Dout) bf16, b: (Dout,) f32. Rows = B*S for MXU occupancy.
        rows = x.reshape(-1, x.shape[-1]).astype(jnp.bfloat16)
        y = jnp.dot(rows, w, preferred_element_type=jnp.float32)
        return y.reshape(x.shape[:-1] + (w.shape[-1],)) + b

    Q = lin(m1, wqkvo_ref[0, 0, 0], bqkvo_ref[0, 0, 0])
    K = lin(m2, wqkvo_ref[0, 0, 1], bqkvo_ref[0, 0, 1])
    V1 = lin(m1, wqkvo_ref[0, 0, 2], bqkvo_ref[0, 0, 2])
    V2 = lin(m2, wqkvo_ref[0, 0, 3], bqkvo_ref[0, 0, 3])

    mask = mask_ref[...]                # (H, 1, D): lane d belongs to head d // hd
    scale = 1.0 / (hd ** 0.5)

    # Lane-mask per-head formulation (tiny head_dim path). Only Q is masked for the QK^T
    # matmul (mask^2 == mask), and the softmax scale is folded into Q (never onto logits).
    Qm = ((Q * scale)[:, None] * mask).reshape(BH, S, D)
    Kb = jnp.broadcast_to(K[:, None], (B, H, S, D)).reshape(BH, S, D)
    V1m = (V1[:, None] * mask).reshape(BH, S, D)
    V2m = (V2[:, None] * mask).reshape(BH, S, D)

    logits1 = jnp.einsum('zqd,zkd->zqk',
                         Qm.astype(jnp.bfloat16), Kb.astype(jnp.bfloat16),
                         preferred_element_type=jnp.float32)            # scaled Q K^T
    logits2 = jnp.swapaxes(logits1, -1, -2)                              # scaled K Q^T (free XLU)

    def softmax(x):
        m = jnp.max(x, axis=-1, keepdims=True)
        e = jnp.exp(x - m)
        return e * pl.reciprocal(jnp.sum(e, axis=-1, keepdims=True), approx=True)

    S1 = softmax(logits1)               # (BH, Sq, Sk)
    S2 = softmax(logits2)               # (BH, Sk, Sq)

    nv1 = jnp.einsum('zkq,zqd->zkd', S2.astype(jnp.bfloat16), V1m.astype(jnp.bfloat16),
                     preferred_element_type=jnp.float32)
    nv2 = jnp.einsum('zqk,zkd->zqd', S1.astype(jnp.bfloat16), V2m.astype(jnp.bfloat16),
                     preferred_element_type=jnp.float32)
    # Masked lanes contribute zero, so summing over heads == concat over heads.
    new_V1 = jnp.sum(nv1.reshape(B, H, S, D), axis=1)
    new_V2 = jnp.sum(nv2.reshape(B, H, S, D), axis=1)

    # Output projections + residual.
    o1 = lin(new_V1, wqkvo_ref[0, 0, 4], bqkvo_ref[0, 0, 4]) + m1
    o2 = lin(new_V2, wqkvo_ref[0, 0, 5], bqkvo_ref[0, 0, 5]) + m2

    def layernorm(x, g, b):
        mu = jnp.mean(x, axis=-1, keepdims=True)
        var = jnp.mean((x - mu) ** 2, axis=-1, keepdims=True)
        return (x - mu) * jax.lax.rsqrt(var + 1e-5) * g + b

    ln1 = layernorm(o1, lng_ref[0, 0, 0], lnb_ref[0, 0, 0])
    ln2 = layernorm(o2, lng_ref[0, 0, 1], lnb_ref[0, 0, 1])

    # FFNs. TODO(synk): dropout omitted (stochastic op; eval-mode identity used).
    h1 = jnp.maximum(lin(ln1, wfi_ref[0, 0, 0], bfi_ref[0, 0, 0]), 0.0)
    f1 = lin(h1, wfo_ref[0, 0, 0], bfo_ref[0, 0, 0])
    h2 = jnp.maximum(lin(ln2, wfi_ref[0, 0, 1], bfi_ref[0, 0, 1]), 0.0)
    f2 = lin(h2, wfo_ref[0, 0, 1], bfo_ref[0, 0, 1])

    # new_modal = ffn(LN(output_V)) + output_V (matches the PyTorch reference).
    out1_ref[0] = f1 + o1
    out2_ref[0] = f2 + o2


# ---------------------------------------------------------------------------
# Single fused pallas_call for all 3 modality pairs x all layers.
# ---------------------------------------------------------------------------
def dual_modality_fused(m1_all, m2_all, params, *, num_heads):
    P, B, S, D = m1_all.shape
    L = params["wqkvo"].shape[1]
    F = params["wfi"].shape[-1]
    head_dim = D // num_heads

    # Per-head lane mask built once on the host (hoisted out of the per-layer body).
    head_ids = jax.lax.broadcasted_iota(jnp.int32, (num_heads, 1, D), 0)
    lane_ids = jax.lax.broadcasted_iota(jnp.int32, (num_heads, 1, D), 2)
    head_mask = (lane_ids // head_dim == head_ids).astype(jnp.float32)

    kernel = functools.partial(_mhca_layer_kernel,
                               num_heads=num_heads, head_dim=head_dim)

    modal_spec = pl.BlockSpec((1, B, S, D), lambda p, l: (p, 0, 0, 0))
    mask_spec = pl.BlockSpec((num_heads, 1, D), lambda p, l: (0, 0, 0))

    def wspec(trail):
        zeros = (0,) * len(trail)
        return pl.BlockSpec((1, 1) + tuple(trail),
                            lambda p, l, _z=zeros: (p, l) + _z)

    grid_spec = pltpu.PrefetchScalarGridSpec(
        num_scalar_prefetch=0,
        grid=(P, L),
        in_specs=[modal_spec, modal_spec, mask_spec,
                  wspec((6, D, D)), wspec((6, D)),
                  wspec((2, D, F)), wspec((2, F)),
                  wspec((2, F, D)), wspec((2, D)),
                  wspec((2, D)), wspec((2, D))],
        out_specs=(modal_spec, modal_spec),
        scratch_shapes=[],
    )
    return pl.pallas_call(
        kernel,
        out_shape=(jax.ShapeDtypeStruct((P, B, S, D), jnp.float32),
                   jax.ShapeDtypeStruct((P, B, S, D), jnp.float32)),
        grid_spec=grid_spec,
        compiler_params=pltpu.CompilerParams(
            dimension_semantics=("parallel", "arbitrary"),
            vmem_limit_bytes=32 * 1024 * 1024),
    )(m1_all, m2_all, head_mask,
      params["wqkvo"], params["bqkvo"],
      params["wfi"], params["bfi"],
      params["wfo"], params["bfo"],
      params["lng"], params["lnb"])


def dual_modality_enhanced_forward(text, audio, visual, params, *, num_heads):
    # pair order: TA=(text,audio), TV=(text,visual), AV=(audio,visual)
    m1_all = jnp.stack([text, text, audio], axis=0)       # (3, B, S, D)
    m2_all = jnp.stack([audio, visual, visual], axis=0)   # (3, B, S, D)
    out1, out2 = dual_modality_fused(m1_all, m2_all, params, num_heads=num_heads)
    return out1[0], out2[0], out1[1], out2[1], out1[2], out2[2]


# ---------------------------------------------------------------------------
# Deterministic parameter construction (synthetic, not a checkpoint load).
# Linear weights are stored pre-transposed as (in_dim, out_dim) in bfloat16 so
# the kernel computes x @ W + b (matching PyTorch's x @ W^T + b semantics) with
# bf16 MXU operands and f32 accumulation.
# ---------------------------------------------------------------------------
def make_layer_params(key, model_dim, hidden_dim):
    ks = jax.random.split(key, 6)
    s = 0.05
    return dict(
        wqkvo=(s * jax.random.normal(ks[0], (6, model_dim, model_dim), jnp.float32)
               ).astype(jnp.bfloat16),
        bqkvo=s * jax.random.normal(ks[1], (6, model_dim), jnp.float32),
        wfi=(s * jax.random.normal(ks[2], (2, model_dim, hidden_dim), jnp.float32)
             ).astype(jnp.bfloat16),
        bfi=s * jax.random.normal(ks[3], (2, hidden_dim), jnp.float32),
        wfo=(s * jax.random.normal(ks[4], (2, hidden_dim, model_dim), jnp.float32)
             ).astype(jnp.bfloat16),
        bfo=s * jax.random.normal(ks[5], (2, model_dim), jnp.float32),
        lng=jnp.ones((2, model_dim), jnp.float32),
        lnb=jnp.zeros((2, model_dim), jnp.float32),
    )


def make_dual_modality_params(key, model_dim, hidden_dim, num_layers):
    """Stacked params, each leaf shaped (num_pairs=3, num_layers, ...); pair order (TA, TV, AV)."""
    leaves = []
    for p in range(3):
        sub = jax.random.fold_in(key, p)
        for l in range(num_layers):
            leaves.append(make_layer_params(jax.random.fold_in(sub, l), model_dim, hidden_dim))
    stacked = jax.tree_util.tree_map(lambda *xs: jnp.stack(xs, axis=0), *leaves)   # (3*L, ...)
    return jax.tree_util.tree_map(
        lambda x: x.reshape((3, num_layers) + x.shape[1:]), stacked)


if __name__ == "__main__":
    B, S, D, H, F, L = 2, 8, 32, 4, 64, 2

    key = jax.random.PRNGKey(0)
    k_t, k_a, k_v, k_p = jax.random.split(key, 4)
    text = jax.random.normal(k_t, (B, S, D), jnp.float32)
    audio = jax.random.normal(k_a, (B, S, D), jnp.float32)
    visual = jax.random.normal(k_v, (B, S, D), jnp.float32)

    params = make_dual_modality_params(k_p, D, F, L)

    fwd = jax.jit(functools.partial(dual_modality_enhanced_forward, num_heads=H))
    outs = jax.block_until_ready(fwd(text, audio, visual, params))

    assert all(o.shape == (B, S, D) for o in outs)
    assert all(bool(jnp.all(jnp.isfinite(o))) for o in outs)
    print("KERNEL_OK")
</pallas_src>

<mosaic_0001>
module attributes {stable_mosaic.version = 11 : i64} {
  func.func @_mhca_layer_kernel(%arg0: i32, %arg1: i32, %arg2: memref<1x2x8x32xf32, #tpu.memory_space<vmem>>, %arg3: memref<1x2x8x32xf32, #tpu.memory_space<vmem>>, %arg4: memref<4x1x32xf32, #tpu.memory_space<vmem>>, %arg5: memref<1x1x6x32x32xbf16, #tpu.memory_space<vmem>>, %arg6: memref<1x1x6x32xf32, #tpu.memory_space<vmem>>, %arg7: memref<1x1x2x32x64xbf16, #tpu.memory_space<vmem>>, %arg8: memref<1x1x2x64xf32, #tpu.memory_space<vmem>>, %arg9: memref<1x1x2x64x32xbf16, #tpu.memory_space<vmem>>, %arg10: memref<1x1x2x32xf32, #tpu.memory_space<vmem>>, %arg11: memref<1x1x2x32xf32, #tpu.memory_space<vmem>>, %arg12: memref<1x1x2x32xf32, #tpu.memory_space<vmem>>, %arg13: memref<1x2x8x32xf32, #tpu.memory_space<vmem>>, %arg14: memref<1x2x8x32xf32, #tpu.memory_space<vmem>>) attributes {dimension_semantics = [#tpu.dimension_semantics<parallel>, #tpu.dimension_semantics<arbitrary>], iteration_bounds = array<i64: 3, 2>, scalar_prefetch = 0 : i64, scratch_operands = 0 : i64, tpu.core_type = #tpu.core_type<tc>, window_params = [{transform_indices = @transform_0, window_bounds = array<i64: 1, 2, 8, 32>}, {transform_indices = @transform_1, window_bounds = array<i64: 1, 2, 8, 32>}, {pipeline_mode = #tpu.pipeline_mode<synchronous>, transform_indices = @transform_2, window_bounds = array<i64: 4, 1, 32>}, {transform_indices = @transform_3, window_bounds = array<i64: 1, 1, 6, 32, 32>}, {transform_indices = @transform_4, window_bounds = array<i64: 1, 1, 6, 32>}, {transform_indices = @transform_5, window_bounds = array<i64: 1, 1, 2, 32, 64>}, {transform_indices = @transform_6, window_bounds = array<i64: 1, 1, 2, 64>}, {transform_indices = @transform_7, window_bounds = array<i64: 1, 1, 2, 64, 32>}, {transform_indices = @transform_8, window_bounds = array<i64: 1, 1, 2, 32>}, {transform_indices = @transform_9, window_bounds = array<i64: 1, 1, 2, 32>}, {transform_indices = @transform_10, window_bounds = array<i64: 1, 1, 2, 32>}, {transform_indices = @transform_11, window_bounds = array<i64: 1, 2, 8, 32>}, {transform_indices = @transform_12, window_bounds = array<i64: 1, 2, 8, 32>}]} {
    %c0_i32 = arith.constant 0 : i32
    %0 = arith.cmpi eq, %arg1, %c0_i32 : i32
    %1 = arith.extui %0 : i1 to i32
    %c0_i32_0 = arith.constant 0 : i32
    %2 = arith.cmpi ne, %1, %c0_i32_0 : i32
    scf.if %2 {
      %c0_151 = arith.constant 0 : index
      %c0_152 = arith.constant 0 : index
      %c0_153 = arith.constant 0 : index
      %c0_154 = arith.constant 0 : index
      %246 = vector.load %arg2[%c0_151, %c0_152, %c0_153, %c0_154] : memref<1x2x8x32xf32, #tpu.memory_space<vmem>>, vector<1x2x8x32xf32>
      %c0_155 = arith.constant 0 : index
      %c0_156 = arith.constant 0 : index
      %c0_157 = arith.constant 0 : index
      %c0_158 = arith.constant 0 : index
      %247 = vector.load %arg13[%c0_155, %c0_156, %c0_157, %c0_158] : memref<1x2x8x32xf32, #tpu.memory_space<vmem>>, vector<1x2x8x32xf32>
      tpu.vector_store %arg13[%c0_155, %c0_156, %c0_157, %c0_158], %246 {strides = array<i32>} : memref<1x2x8x32xf32, #tpu.memory_space<vmem>>, vector<1x2x8x32xf32>,
      %c0_159 = arith.constant 0 : index
      %c0_160 = arith.constant 0 : index
      %c0_161 = arith.constant 0 : index
      %c0_162 = arith.constant 0 : index
      %248 = vector.load %arg3[%c0_159, %c0_160, %c0_161, %c0_162] : memref<1x2x8x32xf32, #tpu.memory_space<vmem>>, vector<1x2x8x32xf32>
      %c0_163 = arith.constant 0 : index
      %c0_164 = arith.constant 0 : index
      %c0_165 = arith.constant 0 : index
      %c0_166 = arith.constant 0 : index
      %249 = vector.load %arg14[%c0_163, %c0_164, %c0_165, %c0_166] : memref<1x2x8x32xf32, #tpu.memory_space<vmem>>, vector<1x2x8x32xf32>
      tpu.vector_store %arg14[%c0_163, %c0_164, %c0_165, %c0_166], %248 {strides = array<i32>} : memref<1x2x8x32xf32, #tpu.memory_space<vmem>>, vector<1x2x8x32xf32>,
    } else {
    }
    %c0 = arith.constant 0 : index
    %c0_1 = arith.constant 0 : index
    %c0_2 = arith.constant 0 : index
    %c0_3 = arith.constant 0 : index
    %3 = vector.load %arg13[%c0, %c0_1, %c0_2, %c0_3] : memref<1x2x8x32xf32, #tpu.memory_space<vmem>>, vector<1x2x8x32xf32>
    %4 = vector.shape_cast %3 : vector<1x2x8x32xf32> to vector<2x8x32xf32>
    %c0_4 = arith.constant 0 : index
    %c0_5 = arith.constant 0 : index
    %c0_6 = arith.constant 0 : index
    %c0_7 = arith.constant 0 : index
    %5 = vector.load %arg14[%c0_4, %c0_5, %c0_6, %c0_7] : memref<1x2x8x32xf32, #tpu.memory_space<vmem>>, vector<1x2x8x32xf32>
    %6 = vector.shape_cast %5 : vector<1x2x8x32xf32> to vector<2x8x32xf32>
    %c0_8 = arith.constant 0 : index
    %c0_9 = arith.constant 0 : index
    %c0_10 = arith.constant 0 : index
    %c0_11 = arith.constant 0 : index
    %c0_12 = arith.constant 0 : index
    %7 = vector.load %arg5[%c0_8, %c0_9, %c0_10, %c0_11, %c0_12] : memref<1x1x6x32x32xbf16, #tpu.memory_space<vmem>>, vector<1x1x1x32x32xbf16>
    %8 = vector.shape_cast %7 : vector<1x1x1x32x32xbf16> to vector<32x32xbf16>
    %c0_13 = arith.constant 0 : index
    %c0_14 = arith.constant 0 : index
    %c0_15 = arith.constant 0 : index
    %c0_16 = arith.constant 0 : index
    %9 = vector.load %arg6[%c0_13, %c0_14, %c0_15, %c0_16] : memref<1x1x6x32xf32, #tpu.memory_space<vmem>>, vector<1x1x1x32xf32>
    %10 = vector.shape_cast %9 : vector<1x1x1x32xf32> to vector<32xf32>
    %11 = vector.shape_cast %4 : vector<2x8x32xf32> to vector<16x32xf32>
    %12 = arith.truncf %11 : vector<16x32xf32> to vector<16x32xbf16>
    %cst = arith.constant dense<0.000000e+00> : vector<16x32xf32>
    %13 = tpu.matmul %12, %8, %cst {dimension_numbers = #tpu.dot_dimension_numbers<[1], [0], [0], [1], [0, 0, 1, 1], [], []>} : vector<16x32xbf16>, vector<32x32xbf16>, vector<16x32xf32> -> vector<16x32xf32>
    %14 = vector.shape_cast %13 : vector<16x32xf32> to vector<2x8x32xf32>
    %15 = vector.shape_cast %10 : vector<32xf32> to vector<1x1x32xf32>
    %16 = vector.broadcast %15 : vector<1x1x32xf32> to vector<2x8x32xf32>
    %17 = arith.addf %14, %16 : vector<2x8x32xf32>
    %c0_17 = arith.constant 0 : index
    %c0_18 = arith.constant 0 : index
    %c1 = arith.constant 1 : index
    %c0_19 = arith.constant 0 : index
    %c0_20 = arith.constant 0 : index
    %18 = vector.load %arg5[%c0_17, %c0_18, %c1, %c0_19, %c0_20] : memref<1x1x6x32x32xbf16, #tpu.memory_space<vmem>>, vector<1x1x1x32x32xbf16>
    %19 = vector.shape_cast %18 : vector<1x1x1x32x32xbf16> to vector<32x32xbf16>
    %c0_21 = arith.constant 0 : index
    %c0_22 = arith.constant 0 : index
    %c1_23 = arith.constant 1 : index
    %c0_24 = arith.constant 0 : index
    %20 = vector.load %arg6[%c0_21, %c0_22, %c1_23, %c0_24] : memref<1x1x6x32xf32, #tpu.memory_space<vmem>>, vector<1x1x1x32xf32>
    %21 = vector.shape_cast %20 : vector<1x1x1x32xf32> to vector<32xf32>
    %22 = vector.shape_cast %6 : vector<2x8x32xf32> to vector<16x32xf32>
    %23 = arith.truncf %22 : vector<16x32xf32> to vector<16x32xbf16>
    %cst_25 = arith.constant dense<0.000000e+00> : vector<16x32xf32>
    %24 = tpu.matmul %23, %19, %cst_25 {dimension_numbers = #tpu.dot_dimension_numbers<[1], [0], [0], [1], [0, 0, 1, 1], [], []>} : vector<16x32xbf16>, vector<32x32xbf16>, vector<16x32xf32> -> vector<16x32xf32>
    %25 = vector.shape_cast %24 : vector<16x32xf32> to vector<2x8x32xf32>
    %26 = vector.shape_cast %21 : vector<32xf32> to vector<1x1x32xf32>
    %27 = vector.broadcast %26 : vector<1x1x32xf32> to vector<2x8x32xf32>
    %28 = arith.addf %25, %27 : vector<2x8x32xf32>
    %c0_26 = arith.constant 0 : index
    %c0_27 = arith.constant 0 : index
    %c2 = arith.constant 2 : index
    %c0_28 = arith.constant 0 : index
    %c0_29 = arith.constant 0 : index
    %29 = vector.load %arg5[%c0_26, %c0_27, %c2, %c0_28, %c0_29] : memref<1x1x6x32x32xbf16, #tpu.memory_space<vmem>>, vector<1x1x1x32x32xbf16>
    %30 = vector.shape_cast %29 : vector<1x1x1x32x32xbf16> to vector<32x32xbf16>
    %c0_30 = arith.constant 0 : index
    %c0_31 = arith.constant 0 : index
    %c2_32 = arith.constant 2 : index
    %c0_33 = arith.constant 0 : index
    %31 = vector.load %arg6[%c0_30, %c0_31, %c2_32, %c0_33] : memref<1x1x6x32xf32, #tpu.memory_space<vmem>>, vector<1x1x1x32xf32>
    %32 = vector.shape_cast %31 : vector<1x1x1x32xf32> to vector<32xf32>
    %33 = vector.shape_cast %4 : vector<2x8x32xf32> to vector<16x32xf32>
    %34 = arith.truncf %33 : vector<16x32xf32> to vector<16x32xbf16>
    %cst_34 = arith.constant dense<0.000000e+00> : vector<16x32xf32>
    %35 = tpu.matmul %34, %30, %cst_34 {dimension_numbers = #tpu.dot_dimension_numbers<[1], [0], [0], [1], [0, 0, 1, 1], [], []>} : vector<16x32xbf16>, vector<32x32xbf16>, vector<16x32xf32> -> vector<16x32xf32>
    %36 = vector.shape_cast %35 : vector<16x32xf32> to vector<2x8x32xf32>
    %37 = vector.shape_cast %32 : vector<32xf32> to vector<1x1x32xf32>
    %38 = vector.broadcast %37 : vector<1x1x32xf32> to vector<2x8x32xf32>
    %39 = arith.addf %36, %38 : vector<2x8x32xf32>
    %c0_35 = arith.constant 0 : index
    %c0_36 = arith.constant 0 : index
    %c3 = arith.constant 3 : index
    %c0_37 = arith.constant 0 : index
    %c0_38 = arith.constant 0 : index
    %40 = vector.load %arg5[%c0_35, %c0_36, %c3, %c0_37, %c0_38] : memref<1x1x6x32x32xbf16, #tpu.memory_space<vmem>>, vector<1x1x1x32x32xbf16>
    %41 = vector.shape_cast %40 : vector<1x1x1x32x32xbf16> to vector<32x32xbf16>
    %c0_39 = arith.constant 0 : index
    %c0_40 = arith.constant 0 : index
    %c3_41 = arith.constant 3 : index
    %c0_42 = arith.constant 0 : index
    %42 = vector.load %arg6[%c0_39, %c0_40, %c3_41, %c0_42] : memref<1x1x6x32xf32, #tpu.memory_space<vmem>>, vector<1x1x1x32xf32>
    %43 = vector.shape_cast %42 : vector<1x1x1x32xf32> to vector<32xf32>
    %44 = vector.shape_cast %6 : vector<2x8x32xf32> to vector<16x32xf32>
    %45 = arith.truncf %44 : vector<16x32xf32> to vector<16x32xbf16>
    %cst_43 = arith.constant dense<0.000000e+00> : vector<16x32xf32>
    %46 = tpu.matmul %45, %41, %cst_43 {dimension_numbers = #tpu.dot_dimension_numbers<[1], [0], [0], [1], [0, 0, 1, 1], [], []>} : vector<16x32xbf16>, vector<32x32xbf16>, vector<16x32xf32> -> vector<16x32xf32>
    %47 = vector.shape_cast %46 : vector<16x32xf32> to vector<2x8x32xf32>
    %48 = vector.shape_cast %43 : vector<32xf32> to vector<1x1x32xf32>
    %49 = vector.broadcast %48 : vector<1x1x32xf32> to vector<2x8x32xf32>
    %50 = arith.addf %47, %49 : vector<2x8x32xf32>
    %c0_44 = arith.constant 0 : index
    %c0_45 = arith.constant 0 : index
    %c0_46 = arith.constant 0 : index
    %51 = vector.load %arg4[%c0_44, %c0_45, %c0_46] : memref<4x1x32xf32, #tpu.memory_space<vmem>>, vector<4x1x32xf32>
    %cst_47 = arith.constant 0.353553385 : f32
    %52 = vector.broadcast %cst_47 : f32 to vector<2x8x32xf32>
    %53 = arith.mulf %17, %52 : vector<2x8x32xf32>
    %54 = vector.shape_cast %53 : vector<2x8x32xf32> to vector<2x1x8x32xf32>
    %55 = vector.shape_cast %51 : vector<4x1x32xf32> to vector<1x4x1x32xf32>
    %56 = vector.broadcast %54 : vector<2x1x8x32xf32> to vector<2x4x8x32xf32>
    %57 = vector.broadcast %55 : vector<1x4x1x32xf32> to vector<2x4x8x32xf32>
    %58 = arith.mulf %56, %57 : vector<2x4x8x32xf32>
    %59 = vector.shape_cast %58 : vector<2x4x8x32xf32> to vector<8x8x32xf32>
    %60 = vector.shape_cast %28 : vector<2x8x32xf32> to vector<2x1x8x32xf32>
    %61 = vector.shape_cast %60 : vector<2x1x8x32xf32> to vector<2x1x8x32xf32>
    %62 = vector.broadcast %61 : vector<2x1x8x32xf32> to vector<2x4x8x32xf32>
    %63 = vector.shape_cast %62 : vector<2x4x8x32xf32> to vector<8x8x32xf32>
    %64 = vector.shape_cast %39 : vector<2x8x32xf32> to vector<2x1x8x32xf32>
    %65 = vector.shape_cast %51 : vector<4x1x32xf32> to vector<1x4x1x32xf32>
    %66 = vector.broadcast %64 : vector<2x1x8x32xf32> to vector<2x4x8x32xf32>
    %67 = vector.broadcast %65 : vector<1x4x1x32xf32> to vector<2x4x8x32xf32>
    %68 = arith.mulf %66, %67 : vector<2x4x8x32xf32>
    %69 = vector.shape_cast %68 : vector<2x4x8x32xf32> to vector<8x8x32xf32>
    %70 = vector.shape_cast %50 : vector<2x8x32xf32> to vector<2x1x8x32xf32>
    %71 = vector.shape_cast %51 : vector<4x1x32xf32> to vector<1x4x1x32xf32>
    %72 = vector.broadcast %70 : vector<2x1x8x32xf32> to vector<2x4x8x32xf32>
    %73 = vector.broadcast %71 : vector<1x4x1x32xf32> to vector<2x4x8x32xf32>
    %74 = arith.mulf %72, %73 : vector<2x4x8x32xf32>
    %75 = vector.shape_cast %74 : vector<2x4x8x32xf32> to vector<8x8x32xf32>
    %76 = arith.truncf %59 : vector<8x8x32xf32> to vector<8x8x32xbf16>
    %77 = arith.truncf %63 : vector<8x8x32xf32> to vector<8x8x32xbf16>
    "tpu.trace_start"() <{level = 10 : i32, message = "zqd,zkd->zqk"}> : () -> ()
    %cst_48 = arith.constant dense<0.000000e+00> : vector<8x8x8xf32>
    %78 = tpu.matmul %76, %77, %cst_48 {dimension_numbers = #tpu.dot_dimension_numbers<[2], [2], [1], [1], [0, 0, 0, 1, 1, 1], [0], [0]>} : vector<8x8x32xbf16>, vector<8x8x32xbf16>, vector<8x8x8xf32> -> vector<8x8x8xf32>
    "tpu.trace_stop"() : () -> ()
    %79 = tpu.transpose %78, [0, 2, 1] : vector<8x8x8xf32> -> vector<8x8x8xf32>
    %cst_49 = arith.constant dense<0xFF800000> : vector<8x8xf32>
    %80 = vector.multi_reduction <maximumf>, %78, %cst_49 [2] : vector<8x8x8xf32> to vector<8x8xf32>
    %81 = vector.shape_cast %80 : vector<8x8xf32> to vector<8x8x1xf32>
    %82 = vector.broadcast %81 : vector<8x8x1xf32> to vector<8x8x8xf32>
    %83 = arith.subf %78, %82 : vector<8x8x8xf32>
    %84 = math.exp %83 : vector<8x8x8xf32>
    %cst_50 = arith.constant dense<0.000000e+00> : vector<8x8xf32>
    %85 = vector.multi_reduction <add>, %84, %cst_50 [2] : vector<8x8x8xf32> to vector<8x8xf32>
    %86 = vector.shape_cast %85 : vector<8x8xf32> to vector<8x8x1xf32>
    %87 = tpu.reciprocal %86 {approx = true} : vector<8x8x1xf32> -> vector<8x8x1xf32>
    %88 = vector.broadcast %87 : vector<8x8x1xf32> to vector<8x8x8xf32>
    %89 = arith.mulf %84, %88 : vector<8x8x8xf32>
    %cst_51 = arith.constant dense<0xFF800000> : vector<8x8xf32>
    %90 = vector.multi_reduction <maximumf>, %79, %cst_51 [2] : vector<8x8x8xf32> to vector<8x8xf32>
    %91 = vector.shape_cast %90 : vector<8x8xf32> to vector<8x8x1xf32>
    %92 = vector.broadcast %91 : vector<8x8x1xf32> to vector<8x8x8xf32>
    %93 = arith.subf %79, %92 : vector<8x8x8xf32>
    %94 = math.exp %93 : vector<8x8x8xf32>
    %cst_52 = arith.constant dense<0.000000e+00> : vector<8x8xf32>
    %95 = vector.multi_reduction <add>, %94, %cst_52 [2] : vector<8x8x8xf32> to vector<8x8xf32>
    %96 = vector.shape_cast %95 : vector<8x8xf32> to vector<8x8x1xf32>
    %97 = tpu.reciprocal %96 {approx = true} : vector<8x8x1xf32> -> vector<8x8x1xf32>
    %98 = vector.broadcast %97 : vector<8x8x1xf32> to vector<8x8x8xf32>
    %99 = arith.mulf %94, %98 : vector<8x8x8xf32>
    %100 = arith.truncf %99 : vector<8x8x8xf32> to vector<8x8x8xbf16>
    %101 = arith.truncf %69 : vector<8x8x32xf32> to vector<8x8x32xbf16>
    "tpu.trace_start"() <{level = 10 : i32, message = "zkq,zqd->zkd"}> : () -> ()
    %cst_53 = arith.constant dense<0.000000e+00> : vector<8x8x32xf32>
    %102 = tpu.matmul %100, %101, %cst_53 {dimension_numbers = #tpu.dot_dimension_numbers<[2], [1], [1], [2], [0, 0, 0, 1, 1, 2], [0], [0]>} : vector<8x8x8xbf16>, vector<8x8x32xbf16>, vector<8x8x32xf32> -> vector<8x8x32xf32>
    "tpu.trace_stop"() : () -> ()
    %103 = arith.truncf %89 : vector<8x8x8xf32> to vector<8x8x8xbf16>
    %104 = arith.truncf %75 : vector<8x8x32xf32> to vector<8x8x32xbf16>
    "tpu.trace_start"() <{level = 10 : i32, message = "zqk,zkd->zqd"}> : () -> ()
    %cst_54 = arith.constant dense<0.000000e+00> : vector<8x8x32xf32>
    %105 = tpu.matmul %103, %104, %cst_54 {dimension_numbers = #tpu.dot_dimension_numbers<[2], [1], [1], [2], [0, 0, 0, 1, 1, 2], [0], [0]>} : vector<8x8x8xbf16>, vector<8x8x32xbf16>, vector<8x8x32xf32> -> vector<8x8x32xf32>
    "tpu.trace_stop"() : () -> ()
    %106 = vector.shape_cast %102 : vector<8x8x32xf32> to vector<2x4x8x32xf32>
    %cst_55 = arith.constant dense<0.000000e+00> : vector<2x8x32xf32>
    %107 = vector.multi_reduction <add>, %106, %cst_55 [1] : vector<2x4x8x32xf32> to vector<2x8x32xf32>
    %108 = vector.shape_cast %105 : vector<8x8x32xf32> to vector<2x4x8x32xf32>
    %cst_56 = arith.constant dense<0.000000e+00> : vector<2x8x32xf32>
    %109 = vector.multi_reduction <add>, %108, %cst_56 [1] : vector<2x4x8x32xf32> to vector<2x8x32xf32>
    %c0_57 = arith.constant 0 : index
    %c0_58 = arith.constant 0 : index
    %c4 = arith.constant 4 : index
    %c0_59 = arith.constant 0 : index
    %c0_60 = arith.constant 0 : index
    %110 = vector.load %arg5[%c0_57, %c0_58, %c4, %c0_59, %c0_60] : memref<1x1x6x32x32xbf16, #tpu.memory_space<vmem>>, vector<1x1x1x32x32xbf16>
    %111 = vector.shape_cast %110 : vector<1x1x1x32x32xbf16> to vector<32x32xbf16>
    %c0_61 = arith.constant 0 : index
    %c0_62 = arith.constant 0 : index
    %c4_63 = arith.constant 4 : index
    %c0_64 = arith.constant 0 : index
    %112 = vector.load %arg6[%c0_61, %c0_62, %c4_63, %c0_64] : memref<1x1x6x32xf32, #tpu.memory_space<vmem>>, vector<1x1x1x32xf32>
    %113 = vector.shape_cast %112 : vector<1x1x1x32xf32> to vector<32xf32>
    %114 = vector.shape_cast %107 : vector<2x8x32xf32> to vector<16x32xf32>
    %115 = arith.truncf %114 : vector<16x32xf32> to vector<16x32xbf16>
    %cst_65 = arith.constant dense<0.000000e+00> : vector<16x32xf32>
    %116 = tpu.matmul %115, %111, %cst_65 {dimension_numbers = #tpu.dot_dimension_numbers<[1], [0], [0], [1], [0, 0, 1, 1], [], []>} : vector<16x32xbf16>, vector<32x32xbf16>, vector<16x32xf32> -> vector<16x32xf32>
    %117 = vector.shape_cast %116 : vector<16x32xf32> to vector<2x8x32xf32>
    %118 = vector.shape_cast %113 : vector<32xf32> to vector<1x1x32xf32>
    %119 = vector.broadcast %118 : vector<1x1x32xf32> to vector<2x8x32xf32>
    %120 = arith.addf %117, %119 : vector<2x8x32xf32>
    %121 = arith.addf %120, %4 : vector<2x8x32xf32>
    %c0_66 = arith.constant 0 : index
    %c0_67 = arith.constant 0 : index
    %c5 = arith.constant 5 : index
    %c0_68 = arith.constant 0 : index
    %c0_69 = arith.constant 0 : index
    %122 = vector.load %arg5[%c0_66, %c0_67, %c5, %c0_68, %c0_69] : memref<1x1x6x32x32xbf16, #tpu.memory_space<vmem>>, vector<1x1x1x32x32xbf16>
    %123 = vector.shape_cast %122 : vector<1x1x1x32x32xbf16> to vector<32x32xbf16>
    %c0_70 = arith.constant 0 : index
    %c0_71 = arith.constant 0 : index
    %c5_72 = arith.constant 5 : index
    %c0_73 = arith.constant 0 : index
    %124 = vector.load %arg6[%c0_70, %c0_71, %c5_72, %c0_73] : memref<1x1x6x32xf32, #tpu.memory_space<vmem>>, vector<1x1x1x32xf32>
    %125 = vector.shape_cast %124 : vector<1x1x1x32xf32> to vector<32xf32>
    %126 = vector.shape_cast %109 : vector<2x8x32xf32> to vector<16x32xf32>
    %127 = arith.truncf %126 : vector<16x32xf32> to vector<16x32xbf16>
    %cst_74 = arith.constant dense<0.000000e+00> : vector<16x32xf32>
    %128 = tpu.matmul %127, %123, %cst_74 {dimension_numbers = #tpu.dot_dimension_numbers<[1], [0], [0], [1], [0, 0, 1, 1], [], []>} : vector<16x32xbf16>, vector<32x32xbf16>, vector<16x32xf32> -> vector<16x32xf32>
    %129 = vector.shape_cast %128 : vector<16x32xf32> to vector<2x8x32xf32>
    %130 = vector.shape_cast %125 : vector<32xf32> to vector<1x1x32xf32>
    %131 = vector.broadcast %130 : vector<1x1x32xf32> to vector<2x8x32xf32>
    %132 = arith.addf %129, %131 : vector<2x8x32xf32>
    %133 = arith.addf %132, %6 : vector<2x8x32xf32>
    %c0_75 = arith.constant 0 : index
    %c0_76 = arith.constant 0 : index
    %c0_77 = arith.constant 0 : index
    %c0_78 = arith.constant 0 : index
    %134 = vector.load %arg11[%c0_75, %c0_76, %c0_77, %c0_78] : memref<1x1x2x32xf32, #tpu.memory_space<vmem>>, vector<1x1x1x32xf32>
    %135 = vector.shape_cast %134 : vector<1x1x1x32xf32> to vector<32xf32>
    %c0_79 = arith.constant 0 : index
    %c0_80 = arith.constant 0 : index
    %c0_81 = arith.constant 0 : index
    %c0_82 = arith.constant 0 : index
    %136 = vector.load %arg12[%c0_79, %c0_80, %c0_81, %c0_82] : memref<1x1x2x32xf32, #tpu.memory_space<vmem>>, vector<1x1x1x32xf32>
    %137 = vector.shape_cast %136 : vector<1x1x1x32xf32> to vector<32xf32>
    %cst_83 = arith.constant dense<0.000000e+00> : vector<2x8xf32>
    %138 = vector.multi_reduction <add>, %121, %cst_83 [2] : vector<2x8x32xf32> to vector<2x8xf32>
    %139 = vector.shape_cast %138 : vector<2x8xf32> to vector<2x8x1xf32>
    %cst_84 = arith.constant 3.200000e+01 : f32
    %140 = vector.broadcast %cst_84 : f32 to vector<2x8x1xf32>
    %141 = arith.divf %139, %140 : vector<2x8x1xf32>
    %142 = vector.broadcast %141 : vector<2x8x1xf32> to vector<2x8x32xf32>
    %143 = arith.subf %121, %142 : vector<2x8x32xf32>
    %144 = arith.mulf %143, %143 : vector<2x8x32xf32>
    %cst_85 = arith.constant dense<0.000000e+00> : vector<2x8xf32>
    %145 = vector.multi_reduction <add>, %144, %cst_85 [2] : vector<2x8x32xf32> to vector<2x8xf32>
    %146 = vector.shape_cast %145 : vector<2x8xf32> to vector<2x8x1xf32>
    %cst_86 = arith.constant 3.200000e+01 : f32
    %147 = vector.broadcast %cst_86 : f32 to vector<2x8x1xf32>
    %148 = arith.divf %146, %147 : vector<2x8x1xf32>
    %149 = vector.broadcast %141 : vector<2x8x1xf32> to vector<2x8x32xf32>
    %150 = arith.subf %121, %149 : vector<2x8x32xf32>
    %cst_87 = arith.constant 9.99999974E-6 : f32
    %151 = vector.broadcast %cst_87 : f32 to vector<2x8x1xf32>
    %152 = arith.addf %148, %151 : vector<2x8x1xf32>
    %153 = math.rsqrt %152 : vector<2x8x1xf32>
    %154 = vector.broadcast %153 : vector<2x8x1xf32> to vector<2x8x32xf32>
    %155 = arith.mulf %150, %154 : vector<2x8x32xf32>
    %156 = vector.shape_cast %135 : vector<32xf32> to vector<1x1x32xf32>
    %157 = vector.broadcast %156 : vector<1x1x32xf32> to vector<2x8x32xf32>
    %158 = arith.mulf %155, %157 : vector<2x8x32xf32>
    %159 = vector.shape_cast %137 : vector<32xf32> to vector<1x1x32xf32>
    %160 = vector.broadcast %159 : vector<1x1x32xf32> to vector<2x8x32xf32>
    %161 = arith.addf %158, %160 : vector<2x8x32xf32>
    %c0_88 = arith.constant 0 : index
    %c0_89 = arith.constant 0 : index
    %c1_90 = arith.constant 1 : index
    %c0_91 = arith.constant 0 : index
    %162 = vector.load %arg11[%c0_88, %c0_89, %c1_90, %c0_91] : memref<1x1x2x32xf32, #tpu.memory_space<vmem>>, vector<1x1x1x32xf32>
    %163 = vector.shape_cast %162 : vector<1x1x1x32xf32> to vector<32xf32>
    %c0_92 = arith.constant 0 : index
    %c0_93 = arith.constant 0 : index
    %c1_94 = arith.constant 1 : index
    %c0_95 = arith.constant 0 : index
    %164 = vector.load %arg12[%c0_92, %c0_93, %c1_94, %c0_95] : memref<1x1x2x32xf32, #tpu.memory_space<vmem>>, vector<1x1x1x32xf32>
    %165 = vector.shape_cast %164 : vector<1x1x1x32xf32> to vector<32xf32>
    %cst_96 = arith.constant dense<0.000000e+00> : vector<2x8xf32>
    %166 = vector.multi_reduction <add>, %133, %cst_96 [2] : vector<2x8x32xf32> to vector<2x8xf32>
    %167 = vector.shape_cast %166 : vector<2x8xf32> to vector<2x8x1xf32>
    %cst_97 = arith.constant 3.200000e+01 : f32
    %168 = vector.broadcast %cst_97 : f32 to vector<2x8x1xf32>
    %169 = arith.divf %167, %168 : vector<2x8x1xf32>
    %170 = vector.broadcast %169 : vector<2x8x1xf32> to vector<2x8x32xf32>
    %171 = arith.subf %133, %170 : vector<2x8x32xf32>
    %172 = arith.mulf %171, %171 : vector<2x8x32xf32>
    %cst_98 = arith.constant dense<0.000000e+00> : vector<2x8xf32>
    %173 = vector.multi_reduction <add>, %172, %cst_98 [2] : vector<2x8x32xf32> to vector<2x8xf32>
    %174 = vector.shape_cast %173 : vector<2x8xf32> to vector<2x8x1xf32>
    %cst_99 = arith.constant 3.200000e+01 : f32
    %175 = vector.broadcast %cst_99 : f32 to vector<2x8x1xf32>
    %176 = arith.divf %174, %175 : vector<2x8x1xf32>
    %177 = vector.broadcast %169 : vector<2x8x1xf32> to vector<2x8x32xf32>
    %178 = arith.subf %133, %177 : vector<2x8x32xf32>
    %cst_100 = arith.constant 9.99999974E-6 : f32
    %179 = vector.broadcast %cst_100 : f32 to vector<2x8x1xf32>
    %180 = arith.addf %176, %179 : vector<2x8x1xf32>
    %181 = math.rsqrt %180 : vector<2x8x1xf32>
    %182 = vector.broadcast %181 : vector<2x8x1xf32> to vector<2x8x32xf32>
    %183 = arith.mulf %178, %182 : vector<2x8x32xf32>
    %184 = vector.shape_cast %163 : vector<32xf32> to vector<1x1x32xf32>
    %185 = vector.broadcast %184 : vector<1x1x32xf32> to vector<2x8x32xf32>
    %186 = arith.mulf %183, %185 : vector<2x8x32xf32>
    %187 = vector.shape_cast %165 : vector<32xf32> to vector<1x1x32xf32>
    %188 = vector.broadcast %187 : vector<1x1x32xf32> to vector<2x8x32xf32>
    %189 = arith.addf %186, %188 : vector<2x8x32xf32>
    %c0_101 = arith.constant 0 : index
    %c0_102 = arith.constant 0 : index
    %c0_103 = arith.constant 0 : index
    %c0_104 = arith.constant 0 : index
    %c0_105 = arith.constant 0 : index
    %190 = vector.load %arg7[%c0_101, %c0_102, %c0_103, %c0_104, %c0_105] : memref<1x1x2x32x64xbf16, #tpu.memory_space<vmem>>, vector<1x1x1x32x64xbf16>
    %191 = vector.shape_cast %190 : vector<1x1x1x32x64xbf16> to vector<32x64xbf16>
    %c0_106 = arith.constant 0 : index
    %c0_107 = arith.constant 0 : index
    %c0_108 = arith.constant 0 : index
    %c0_109 = arith.constant 0 : index
    %192 = vector.load %arg8[%c0_106, %c0_107, %c0_108, %c0_109] : memref<1x1x2x64xf32, #tpu.memory_space<vmem>>, vector<1x1x1x64xf32>
    %193 = vector.shape_cast %192 : vector<1x1x1x64xf32> to vector<64xf32>
    %194 = vector.shape_cast %161 : vector<2x8x32xf32> to vector<16x32xf32>
    %195 = arith.truncf %194 : vector<16x32xf32> to vector<16x32xbf16>
    %cst_110 = arith.constant dense<0.000000e+00> : vector<16x64xf32>
    %196 = tpu.matmul %195, %191, %cst_110 {dimension_numbers = #tpu.dot_dimension_numbers<[1], [0], [0], [1], [0, 0, 1, 1], [], []>} : vector<16x32xbf16>, vector<32x64xbf16>, vector<16x64xf32> -> vector<16x64xf32>
    %197 = vector.shape_cast %196 : vector<16x64xf32> to vector<2x8x64xf32>
    %198 = vector.shape_cast %193 : vector<64xf32> to vector<1x1x64xf32>
    %199 = vector.broadcast %198 : vector<1x1x64xf32> to vector<2x8x64xf32>
    %200 = arith.addf %197, %199 : vector<2x8x64xf32>
    %cst_111 = arith.constant 0.000000e+00 : f32
    %201 = vector.broadcast %cst_111 : f32 to vector<2x8x64xf32>
    %202 = arith.maximumf %200, %201 : vector<2x8x64xf32>
    %c0_112 = arith.constant 0 : index
    %c0_113 = arith.constant 0 : index
    %c0_114 = arith.constant 0 : index
    %c0_115 = arith.constant 0 : index
    %c0_116 = arith.constant 0 : index
    %203 = vector.load %arg9[%c0_112, %c0_113, %c0_114, %c0_115, %c0_116] : memref<1x1x2x64x32xbf16, #tpu.memory_space<vmem>>, vector<1x1x1x64x32xbf16>
    %204 = vector.shape_cast %203 : vector<1x1x1x64x32xbf16> to vector<64x32xbf16>
    %c0_117 = arith.constant 0 : index
    %c0_118 = arith.constant 0 : index
    %c0_119 = arith.constant 0 : index
    %c0_120 = arith.constant 0 : index
    %205 = vector.load %arg10[%c0_117, %c0_118, %c0_119, %c0_120] : memref<1x1x2x32xf32, #tpu.memory_space<vmem>>, vector<1x1x1x32xf32>
    %206 = vector.shape_cast %205 : vector<1x1x1x32xf32> to vector<32xf32>
    %207 = vector.shape_cast %202 : vector<2x8x64xf32> to vector<16x64xf32>
    %208 = arith.truncf %207 : vector<16x64xf32> to vector<16x64xbf16>
    %cst_121 = arith.constant dense<0.000000e+00> : vector<16x32xf32>
    %209 = tpu.matmul %208, %204, %cst_121 {dimension_numbers = #tpu.dot_dimension_numbers<[1], [0], [0], [1], [0, 0, 1, 1], [], []>} : vector<16x64xbf16>, vector<64x32xbf16>, vector<16x32xf32> -> vector<16x32xf32>
    %210 = vector.shape_cast %209 : vector<16x32xf32> to vector<2x8x32xf32>
    %211 = vector.shape_cast %206 : vector<32xf32> to vector<1x1x32xf32>
    %212 = vector.broadcast %211 : vector<1x1x32xf32> to vector<2x8x32xf32>
    %213 = arith.addf %210, %212 : vector<2x8x32xf32>
    %c0_122 = arith.constant 0 : index
    %c0_123 = arith.constant 0 : index
    %c1_124 = arith.constant 1 : index
    %c0_125 = arith.constant 0 : index
    %c0_126 = arith.constant 0 : index
    %214 = vector.load %arg7[%c0_122, %c0_123, %c1_124, %c0_125, %c0_126] : memref<1x1x2x32x64xbf16, #tpu.memory_space<vmem>>, vector<1x1x1x32x64xbf16>
    %215 = vector.shape_cast %214 : vector<1x1x1x32x64xbf16> to vector<32x64xbf16>
    %c0_127 = arith.constant 0 : index
    %c0_128 = arith.constant 0 : index
    %c1_129 = arith.constant 1 : index
    %c0_130 = arith.constant 0 : index
    %216 = vector.load %arg8[%c0_127, %c0_128, %c1_129, %c0_130] : memref<1x1x2x64xf32, #tpu.memory_space<vmem>>, vector<1x1x1x64xf32>
    %217 = vector.shape_cast %216 : vector<1x1x1x64xf32> to vector<64xf32>
    %218 = vector.shape_cast %189 : vector<2x8x32xf32> to vector<16x32xf32>
    %219 = arith.truncf %218 : vector<16x32xf32> to vector<16x32xbf16>
    %cst_131 = arith.constant dense<0.000000e+00> : vector<16x64xf32>
    %220 = tpu.matmul %219, %215, %cst_131 {dimension_numbers = #tpu.dot_dimension_numbers<[1], [0], [0], [1], [0, 0, 1, 1], [], []>} : vector<16x32xbf16>, vector<32x64xbf16>, vector<16x64xf32> -> vector<16x64xf32>
    %221 = vector.shape_cast %220 : vector<16x64xf32> to vector<2x8x64xf32>
    %222 = vector.shape_cast %217 : vector<64xf32> to vector<1x1x64xf32>
    %223 = vector.broadcast %222 : vector<1x1x64xf32> to vector<2x8x64xf32>
    %224 = arith.addf %221, %223 : vector<2x8x64xf32>
    %cst_132 = arith.constant 0.000000e+00 : f32
    %225 = vector.broadcast %cst_132 : f32 to vector<2x8x64xf32>
    %226 = arith.maximumf %224, %225 : vector<2x8x64xf32>
    %c0_133 = arith.constant 0 : index
    %c0_134 = arith.constant 0 : index
    %c1_135 = arith.constant 1 : index
    %c0_136 = arith.constant 0 : index
    %c0_137 = arith.constant 0 : index
    %227 = vector.load %arg9[%c0_133, %c0_134, %c1_135, %c0_136, %c0_137] : memref<1x1x2x64x32xbf16, #tpu.memory_space<vmem>>, vector<1x1x1x64x32xbf16>
    %228 = vector.shape_cast %227 : vector<1x1x1x64x32xbf16> to vector<64x32xbf16>
    %c0_138 = arith.constant 0 : index
    %c0_139 = arith.constant 0 : index
    %c1_140 = arith.constant 1 : index
    %c0_141 = arith.constant 0 : index
    %229 = vector.load %arg10[%c0_138, %c0_139, %c1_140, %c0_141] : memref<1x1x2x32xf32, #tpu.memory_space<vmem>>, vector<1x1x1x32xf32>
    %230 = vector.shape_cast %229 : vector<1x1x1x32xf32> to vector<32xf32>
    %231 = vector.shape_cast %226 : vector<2x8x64xf32> to vector<16x64xf32>
    %232 = arith.truncf %231 : vector<16x64xf32> to vector<16x64xbf16>
    %cst_142 = arith.constant dense<0.000000e+00> : vector<16x32xf32>
    %233 = tpu.matmul %232, %228, %cst_142 {dimension_numbers = #tpu.dot_dimension_numbers<[1], [0], [0], [1], [0, 0, 1, 1], [], []>} : vector<16x64xbf16>, vector<64x32xbf16>, vector<16x32xf32> -> vector<16x32xf32>
    %234 = vector.shape_cast %233 : vector<16x32xf32> to vector<2x8x32xf32>
    %235 = vector.shape_cast %230 : vector<32xf32> to vector<1x1x32xf32>
    %236 = vector.broadcast %235 : vector<1x1x32xf32> to vector<2x8x32xf32>
    %237 = arith.addf %234, %236 : vector<2x8x32xf32>
    %238 = arith.addf %213, %121 : vector<2x8x32xf32>
    %c0_143 = arith.constant 0 : index
    %c0_144 = arith.constant 0 : index
    %c0_145 = arith.constant 0 : index
    %c0_146 = arith.constant 0 : index
    %239 = vector.load %arg13[%c0_143, %c0_144, %c0_145, %c0_146] : memref<1x2x8x32xf32, #tpu.memory_space<vmem>>, vector<1x2x8x32xf32>
    %240 = vector.shape_cast %239 : vector<1x2x8x32xf32> to vector<2x8x32xf32>
    %241 = vector.shape_cast %238 : vector<2x8x32xf32> to vector<1x2x8x32xf32>
    tpu.vector_store %arg13[%c0_143, %c0_144, %c0_145, %c0_146], %241 {strides = array<i32>} : memref<1x2x8x32xf32, #tpu.memory_space<vmem>>, vector<1x2x8x32xf32>,
    %242 = arith.addf %237, %133 : vector<2x8x32xf32>
    %c0_147 = arith.constant 0 : index
    %c0_148 = arith.constant 0 : index
    %c0_149 = arith.constant 0 : index
    %c0_150 = arith.constant 0 : index
    %243 = vector.load %arg14[%c0_147, %c0_148, %c0_149, %c0_150] : memref<1x2x8x32xf32, #tpu.memory_space<vmem>>, vector<1x2x8x32xf32>
    %244 = vector.shape_cast %243 : vector<1x2x8x32xf32> to vector<2x8x32xf32>
    %245 = vector.shape_cast %242 : vector<2x8x32xf32> to vector<1x2x8x32xf32>
    tpu.vector_store %arg14[%c0_147, %c0_148, %c0_149, %c0_150], %245 {strides = array<i32>} : memref<1x2x8x32xf32, #tpu.memory_space<vmem>>, vector<1x2x8x32xf32>,
    return
  }
  func.func @transform_0(%arg0: i32, %arg1: i32) -> (i32, i32, i32, i32) {
    %c0_i32 = arith.constant 0 : i32
    %c0_i32_0 = arith.constant 0 : i32
    %c0_i32_1 = arith.constant 0 : i32
    %c0_i32_2 = arith.constant 0 : i32
    return %arg0, %c0_i32, %c0_i32_0, %c0_i32_1 : i32, i32, i32, i32
  }
  func.func @transform_1(%arg0: i32, %arg1: i32) -> (i32, i32, i32, i32) {
    %c0_i32 = arith.constant 0 : i32
    %c0_i32_0 = arith.constant 0 : i32
    %c0_i32_1 = arith.constant 0 : i32
    %c0_i32_2 = arith.constant 0 : i32
    return %arg0, %c0_i32, %c0_i32_0, %c0_i32_1 : i32, i32, i32, i32
  }
  func.func @transform_2(%arg0: i32, %arg1: i32) -> (i32, i32, i32) {
    %c0_i32 = arith.constant 0 : i32
    %c0_i32_0 = arith.constant 0 : i32
    %c0_i32_1 = arith.constant 0 : i32
    %c0_i32_2 = arith.constant 0 : i32
    return %c0_i32, %c0_i32_0, %c0_i32_1 : i32, i32, i32
  }
  func.func @transform_3(%arg0: i32, %arg1: i32) -> (i32, i32, i32, i32, i32) {
    %c0_i32 = arith.constant 0 : i32
    %c0_i32_0 = arith.constant 0 : i32
    %c0_i32_1 = arith.constant 0 : i32
    %c0_i32_2 = arith.constant 0 : i32
    return %arg0, %arg1, %c0_i32, %c0_i32_0, %c0_i32_1 : i32, i32, i32, i32, i32
  }
  func.func @transform_4(%arg0: i32, %arg1: i32) -> (i32, i32, i32, i32) {
    %c0_i32 = arith.constant 0 : i32
    %c0_i32_0 = arith.constant 0 : i32
    %c0_i32_1 = arith.constant 0 : i32
    return %arg0, %arg1, %c0_i32, %c0_i32_0 : i32, i32, i32, i32
  }
  func.func @transform_5(%arg0: i32, %arg1: i32) -> (i32, i32, i32, i32, i32) {
    %c0_i32 = arith.constant 0 : i32
    %c0_i32_0 = arith.constant 0 : i32
    %c0_i32_1 = arith.constant 0 : i32
    %c0_i32_2 = arith.constant 0 : i32
    return %arg0, %arg1, %c0_i32, %c0_i32_0, %c0_i32_1 : i32, i32, i32, i32, i32
  }
  func.func @transform_6(%arg0: i32, %arg1: i32) -> (i32, i32, i32, i32) {
    %c0_i32 = arith.constant 0 : i32
    %c0_i32_0 = arith.constant 0 : i32
    %c0_i32_1 = arith.constant 0 : i32
    return %arg0, %arg1, %c0_i32, %c0_i32_0 : i32, i32, i32, i32
  }
  func.func @transform_7(%arg0: i32, %arg1: i32) -> (i32, i32, i32, i32, i32) {
    %c0_i32 = arith.constant 0 : i32
    %c0_i32_0 = arith.constant 0 : i32
    %c0_i32_1 = arith.constant 0 : i32
    %c0_i32_2 = arith.constant 0 : i32
    return %arg0, %arg1, %c0_i32, %c0_i32_0, %c0_i32_1 : i32, i32, i32, i32, i32
  }
  func.func @transform_8(%arg0: i32, %arg1: i32) -> (i32, i32, i32, i32) {
    %c0_i32 = arith.constant 0 : i32
    %c0_i32_0 = arith.constant 0 : i32
    %c0_i32_1 = arith.constant 0 : i32
    return %arg0, %arg1, %c0_i32, %c0_i32_0 : i32, i32, i32, i32
  }
  func.func @transform_9(%arg0: i32, %arg1: i32) -> (i32, i32, i32, i32) {
    %c0_i32 = arith.constant 0 : i32
    %c0_i32_0 = arith.constant 0 : i32
    %c0_i32_1 = arith.constant 0 : i32
    return %arg0, %arg1, %c0_i32, %c0_i32_0 : i32, i32, i32, i32
  }
  func.func @transform_10(%arg0: i32, %arg1: i32) -> (i32, i32, i32, i32) {
    %c0_i32 = arith.constant 0 : i32
    %c0_i32_0 = arith.constant 0 : i32
    %c0_i32_1 = arith.constant 0 : i32
    return %arg0, %arg1, %c0_i32, %c0_i32_0 : i32, i32, i32, i32
  }
  func.func @transform_11(%arg0: i32, %arg1: i32) -> (i32, i32, i32, i32) {
    %c0_i32 = arith.constant 0 : i32
    %c0_i32_0 = arith.constant 0 : i32
    %c0_i32_1 = arith.constant 0 : i32
    %c0_i32_2 = arith.constant 0 : i32
    return %arg0, %c0_i32, %c0_i32_0, %c0_i32_1 : i32, i32, i32, i32
  }
  func.func @transform_12(%arg0: i32, %arg1: i32) -> (i32, i32, i32, i32) {
    %c0_i32 = arith.constant 0 : i32
    %c0_i32_0 = arith.constant 0 : i32
    %c0_i32_1 = arith.constant 0 : i32
    %c0_i32_2 = arith.constant 0 : i32
    return %arg0, %c0_i32, %c0_i32_0, %c0_i32_1 : i32, i32, i32, i32
  }
}

</mosaic_0001>

<llo_original>
// kernel: dual_modality_enhanced_forward.1
$region0: #{dual_modality_enhanced_forward.1}
  #allocation0 [shape = 'u32[]', space=smem, size = 0x4, offset = 0x4, fixed_abs, tag = 'smem constant byte address 0x4 - core index']
  #allocation1 [shape = 'u32[144,128]{1,0:T(1,128)}', space=vmem, size = 0x12000, scoped, tag = 'internal scratch']
  %s0 = inlined_call_operand.vmem [shape: f32[3,2,8,32], index: 0, kind: input, shape index: {}]
  %s1 = inlined_call_operand.vmem [shape: f32[3,2,8,32], index: 1, kind: input, shape index: {}]
  %s2 = inlined_call_operand.vmem [shape: f32[4,1,32], index: 2, kind: input, shape index: {}]
  %s3 = inlined_call_operand.vmem [shape: bf16[3,2,6,32,32], index: 3, kind: input, shape index: {}]
  %s4 = inlined_call_operand.vmem [shape: f32[3,2,6,32], index: 4, kind: input, shape index: {}]
  %s5 = inlined_call_operand.vmem [shape: bf16[3,2,2,32,64], index: 5, kind: input, shape index: {}]
  %s6 = inlined_call_operand.vmem [shape: f32[3,2,2,64], index: 6, kind: input, shape index: {}]
  %s7 = inlined_call_operand.vmem [shape: bf16[3,2,2,64,32], index: 7, kind: input, shape index: {}]
  %s8 = inlined_call_operand.vmem [shape: f32[3,2,2,32], index: 8, kind: input, shape index: {}]
  %s9 = inlined_call_operand.vmem [shape: f32[3,2,2,32], index: 9, kind: input, shape index: {}]
  %s10 = inlined_call_operand.vmem [shape: f32[3,2,2,32], index: 10, kind: input, shape index: {}]
  %s11 = inlined_call_operand.vmem [shape: f32[3,2,8,32], index: 11, kind: output, shape index: {0}]
  %s12 = inlined_call_operand.vmem [shape: f32[3,2,8,32], index: 12, kind: output, shape index: {1}]
  %13 = xla_tuple %s11, %s12
  %s14 = sld [smem:[#allocation0]]
  $region89: #{dual_modality_enhanced_forward.1} parent=0
    _
  %s16 = ssub.s32 1, %s14
  %s17 = scalar_select 0, %s16, %s14
  loop: start=0, step=1, limit=8
  $region2: #{dual_modality_enhanced_forward.1} parent=0 // loop_pre_header
    _
  $region3: #{dual_modality_enhanced_forward.1} parent=0 // loop_header
    %s19 = sphi 0, %s23
    %p20 = scmp.ge.s32.totalorder %s19, 8
    %s26 = sphi 0, %s38
    %s27 = sphi 0, %s34
    %s28 = sphi 0, %s26
    %s29 = sphi 0, %s27
    %s30 = sphi 0, %s28
    %s31 = sphi 0, %s29
    %s41 = sphi 0, %s43
    %s44 = sphi 0, %s41
    %s45 = sphi 0, %s44
    %s61 = sphi 0, %s45
    %s67 = sphi 0, %s69
    %s70 = sphi 0, %s67
    %s71 = sphi 0, %s70
    %s87 = sphi 0, %s71
    %s91 = sphi 0, %s91
    %s93 = sphi 0, %s91
    %s94 = sphi 0, %s93
    %s108 = sphi 0, %s94
    %s116 = sphi 0, %s118
    %s119 = sphi 0, %s116
    %s120 = sphi 0, %s119
    %s136 = sphi 0, %s120
    %s144 = sphi 0, %s146
    %s147 = sphi 0, %s144
    %s148 = sphi 0, %s147
    %s164 = sphi 0, %s148
    %s172 = sphi 0, %s174
    %s175 = sphi 0, %s172
    %s176 = sphi 0, %s175
    %s192 = sphi 0, %s176
    %s200 = sphi 0, %s202
    %s203 = sphi 0, %s200
    %s204 = sphi 0, %s203
    %s220 = sphi 0, %s204
    %s228 = sphi 0, %s230
    %s231 = sphi 0, %s228
    %s232 = sphi 0, %s231
    %s248 = sphi 0, %s232
    %s256 = sphi 0, %s258
    %s259 = sphi 0, %s256
    %s260 = sphi 0, %s259
    %s276 = sphi 0, %s260
    %s284 = sphi 0, %s286
    %s287 = sphi 0, %s284
    %s288 = sphi 0, %s287
    %s304 = sphi 0, %s288
    %s312 = sphi 0, %s314
    %s315 = sphi 0, %s312
    %s316 = sphi 0, %s315
    %s332 = sphi 0, %s316
    %s338 = sphi 0, %s340
    %s341 = sphi 0, %s338
    %s342 = sphi 0, %s341
    %s358 = sphi 0, %s342
    %s364 = sphi 0, %s366
    %s367 = sphi 0, %s364
    %s368 = sphi 0, %s367
    %s384 = sphi 0, %s368
  $region4: #{dual_modality_enhanced_forward.1} parent=0 // loop_header_branch
    %22 = sbr.rel (%p20) target = $region8
  $region5: #{dual_modality_enhanced_forward.1} parent=0 // loop_body
    %s24 = ssub.s32 %s19, 1
    %s25 = ssub.s32 %s19, 2
    %s32 = sadd.s32 1, %s27
    %p33 = scmp.ge.s32.totalorder %s32, 2
    %s34 = scalar_select %p33, 0, %s32
    %s35 = sadd.s32 1, %s26
    %s36 = scalar_select %p33, %s35, %s26
    %p37 = scmp.ge.s32.totalorder %s36, 3
    %s38 = scalar_select %p37, 0, %s36
    %s39 = ssub.s32 %s26, %s38
    %p40 = scmp.eq.s32.totalorder %s39, 0
    %s42 = sadd.s32 %s41, 1
    %s43 = scalar_select %p40, %s41, %s42
    %p46 = pneg %p40
    %p47 = scmp.eq.s32.totalorder %s19, 5
    %p48 = por %p46, %p47
    %p49 = scmp.ne.s32.totalorder %s41, %s44
    %p50 = scmp.eq.s32.totalorder %s19, 0
    %p51 = por %p49, %p50
    %p52 = scmp.ne.s32.totalorder %s41, %s44
    %p53 = scmp.eq.s32.totalorder %s24, 5
    %p54 = por %p52, %p53
    %p55 = scmp.ne.s32.totalorder %s44, %s45
    %p56 = scmp.eq.s32.totalorder %s24, 0
    %p57 = por %p55, %p56
    %p58 = scmp.ne.s32.totalorder %s44, %s45
    %p59 = scmp.eq.s32.totalorder %s25, 5
    %p60 = por %p58, %p59
    %p62 = scmp.ne.s32.totalorder %s45, %s61
    %p63 = scmp.eq.s32.totalorder %s25, 0
    %p64 = por %p62, %p63
    %s65 = ssub.s32 %s26, %s38
    %p66 = scmp.eq.s32.totalorder %s65, 0
    %s68 = sadd.s32 %s67, 1
    %s69 = scalar_select %p66, %s67, %s68
    %p72 = pneg %p66
    %p73 = scmp.eq.s32.totalorder %s19, 5
    %p74 = por %p72, %p73
    %p75 = scmp.ne.s32.totalorder %s67, %s70
    %p76 = scmp.eq.s32.totalorder %s19, 0
    %p77 = por %p75, %p76
    %p78 = scmp.ne.s32.totalorder %s67, %s70
    %p79 = scmp.eq.s32.totalorder %s24, 5
    %p80 = por %p78, %p79
    %p81 = scmp.ne.s32.totalorder %s70, %s71
    %p82 = scmp.eq.s32.totalorder %s24, 0
    %p83 = por %p81, %p82
    %p84 = scmp.ne.s32.totalorder %s70, %s71
    %p85 = scmp.eq.s32.totalorder %s25, 5
    %p86 = por %p84, %p85
    %p88 = scmp.ne.s32.totalorder %s71, %s87
    %p89 = scmp.eq.s32.totalorder %s25, 0
    %p90 = por %p88, %p89
    %s92 = sadd.s32 %s91, 1
    %p95 = scmp.eq.s32.totalorder %s19, 5
    %p96 = scmp.ne.s32.totalorder %s91, %s93
    %p97 = scmp.eq.s32.totalorder %s19, 0
    %p98 = por %p96, %p97
    %p99 = scmp.ne.s32.totalorder %s91, %s93
    %p100 = scmp.eq.s32.totalorder %s24, 5
    %p101 = por %p99, %p100
    %p102 = scmp.ne.s32.totalorder %s93, %s94
    %p103 = scmp.eq.s32.totalorder %s24, 0
    %p104 = por %p102, %p103
    %p105 = scmp.ne.s32.totalorder %s93, %s94
    %p106 = scmp.eq.s32.totalorder %s25, 5
    %p107 = por %p105, %p106
    %p109 = scmp.ne.s32.totalorder %s94, %s108
    %p110 = scmp.eq.s32.totalorder %s25, 0
    %p111 = por %p109, %p110
    %s112 = ssub.s32 %s26, %s38
    %s113 = ssub.s32 %s27, %s34
    %s114 = sor.u32 %s112, %s113
    %p115 = scmp.eq.s32.totalorder %s114, 0
    %s117 = sadd.s32 %s116, 1
    %s118 = scalar_select %p115, %s116, %s117
    %p121 = pneg %p115
    %p122 = scmp.eq.s32.totalorder %s19, 5
    %p123 = por %p121, %p122
    %p124 = scmp.ne.s32.totalorder %s116, %s119
    %p125 = scmp.eq.s32.totalorder %s19, 0
    %p126 = por %p124, %p125
    %p127 = scmp.ne.s32.totalorder %s116, %s119
    %p128 = scmp.eq.s32.totalorder %s24, 5
    %p129 = por %p127, %p128
    %p130 = scmp.ne.s32.totalorder %s119, %s120
    %p131 = scmp.eq.s32.totalorder %s24, 0
    %p132 = por %p130, %p131
    %p133 = scmp.ne.s32.totalorder %s119, %s120
    %p134 = scmp.eq.s32.totalorder %s25, 5
    %p135 = por %p133, %p134
    %p137 = scmp.ne.s32.totalorder %s120, %s136
    %p138 = scmp.eq.s32.totalorder %s25, 0
    %p139 = por %p137, %p138
    %s140 = ssub.s32 %s26, %s38
    %s141 = ssub.s32 %s27, %s34
    %s142 = sor.u32 %s140, %s141
    %p143 = scmp.eq.s32.totalorder %s142, 0
    %s145 = sadd.s32 %s144, 1
    %s146 = scalar_select %p143, %s144, %s145
    %p149 = pneg %p143
    %p150 = scmp.eq.s32.totalorder %s19, 5
    %p151 = por %p149, %p150
    %p152 = scmp.ne.s32.totalorder %s144, %s147
    %p153 = scmp.eq.s32.totalorder %s19, 0
    %p154 = por %p152, %p153
    %p155 = scmp.ne.s32.totalorder %s144, %s147
    %p156 = scmp.eq.s32.totalorder %s24, 5
    %p157 = por %p155, %p156
    %p158 = scmp.ne.s32.totalorder %s147, %s148
    %p159 = scmp.eq.s32.totalorder %s24, 0
    %p160 = por %p158, %p159
    %p161 = scmp.ne.s32.totalorder %s147, %s148
    %p162 = scmp.eq.s32.totalorder %s25, 5
    %p163 = por %p161, %p162
    %p165 = scmp.ne.s32.totalorder %s148, %s164
    %p166 = scmp.eq.s32.totalorder %s25, 0
    %p167 = por %p165, %p166
    %s168 = ssub.s32 %s26, %s38
    %s169 = ssub.s32 %s27, %s34
    %s170 = sor.u32 %s168, %s169
    %p171 = scmp.eq.s32.totalorder %s170, 0
    %s173 = sadd.s32 %s172, 1
    %s174 = scalar_select %p171, %s172, %s173
    %p177 = pneg %p171
    %p178 = scmp.eq.s32.totalorder %s19, 5
    %p179 = por %p177, %p178
    %p180 = scmp.ne.s32.totalorder %s172, %s175
    %p181 = scmp.eq.s32.totalorder %s19, 0
    %p182 = por %p180, %p181
    %p183 = scmp.ne.s32.totalorder %s172, %s175
    %p184 = scmp.eq.s32.totalorder %s24, 5
    %p185 = por %p183, %p184
    %p186 = scmp.ne.s32.totalorder %s175, %s176
    %p187 = scmp.eq.s32.totalorder %s24, 0
    %p188 = por %p186, %p187
    %p189 = scmp.ne.s32.totalorder %s175, %s176
    %p190 = scmp.eq.s32.totalorder %s25, 5
    %p191 = por %p189, %p190
    %p193 = scmp.ne.s32.totalorder %s176, %s192
    %p194 = scmp.eq.s32.totalorder %s25, 0
    %p195 = por %p193, %p194
    %s196 = ssub.s32 %s26, %s38
    %s197 = ssub.s32 %s27, %s34
    %s198 = sor.u32 %s196, %s197
    %p199 = scmp.eq.s32.totalorder %s198, 0
    %s201 = sadd.s32 %s200, 1
    %s202 = scalar_select %p199, %s200, %s201
    %p205 = pneg %p199
    %p206 = scmp.eq.s32.totalorder %s19, 5
    %p207 = por %p205, %p206
    %p208 = scmp.ne.s32.totalorder %s200, %s203
    %p209 = scmp.eq.s32.totalorder %s19, 0
    %p210 = por %p208, %p209
    %p211 = scmp.ne.s32.totalorder %s200, %s203
    %p212 = scmp.eq.s32.totalorder %s24, 5
    %p213 = por %p211, %p212
    %p214 = scmp.ne.s32.totalorder %s203, %s204
    %p215 = scmp.eq.s32.totalorder %s24, 0
    %p216 = por %p214, %p215
    %p217 = scmp.ne.s32.totalorder %s203, %s204
    %p218 = scmp.eq.s32.totalorder %s25, 5
    %p219 = por %p217, %p218
    %p221 = scmp.ne.s32.totalorder %s204, %s220
    %p222 = scmp.eq.s32.totalorder %s25, 0
    %p223 = por %p221, %p222
    %s224 = ssub.s32 %s26, %s38
    %s225 = ssub.s32 %s27, %s34
    %s226 = sor.u32 %s224, %s225
    %p227 = scmp.eq.s32.totalorder %s226, 0
    %s229 = sadd.s32 %s228, 1
    %s230 = scalar_select %p227, %s228, %s229
    %p233 = pneg %p227
    %p234 = scmp.eq.s32.totalorder %s19, 5
    %p235 = por %p233, %p234
    %p236 = scmp.ne.s32.totalorder %s228, %s231
    %p237 = scmp.eq.s32.totalorder %s19, 0
    %p238 = por %p236, %p237
    %p239 = scmp.ne.s32.totalorder %s228, %s231
    %p240 = scmp.eq.s32.totalorder %s24, 5
    %p241 = por %p239, %p240
    %p242 = scmp.ne.s32.totalorder %s231, %s232
    %p243 = scmp.eq.s32.totalorder %s24, 0
    %p244 = por %p242, %p243
    %p245 = scmp.ne.s32.totalorder %s231, %s232
    %p246 = scmp.eq.s32.totalorder %s25, 5
    %p247 = por %p245, %p246
    %p249 = scmp.ne.s32.totalorder %s232, %s248
    %p250 = scmp.eq.s32.totalorder %s25, 0
    %p251 = por %p249, %p250
    %s252 = ssub.s32 %s26, %s38
    %s253 = ssub.s32 %s27, %s34
    %s254 = sor.u32 %s252, %s253
    %p255 = scmp.eq.s32.totalorder %s254, 0
    %s257 = sadd.s32 %s256, 1
    %s258 = scalar_select %p255, %s256, %s257
    %p261 = pneg %p255
    %p262 = scmp.eq.s32.totalorder %s19, 5
    %p263 = por %p261, %p262
    %p264 = scmp.ne.s32.totalorder %s256, %s259
    %p265 = scmp.eq.s32.totalorder %s19, 0
    %p266 = por %p264, %p265
    %p267 = scmp.ne.s32.totalorder %s256, %s259
    %p268 = scmp.eq.s32.totalorder %s24, 5
    %p269 = por %p267, %p268
    %p270 = scmp.ne.s32.totalorder %s259, %s260
    %p271 = scmp.eq.s32.totalorder %s24, 0
    %p272 = por %p270, %p271
    %p273 = scmp.ne.s32.totalorder %s259, %s260
    %p274 = scmp.eq.s32.totalorder %s25, 5
    %p275 = por %p273, %p274
    %p277 = scmp.ne.s32.totalorder %s260, %s276
    %p278 = scmp.eq.s32.totalorder %s25, 0
    %p279 = por %p277, %p278
    %s280 = ssub.s32 %s26, %s38
    %s281 = ssub.s32 %s27, %s34
    %s282 = sor.u32 %s280, %s281
    %p283 = scmp.eq.s32.totalorder %s282, 0
    %s285 = sadd.s32 %s284, 1
    %s286 = scalar_select %p283, %s284, %s285
    %p289 = pneg %p283
    %p290 = scmp.eq.s32.totalorder %s19, 5
    %p291 = por %p289, %p290
    %p292 = scmp.ne.s32.totalorder %s284, %s287
    %p293 = scmp.eq.s32.totalorder %s19, 0
    %p294 = por %p292, %p293
    %p295 = scmp.ne.s32.totalorder %s284, %s287
    %p296 = scmp.eq.s32.totalorder %s24, 5
    %p297 = por %p295, %p296
    %p298 = scmp.ne.s32.totalorder %s287, %s288
    %p299 = scmp.eq.s32.totalorder %s24, 0
    %p300 = por %p298, %p299
    %p301 = scmp.ne.s32.totalorder %s287, %s288
    %p302 = scmp.eq.s32.totalorder %s25, 5
    %p303 = por %p301, %p302
    %p305 = scmp.ne.s32.totalorder %s288, %s304
    %p306 = scmp.eq.s32.totalorder %s25, 0
    %p307 = por %p305, %p306
    %s308 = ssub.s32 %s26, %s38
    %s309 = ssub.s32 %s27, %s34
    %s310 = sor.u32 %s308, %s309
    %p311 = scmp.eq.s32.totalorder %s310, 0
    %s313 = sadd.s32 %s312, 1
    %s314 = scalar_select %p311, %s312, %s313
    %p317 = pneg %p311
    %p318 = scmp.eq.s32.totalorder %s19, 5
    %p319 = por %p317, %p318
    %p320 = scmp.ne.s32.totalorder %s312, %s315
    %p321 = scmp.eq.s32.totalorder %s19, 0
    %p322 = por %p320, %p321
    %p323 = scmp.ne.s32.totalorder %s312, %s315
    %p324 = scmp.eq.s32.totalorder %s24, 5
    %p325 = por %p323, %p324
    %p326 = scmp.ne.s32.totalorder %s315, %s316
    %p327 = scmp.eq.s32.totalorder %s24, 0
    %p328 = por %p326, %p327
    %p329 = scmp.ne.s32.totalorder %s315, %s316
    %p330 = scmp.eq.s32.totalorder %s25, 5
    %p331 = por %p329, %p330
    %p333 = scmp.ne.s32.totalorder %s316, %s332
    %p334 = scmp.eq.s32.totalorder %s25, 0
    %p335 = por %p333, %p334
    %s336 = ssub.s32 %s26, %s38
    %p337 = scmp.eq.s32.totalorder %s336, 0
    %s339 = sadd.s32 %s338, 1
    %s340 = scalar_select %p337, %s338, %s339
    %p343 = pneg %p337
    %p344 = scmp.eq.s32.totalorder %s19, 5
    %p345 = por %p343, %p344
    %p346 = scmp.ne.s32.totalorder %s338, %s341
    %p347 = scmp.eq.s32.totalorder %s19, 0
    %p348 = por %p346, %p347
    %p349 = scmp.ne.s32.totalorder %s338, %s341
    %p350 = scmp.eq.s32.totalorder %s24, 5
    %p351 = por %p349, %p350
    %p352 = scmp.ne.s32.totalorder %s341, %s342
    %p353 = scmp.eq.s32.totalorder %s24, 0
    %p354 = por %p352, %p353
    %p355 = scmp.ne.s32.totalorder %s341, %s342
    %p356 = scmp.eq.s32.totalorder %s25, 5
    %p357 = por %p355, %p356
    %p359 = scmp.ne.s32.totalorder %s342, %s358
    %p360 = scmp.eq.s32.totalorder %s25, 0
    %p361 = por %p359, %p360
    %s362 = ssub.s32 %s26, %s38
    %p363 = scmp.eq.s32.totalorder %s362, 0
    %s365 = sadd.s32 %s364, 1
    %s366 = scalar_select %p363, %s364, %s365
    %p369 = pneg %p363
    %p370 = scmp.eq.s32.totalorder %s19, 5
    %p371 = por %p369, %p370
    %p372 = scmp.ne.s32.totalorder %s364, %s367
    %p373 = scmp.eq.s32.totalorder %s19, 0
    %p374 = por %p372, %p373
    %p375 = scmp.ne.s32.totalorder %s364, %s367
    %p376 = scmp.eq.s32.totalorder %s24, 5
    %p377 = por %p375, %p376
    %p378 = scmp.ne.s32.totalorder %s367, %s368
    %p379 = scmp.eq.s32.totalorder %s24, 0
    %p380 = por %p378, %p379
    %p381 = scmp.ne.s32.totalorder %s367, %s368
    %p382 = scmp.eq.s32.totalorder %s25, 5
    %p383 = por %p381, %p382
    %p385 = scmp.ne.s32.totalorder %s368, %s384
    %p386 = scmp.eq.s32.totalorder %s25, 0
    %p387 = por %p385, %p386
    %p388 = scmp.le.s32.totalorder 1, %s19
    %p389 = scmp.lt.s32.totalorder %s19, 7
    %p390 = pnand %p388, %p389
    %p391 = pneg %p390
    // Predicated region
    $region9: #{dual_modality_enhanced_forward.1} parent=5 // pred_check
      _
    $region10: #{dual_modality_enhanced_forward.1} parent=5 // pred_check_branch
      %393 = sbr.rel (%p390) target = $region12
    $region11: #{dual_modality_enhanced_forward.1} parent=5 // pred_region
      %s394 = ssub.s32 %s19, 1
      // Predicated region
      $region13: #{dual_modality_enhanced_forward.1} parent=11 // pred_check
        %p395 = pneg %p104
      $region14: #{dual_modality_enhanced_forward.1} parent=11 // pred_check_branch
        %397 = sbr.rel (%p395) target = $region16
      $region15: #{dual_modality_enhanced_forward.1} parent=11 // pred_region
        _
      $region16: #{dual_modality_enhanced_forward.1} parent=11 // pred_fallthru
        _
    $region12: #{dual_modality_enhanced_forward.1} parent=5 // pred_fallthru
      _
    %p398 = scmp.lt.s32.totalorder %s19, 6
    // Predicated region
    $region17: #{dual_modality_enhanced_forward.1} parent=5 // pred_check
      %p399 = pneg %p398
    $region18: #{dual_modality_enhanced_forward.1} parent=5 // pred_check_branch
      %401 = sbr.rel (%p399) target = $region20
    $region19: #{dual_modality_enhanced_forward.1} parent=5 // pred_region
      // Predicated region
      $region21: #{dual_modality_enhanced_forward.1} parent=19 // pred_check
        %p402 = pneg %p51
      $region22: #{dual_modality_enhanced_forward.1} parent=19 // pred_check_branch
        %404 = sbr.rel (%p402) target = $region24
      $region23: #{dual_modality_enhanced_forward.1} parent=19 // pred_region
        %p405 = scmp.lt.s32.totalorder %s26, 2
        %s406 = scalar_select %p405, %s26, 2
        %s407 = smul.addr %s406, 2
        %s408 = smul.addr %s407, 8
        %s409 = scalar_lea.vmem %s0, %s408
      $region24: #{dual_modality_enhanced_forward.1} parent=19 // pred_fallthru
        _
      // Predicated region
      $region25: #{dual_modality_enhanced_forward.1} parent=19 // pred_check
        %p410 = pneg %p77
      $region26: #{dual_modality_enhanced_forward.1} parent=19 // pred_check_branch
        %412 = sbr.rel (%p410) target = $region28
      $region27: #{dual_modality_enhanced_forward.1} parent=19 // pred_region
        %p413 = scmp.lt.s32.totalorder %s26, 2
        %s414 = scalar_select %p413, %s26, 2
        %s415 = smul.addr %s414, 2
        %s416 = smul.addr %s415, 8
        %s417 = scalar_lea.vmem %s1, %s416
      $region28: #{dual_modality_enhanced_forward.1} parent=19 // pred_fallthru
        _
      // Predicated region
      $region29: #{dual_modality_enhanced_forward.1} parent=19 // pred_check
        %p418 = pneg %p126
      $region30: #{dual_modality_enhanced_forward.1} parent=19 // pred_check_branch
        %420 = sbr.rel (%p418) target = $region32
      $region31: #{dual_modality_enhanced_forward.1} parent=19 // pred_region
        %p421 = scmp.lt.s32.totalorder %s26, 2
        %s422 = scalar_select %p421, %s26, 2
        %p423 = scmp.lt.s32.totalorder %s27, 1
        %s424 = scalar_select %p423, %s27, 1
        %s425 = smul.addr %s424, 24
        %s426 = smul.addr %s422, 48
        %s427 = sadd.s32 %s425, %s426
        %s428 = smul.addr %s427, 4
        %s429 = scalar_lea.vmem %s3, %s428
      $region32: #{dual_modality_enhanced_forward.1} parent=19 // pred_fallthru
        _
      // Predicated region
      $region33: #{dual_modality_enhanced_forward.1} parent=19 // pred_check
        %p430 = pneg %p154
      $region34: #{dual_modality_enhanced_forward.1} parent=19 // pred_check_branch
        %432 = sbr.rel (%p430) target = $region36
      $region35: #{dual_modality_enhanced_forward.1} parent=19 // pred_region
        %p433 = scmp.lt.s32.totalorder %s26, 2
        %s434 = scalar_select %p433, %s26, 2
        %p435 = scmp.lt.s32.totalorder %s27, 1
        %s436 = scalar_select %p435, %s27, 1
        %s437 = smul.addr %s434, 2
        %s438 = sadd.s32 %s436, %s437
        %s439 = smul.addr %s438, 8
        %s440 = scalar_lea.vmem %s4, %s439
      $region36: #{dual_modality_enhanced_forward.1} parent=19 // pred_fallthru
        _
      // Predicated region
      $region37: #{dual_modality_enhanced_forward.1} parent=19 // pred_check
        %p441 = pneg %p182
      $region38: #{dual_modality_enhanced_forward.1} parent=19 // pred_check_branch
        %443 = sbr.rel (%p441) target = $region40
      $region39: #{dual_modality_enhanced_forward.1} parent=19 // pred_region
        %p444 = scmp.lt.s32.totalorder %s26, 2
        %s445 = scalar_select %p444, %s26, 2
        %p446 = scmp.lt.s32.totalorder %s27, 1
        %s447 = scalar_select %p446, %s27, 1
        %s448 = smul.addr %s447, 8
        %s449 = smul.addr %s445, 16
        %s450 = sadd.s32 %s448, %s449
        %s451 = smul.addr %s450, 4
        %s452 = scalar_lea.vmem %s5, %s451
      $region40: #{dual_modality_enhanced_forward.1} parent=19 // pred_fallthru
        _
      // Predicated region
      $region41: #{dual_modality_enhanced_forward.1} parent=19 // pred_check
        %p453 = pneg %p210
      $region42: #{dual_modality_enhanced_forward.1} parent=19 // pred_check_branch
        %455 = sbr.rel (%p453) target = $region44
      $region43: #{dual_modality_enhanced_forward.1} parent=19 // pred_region
        %p456 = scmp.lt.s32.totalorder %s26, 2
        %s457 = scalar_select %p456, %s26, 2
        %p458 = scmp.lt.s32.totalorder %s27, 1
        %s459 = scalar_select %p458, %s27, 1
        %s460 = smul.addr %s457, 2
        %s461 = sadd.s32 %s459, %s460
        %s462 = smul.addr %s461, 2
        %s463 = scalar_lea.vmem %s6, %s462
      $region44: #{dual_modality_enhanced_forward.1} parent=19 // pred_fallthru
        _
      // Predicated region
      $region45: #{dual_modality_enhanced_forward.1} parent=19 // pred_check
        %p464 = pneg %p238
      $region46: #{dual_modality_enhanced_forward.1} parent=19 // pred_check_branch
        %466 = sbr.rel (%p464) target = $region48
      $region47: #{dual_modality_enhanced_forward.1} parent=19 // pred_region
        %p467 = scmp.lt.s32.totalorder %s26, 2
        %s468 = scalar_select %p467, %s26, 2
        %p469 = scmp.lt.s32.totalorder %s27, 1
        %s470 = scalar_select %p469, %s27, 1
        %s471 = smul.addr %s470, 16
        %s472 = smul.addr %s468, 32
        %s473 = sadd.s32 %s471, %s472
        %s474 = smul.addr %s473, 4
        %s475 = scalar_lea.vmem %s7, %s474
      $region48: #{dual_modality_enhanced_forward.1} parent=19 // pred_fallthru
        _
      // Predicated region
      $region49: #{dual_modality_enhanced_forward.1} parent=19 // pred_check
        %p476 = pneg %p266
      $region50: #{dual_modality_enhanced_forward.1} parent=19 // pred_check_branch
        %478 = sbr.rel (%p476) target = $region52
      $region51: #{dual_modality_enhanced_forward.1} parent=19 // pred_region
        %p479 = scmp.lt.s32.totalorder %s26, 2
        %s480 = scalar_select %p479, %s26, 2
        %p481 = scmp.lt.s32.totalorder %s27, 1
        %s482 = scalar_select %p481, %s27, 1
        %s483 = smul.addr %s480, 2
        %s484 = sadd.s32 %s482, %s483
        %s485 = smul.addr %s484, 2
        %s486 = scalar_lea.vmem %s8, %s485
      $region52: #{dual_modality_enhanced_forward.1} parent=19 // pred_fallthru
        _
      // Predicated region
      $region53: #{dual_modality_enhanced_forward.1} parent=19 // pred_check
        %p487 = pneg %p294
      $region54: #{dual_modality_enhanced_forward.1} parent=19 // pred_check_branch
        %489 = sbr.rel (%p487) target = $region56
      $region55: #{dual_modality_enhanced_forward.1} parent=19 // pred_region
        %p490 = scmp.lt.s32.totalorder %s26, 2
        %s491 = scalar_select %p490, %s26, 2
        %p492 = scmp.lt.s32.totalorder %s27, 1
        %s493 = scalar_select %p492, %s27, 1
        %s494 = smul.addr %s491, 2
        %s495 = sadd.s32 %s493, %s494
        %s496 = smul.addr %s495, 2
        %s497 = scalar_lea.vmem %s9, %s496
      $region56: #{dual_modality_enhanced_forward.1} parent=19 // pred_fallthru
        _
      // Predicated region
      $region57: #{dual_modality_enhanced_forward.1} parent=19 // pred_check
        %p498 = pneg %p322
      $region58: #{dual_modality_enhanced_forward.1} parent=19 // pred_check_branch
        %500 = sbr.rel (%p498) target = $region60
      $region59: #{dual_modality_enhanced_forward.1} parent=19 // pred_region
        %p501 = scmp.lt.s32.totalorder %s26, 2
        %s502 = scalar_select %p501, %s26, 2
        %p503 = scmp.lt.s32.totalorder %s27, 1
        %s504 = scalar_select %p503, %s27, 1
        %s505 = smul.addr %s502, 2
        %s506 = sadd.s32 %s504, %s505
        %s507 = smul.addr %s506, 2
        %s508 = scalar_lea.vmem %s10, %s507
      $region60: #{dual_modality_enhanced_forward.1} parent=19 // pred_fallthru
        _
    $region20: #{dual_modality_enhanced_forward.1} parent=5 // pred_fallthru
      _
    %p509 = scmp.le.s32.totalorder 1, %s19
    %p510 = scmp.lt.s32.totalorder %s19, 7
    %p511 = pnand %p509, %p510
    %p512 = pneg %p511
    // Predicated region
    $region61: #{dual_modality_enhanced_forward.1} parent=5 // pred_check
      _
    $region62: #{dual_modality_enhanced_forward.1} parent=5 // pred_check_branch
      %514 = sbr.rel (%p511) target = $region64
    $region63: #{dual_modality_enhanced_forward.1} parent=5 // pred_region
      %s515 = ssub.s32 %s19, 1
      %p516 = scmp.lt.s32.totalorder %s28, 2
      %s517 = scalar_select %p516, %s28, 2
      %s518 = smul.addr %s517, 2
      %s519 = smul.addr %s518, 8
      %s520 = scalar_lea.vmem %s0, %s519
      %p521 = pneg %p57
      %p522 = pneg %p54
      %p523 = scmp.lt.s32.totalorder %s28, 2
      %s524 = scalar_select %p523, %s28, 2
      %s525 = smul.addr %s524, 2
      %s526 = smul.addr %s525, 8
      %s527 = scalar_lea.vmem %s1, %s526
      %p528 = pneg %p83
      %p529 = pneg %p80
      %p530 = pneg %p104
      %p531 = pneg %p101
      %p532 = scmp.lt.s32.totalorder %s28, 2
      %s533 = scalar_select %p532, %s28, 2
      %p534 = scmp.lt.s32.totalorder %s29, 1
      %s535 = scalar_select %p534, %s29, 1
      %s536 = smul.addr %s535, 24
      %s537 = smul.addr %s533, 48
      %s538 = sadd.s32 %s536, %s537
      %s539 = smul.addr %s538, 4
      %s540 = scalar_lea.vmem %s3, %s539
      %p541 = pneg %p132
      %p542 = pneg %p129
      %p543 = scmp.lt.s32.totalorder %s28, 2
      %s544 = scalar_select %p543, %s28, 2
      %p545 = scmp.lt.s32.totalorder %s29, 1
      %s546 = scalar_select %p545, %s29, 1
      %s547 = smul.addr %s544, 2
      %s548 = sadd.s32 %s546, %s547
      %s549 = smul.addr %s548, 8
      %s550 = scalar_lea.vmem %s4, %s549
      %p551 = pneg %p160
      %p552 = pneg %p157
      %p553 = scmp.lt.s32.totalorder %s28, 2
      %s554 = scalar_select %p553, %s28, 2
      %p555 = scmp.lt.s32.totalorder %s29, 1
      %s556 = scalar_select %p555, %s29, 1
      %s557 = smul.addr %s556, 8
      %s558 = smul.addr %s554, 16
      %s559 = sadd.s32 %s557, %s558
      %s560 = smul.addr %s559, 4
      %s561 = scalar_lea.vmem %s5, %s560
      %p562 = pneg %p188
      %p563 = pneg %p185
      %p564 = scmp.lt.s32.totalorder %s28, 2
      %s565 = scalar_select %p564, %s28, 2
      %p566 = scmp.lt.s32.totalorder %s29, 1
      %s567 = scalar_select %p566, %s29, 1
      %s568 = smul.addr %s565, 2
      %s569 = sadd.s32 %s567, %s568
      %s570 = smul.addr %s569, 2
      %s571 = scalar_lea.vmem %s6, %s570
      %p572 = pneg %p216
      %p573 = pneg %p213
      %p574 = scmp.lt.s32.totalorder %s28, 2
      %s575 = scalar_select %p574, %s28, 2
      %p576 = scmp.lt.s32.totalorder %s29, 1
      %s577 = scalar_select %p576, %s29, 1
      %s578 = smul.addr %s577, 16
      %s579 = smul.addr %s575, 32
      %s580 = sadd.s32 %s578, %s579
      %s581 = smul.addr %s580, 4
      %s582 = scalar_lea.vmem %s7, %s581
      %p583 = pneg %p244
      %p584 = pneg %p241
      %p585 = scmp.lt.s32.totalorder %s28, 2
      %s586 = scalar_select %p585, %s28, 2
      %p587 = scmp.lt.s32.totalorder %s29, 1
      %s588 = scalar_select %p587, %s29, 1
      %s589 = smul.addr %s586, 2
      %s590 = sadd.s32 %s588, %s589
      %s591 = smul.addr %s590, 2
      %s592 = scalar_lea.vmem %s8, %s591
      %p593 = pneg %p272
      %p594 = pneg %p269
      %p595 = scmp.lt.s32.totalorder %s28, 2
      %s596 = scalar_select %p595, %s28, 2
      %p597 = scmp.lt.s32.totalorder %s29, 1
      %s598 = scalar_select %p597, %s29, 1
      %s599 = smul.addr %s596, 2
      %s600 = sadd.s32 %s598, %s599
      %s601 = smul.addr %s600, 2
      %s602 = scalar_lea.vmem %s9, %s601
      %p603 = pneg %p300
      %p604 = pneg %p297
      %p605 = scmp.lt.s32.totalorder %s28, 2
      %s606 = scalar_select %p605, %s28, 2
      %p607 = scmp.lt.s32.totalorder %s29, 1
      %s608 = scalar_select %p607, %s29, 1
      %s609 = smul.addr %s606, 2
      %s610 = sadd.s32 %s608, %s609
      %s611 = smul.addr %s610, 2
      %s612 = scalar_lea.vmem %s10, %s611
      %p613 = pneg %p328
      %p614 = pneg %p325
      %p615 = pneg %p354
      %p616 = pneg %p351
      %p617 = scmp.lt.s32.totalorder %s28, 2
      %s618 = scalar_select %p617, %s28, 2
      %s619 = smul.addr %s618, 2
      %s620 = smul.addr %s619, 8
      %s621 = scalar_lea.vmem %s11, %s620
      %p622 = pneg %p380
      %p623 = pneg %p377
      %p624 = scmp.lt.s32.totalorder %s28, 2
      %s625 = scalar_select %p624, %s28, 2
      %s626 = smul.addr %s625, 2
      %s627 = smul.addr %s626, 8
      %s628 = scalar_lea.vmem %s12, %s627
      %p629 = scmp.lt.s32.totalorder %s28, 2
      %s630 = scalar_select %p629, %s28, 2
      %s631 = smul.addr %s630, 2
      %s632 = smul.addr %s631, 8
      %s633 = scalar_lea.vmem %s0, %s632
      %p634 = scmp.lt.s32.totalorder %s28, 2
      %s635 = scalar_select %p634, %s28, 2
      %s636 = smul.addr %s635, 2
      %s637 = smul.addr %s636, 8
      %s638 = scalar_lea.vmem %s1, %s637
      %p639 = scmp.lt.s32.totalorder %s28, 2
      %s640 = scalar_select %p639, %s28, 2
      %p641 = scmp.lt.s32.totalorder %s29, 1
      %s642 = scalar_select %p641, %s29, 1
      %s643 = smul.addr %s642, 24
      %s644 = smul.addr %s640, 48
      %s645 = sadd.s32 %s643, %s644
      %s646 = smul.addr %s645, 4
      %s647 = scalar_lea.vmem %s3, %s646
      %p648 = scmp.lt.s32.totalorder %s28, 2
      %s649 = scalar_select %p648, %s28, 2
      %p650 = scmp.lt.s32.totalorder %s29, 1
      %s651 = scalar_select %p650, %s29, 1
      %s652 = smul.addr %s649, 2
      %s653 = sadd.s32 %s651, %s652
      %s654 = smul.addr %s653, 8
      %s655 = scalar_lea.vmem %s4, %s654
      %p656 = scmp.lt.s32.totalorder %s28, 2
      %s657 = scalar_select %p656, %s28, 2
      %p658 = scmp.lt.s32.totalorder %s29, 1
      %s659 = scalar_select %p658, %s29, 1
      %s660 = smul.addr %s659, 8
      %s661 = smul.addr %s657, 16
      %s662 = sadd.s32 %s660, %s661
      %s663 = smul.addr %s662, 4
      %s664 = scalar_lea.vmem %s5, %s663
      %p665 = scmp.lt.s32.totalorder %s28, 2
      %s666 = scalar_select %p665, %s28, 2
      %p667 = scmp.lt.s32.totalorder %s29, 1
      %s668 = scalar_select %p667, %s29, 1
      %s669 = smul.addr %s666, 2
      %s670 = sadd.s32 %s668, %s669
      %s671 = smul.addr %s670, 2
      %s672 = scalar_lea.vmem %s6, %s671
      %p673 = scmp.lt.s32.totalorder %s28, 2
      %s674 = scalar_select %p673, %s28, 2
      %p675 = scmp.lt.s32.totalorder %s29, 1
      %s676 = scalar_select %p675, %s29, 1
      %s677 = smul.addr %s676, 16
      %s678 = smul.addr %s674, 32
      %s679 = sadd.s32 %s677, %s678
      %s680 = smul.addr %s679, 4
      %s681 = scalar_lea.vmem %s7, %s680
      %p682 = scmp.lt.s32.totalorder %s28, 2
      %s683 = scalar_select %p682, %s28, 2
      %p684 = scmp.lt.s32.totalorder %s29, 1
      %s685 = scalar_select %p684, %s29, 1
      %s686 = smul.addr %s683, 2
      %s687 = sadd.s32 %s685, %s686
      %s688 = smul.addr %s687, 2
      %s689 = scalar_lea.vmem %s8, %s688
      %p690 = scmp.lt.s32.totalorder %s28, 2
      %s691 = scalar_select %p690, %s28, 2
      %p692 = scmp.lt.s32.totalorder %s29, 1
      %s693 = scalar_select %p692, %s29, 1
      %s694 = smul.addr %s691, 2
      %s695 = sadd.s32 %s693, %s694
      %s696 = smul.addr %s695, 2
      %s697 = scalar_lea.vmem %s9, %s696
      %p698 = scmp.lt.s32.totalorder %s28, 2
      %s699 = scalar_select %p698, %s28, 2
      %p700 = scmp.lt.s32.totalorder %s29, 1
      %s701 = scalar_select %p700, %s29, 1
      %s702 = smul.addr %s699, 2
      %s703 = sadd.s32 %s701, %s702
      %s704 = smul.addr %s703, 2
      %s705 = scalar_lea.vmem %s10, %s704
      %p706 = scmp.lt.s32.totalorder %s28, 2
      %s707 = scalar_select %p706, %s28, 2
      %s708 = smul.addr %s707, 2
      %s709 = smul.addr %s708, 8
      %s710 = scalar_lea.vmem %s11, %s709
      %p711 = scmp.lt.s32.totalorder %s28, 2
      %s712 = scalar_select %p711, %s28, 2
      %s713 = smul.addr %s712, 2
      %s714 = smul.addr %s713, 8
      %s715 = scalar_lea.vmem %s12, %s714
      %p717 = scmp.eq.s32.totalorder %s29, 0
      // Predicated region
      $region65: #{dual_modality_enhanced_forward.1} parent=63 // pred_check
        %p718 = pneg %p717
      $region66: #{dual_modality_enhanced_forward.1} parent=63 // pred_check_branch
        %720 = sbr.rel (%p718) target = $region68
      $region67: #{dual_modality_enhanced_forward.1} parent=63 // pred_region
        %v721 = vld [vmem:[%s633] sm:$0xff]
        %v722 = vld [vmem:[%s633 + $0x8] sm:$0xff]
        %vm723 = vcmask 261120
        %724 = vst.msk [vmem:[%s710] sm:$0xff] %vm723, %v721
        %725 = vst.msk [vmem:[%s710 + $0x8] sm:$0xff] %vm723, %v722
        %v726 = vld [vmem:[%s638] sm:$0xff]
        %v727 = vld [vmem:[%s638 + $0x8] sm:$0xff]
        %728 = vst.msk [vmem:[%s715] sm:$0xff] %vm723, %v726
        %729 = vst.msk [vmem:[%s715 + $0x8] sm:$0xff] %vm723, %v727
      $region68: #{dual_modality_enhanced_forward.1} parent=63 // pred_fallthru
        _
      %v730 = vld [vmem:[%s710] sm:$0xff]
      %v731 = vld [vmem:[%s710 + $0x8] sm:$0xff]
      %v732 = vld [vmem:[%s715] sm:$0xff]
      %v733 = vld [vmem:[%s715 + $0x8] sm:$0xff]
      %v734 = vld [vmem:[%s647] sm:$0xf]
      %v735 = vld [vmem:[%s647 + $0x4] sm:$0xf]
      %v736 = vld [vmem:[%s647 + $0x8] sm:$0xf]
      %v737 = vld [vmem:[%s647 + $0xc] sm:$0xf]
      %v738 = vld [vmem:[%s655] sm:$0x1]
      %v739 = vpack.c.bf16 %v731, %v730
      %v744 = vunpack.c.l.b16 %v734
      %v745 = vunpack.c.l.b16 %v735
      %v746 = vunpack.c.l.b16 %v736
      %v747 = vunpack.c.l.b16 %v737
      %v748 = vpack.c.b16 %v745, %v744
      %v749 = vpack.c.b16 %v747, %v746
      %vm752 = vcmask 261120
      %v754 = vsel %vm752, %v739, 0
      %756 = vmatprep.subr.bf16.mxu0 0
      %757 = vmatpush1.bf16.msra.mxu0 %v748
      %758 = vmatprep.subr.bf16.mxu0 0
      %759 = vmatpush1.bf16.msra.mxu0 %v749
      %760 = vmatprep.subr.bf16.mxu0 0
      %761 = vmatpush1.bf16.msra.mxu0 0
      %762 = vmatprep.subr.bf16.mxu0 0
      %763 = vmatpush1.bf16.msra.mxu0 0
      %764 = vmatprep.subr.bf16.mxu0 0
      %765 = vmatpush1.bf16.msra.mxu0 0
      %766 = vmatprep.subr.bf16.mxu0 0
      %767 = vmatpush1.bf16.msra.mxu0 0
      %768 = vmatprep.subr.bf16.mxu0 0
      %769 = vmatpush1.bf16.msra.mxu0 0
      %770 = vmatprep.subr.bf16.mxu0 0
      %771 = vmatpush1.bf16.msra.mxu0 0
      %772 = vmatprep.subr.bf16.mxu0 0
      %773 = vmatpush1.bf16.msra.mxu0 0
      %774 = vmatprep.subr.bf16.mxu0 0
      %775 = vmatpush1.bf16.msra.mxu0 0
      %776 = vmatprep.subr.bf16.mxu0 0
      %777 = vmatpush1.bf16.msra.mxu0 0
      %778 = vmatprep.subr.bf16.mxu0 0
      %779 = vmatpush1.bf16.msra.mxu0 0
      %780 = vmatprep.subr.bf16.mxu0 0
      %781 = vmatpush1.bf16.msra.mxu0 0
      %782 = vmatprep.subr.bf16.mxu0 0
      %783 = vmatpush1.bf16.msra.mxu0 0
      %784 = vmatprep.subr.bf16.mxu0 0
      %785 = vmatpush1.bf16.msra.mxu0 0
      %786 = vmatprep.subr.bf16.mxu0 0
      %787 = vmatpush1.bf16.msra.mxu0 0
      %788 = vmatprep.mubr.bf16.mxu0 0
      %789 = vmatmul.mubr.bf16.gmra.mrb[0].mxu0 %v754
      %v790 = vpop.f32.mrb[0].mxu0
      %v791 = vadd.f32 0.0, %v790
      %v792 = vpop.f32.mrb[0].mxu0
      %v793 = vpop.f32.mrb[0].mxu0
      %v794 = vadd.f32 0.0, %v793
      %v795 = vpop.f32.mrb[0].mxu0
      %796 = vdwg.mxu0
      %v797 = vlaneseq
      %v798 = vshrl.u32 %v797, 7
      %v799 = vsub.s32 0, %v798
      %v800 = vrot.slane %v738, %v799
      %v801 = vadd.f32 %v791, %v800
      %v802 = vadd.f32 %v794, %v800
      %s803 = scalar_lea.vmem %s647, 16
      %v804 = vld [vmem:[%s803] sm:$0xf]
      %v805 = vld [vmem:[%s803 + $0x4] sm:$0xf]
      %v806 = vld [vmem:[%s803 + $0x8] sm:$0xf]
      %v807 = vld [vmem:[%s803 + $0xc] sm:$0xf]
      %v808 = vld [vmem:[%s655 + $0x1] sm:$0x1]
      %v809 = vpack.c.bf16 %v733, %v732
      %v814 = vunpack.c.l.b16 %v804
      %v815 = vunpack.c.l.b16 %v805
      %v816 = vunpack.c.l.b16 %v806
      %v817 = vunpack.c.l.b16 %v807
      %v818 = vpack.c.b16 %v815, %v814
      %v819 = vpack.c.b16 %v817, %v816
      %v823 = vsel %vm752, %v809, 0
      %825 = vmatprep.subr.bf16.mxu0 0
      %826 = vmatpush1.bf16.msra.mxu0 %v818
      %827 = vmatprep.subr.bf16.mxu0 0
      %828 = vmatpush1.bf16.msra.mxu0 %v819
      %829 = vmatprep.subr.bf16.mxu0 0
      %830 = vmatpush1.bf16.msra.mxu0 0
      %831 = vmatprep.subr.bf16.mxu0 0
      %832 = vmatpush1.bf16.msra.mxu0 0
      %833 = vmatprep.subr.bf16.mxu0 0
      %834 = vmatpush1.bf16.msra.mxu0 0
      %835 = vmatprep.subr.bf16.mxu0 0
      %836 = vmatpush1.bf16.msra.mxu0 0
      %837 = vmatprep.subr.bf16.mxu0 0
      %838 = vmatpush1.bf16.msra.mxu0 0
      %839 = vmatprep.subr.bf16.mxu0 0
      %840 = vmatpush1.bf16.msra.mxu0 0
      %841 = vmatprep.subr.bf16.mxu0 0
      %842 = vmatpush1.bf16.msra.mxu0 0
      %843 = vmatprep.subr.bf16.mxu0 0
      %844 = vmatpush1.bf16.msra.mxu0 0
      %845 = vmatprep.subr.bf16.mxu0 0
      %846 = vmatpush1.bf16.msra.mxu0 0
      %847 = vmatprep.subr.bf16.mxu0 0
      %848 = vmatpush1.bf16.msra.mxu0 0
      %849 = vmatprep.subr.bf16.mxu0 0
      %850 = vmatpush1.bf16.msra.mxu0 0
      %851 = vmatprep.subr.bf16.mxu0 0
      %852 = vmatpush1.bf16.msra.mxu0 0
      %853 = vmatprep.subr.bf16.mxu0 0
      %854 = vmatpush1.bf16.msra.mxu0 0
      %855 = vmatprep.subr.bf16.mxu0 0
      %856 = vmatpush1.bf16.msra.mxu0 0
      %857 = vmatprep.mubr.bf16.mxu0 0
      %858 = vmatmul.mubr.bf16.gmra.mrb[0].mxu0 %v823
      %v859 = vpop.f32.mrb[0].mxu0
      %v860 = vadd.f32 0.0, %v859
      %v861 = vpop.f32.mrb[0].mxu0
      %v862 = vpop.f32.mrb[0].mxu0
      %v863 = vadd.f32 0.0, %v862
      %v864 = vpop.f32.mrb[0].mxu0
      %865 = vdwg.mxu0
      %v866 = vlaneseq
      %v867 = vshrl.u32 %v866, 7
      %v868 = vsub.s32 0, %v867
      %v869 = vrot.slane %v808, %v868
      %v870 = vadd.f32 %v860, %v869
      %v871 = vadd.f32 %v863, %v869
      %s872 = scalar_lea.vmem %s647, 32
      %v873 = vld [vmem:[%s872] sm:$0xf]
      %v874 = vld [vmem:[%s872 + $0x4] sm:$0xf]
      %v875 = vld [vmem:[%s872 + $0x8] sm:$0xf]
      %v876 = vld [vmem:[%s872 + $0xc] sm:$0xf]
      %v877 = vld [vmem:[%s655 + $0x2] sm:$0x1]
      %v882 = vunpack.c.l.b16 %v873
      %v883 = vunpack.c.l.b16 %v874
      %v884 = vunpack.c.l.b16 %v875
      %v885 = vunpack.c.l.b16 %v876
      %v886 = vpack.c.b16 %v883, %v882
      %v887 = vpack.c.b16 %v885, %v884
      %890 = vmatprep.subr.bf16.mxu0 0
      %891 = vmatpush1.bf16.msra.mxu0 %v886
      %892 = vmatprep.subr.bf16.mxu0 0
      %893 = vmatpush1.bf16.msra.mxu0 %v887
      %894 = vmatprep.subr.bf16.mxu0 0
      %895 = vmatpush1.bf16.msra.mxu0 0
      %896 = vmatprep.subr.bf16.mxu0 0
      %897 = vmatpush1.bf16.msra.mxu0 0
      %898 = vmatprep.subr.bf16.mxu0 0
      %899 = vmatpush1.bf16.msra.mxu0 0
      %900 = vmatprep.subr.bf16.mxu0 0
      %901 = vmatpush1.bf16.msra.mxu0 0
      %902 = vmatprep.subr.bf16.mxu0 0
      %903 = vmatpush1.bf16.msra.mxu0 0
      %904 = vmatprep.subr.bf16.mxu0 0
      %905 = vmatpush1.bf16.msra.mxu0 0
      %906 = vmatprep.subr.bf16.mxu0 0
      %907 = vmatpush1.bf16.msra.mxu0 0
      %908 = vmatprep.subr.bf16.mxu0 0
      %909 = vmatpush1.bf16.msra.mxu0 0
      %910 = vmatprep.subr.bf16.mxu0 0
      %911 = vmatpush1.bf16.msra.mxu0 0
      %912 = vmatprep.subr.bf16.mxu0 0
      %913 = vmatpush1.bf16.msra.mxu0 0
      %914 = vmatprep.subr.bf16.mxu0 0
      %915 = vmatpush1.bf16.msra.mxu0 0
      %916 = vmatprep.subr.bf16.mxu0 0
      %917 = vmatpush1.bf16.msra.mxu0 0
      %918 = vmatprep.subr.bf16.mxu0 0
      %919 = vmatpush1.bf16.msra.mxu0 0
      %920 = vmatprep.subr.bf16.mxu0 0
      %921 = vmatpush1.bf16.msra.mxu0 0
      %922 = vmatprep.mubr.bf16.mxu0 0
      %923 = vmatmul.mubr.bf16.gmra.mrb[0].mxu0 %v754
      %v924 = vpop.f32.mrb[0].mxu0
      %v925 = vadd.f32 0.0, %v924
      %v926 = vpop.f32.mrb[0].mxu0
      %v927 = vpop.f32.mrb[0].mxu0
      %v928 = vadd.f32 0.0, %v927
      %v929 = vpop.f32.mrb[0].mxu0
      %930 = vdwg.mxu0
      %v931 = vlaneseq
      %v932 = vshrl.u32 %v931, 7
      %v933 = vsub.s32 0, %v932
      %v934 = vrot.slane %v877, %v933
      %v935 = vadd.f32 %v925, %v934
      %v936 = vadd.f32 %v928, %v934
      %s937 = scalar_lea.vmem %s647, 48
      %v938 = vld [vmem:[%s937] sm:$0xf]
      %v939 = vld [vmem:[%s937 + $0x4] sm:$0xf]
      %v940 = vld [vmem:[%s937 + $0x8] sm:$0xf]
      %v941 = vld [vmem:[%s937 + $0xc] sm:$0xf]
      %v942 = vld [vmem:[%s655 + $0x3] sm:$0x1]
      %v947 = vunpack.c.l.b16 %v938
      %v948 = vunpack.c.l.b16 %v939
      %v949 = vunpack.c.l.b16 %v940
      %v950 = vunpack.c.l.b16 %v941
      %v951 = vpack.c.b16 %v948, %v947
      %v952 = vpack.c.b16 %v950, %v949
      %955 = vmatprep.subr.bf16.mxu0 0
      %956 = vmatpush1.bf16.msra.mxu0 %v951
      %957 = vmatprep.subr.bf16.mxu0 0
      %958 = vmatpush1.bf16.msra.mxu0 %v952
      %959 = vmatprep.subr.bf16.mxu0 0
      %960 = vmatpush1.bf16.msra.mxu0 0
      %961 = vmatprep.subr.bf16.mxu0 0
      %962 = vmatpush1.bf16.msra.mxu0 0
      %963 = vmatprep.subr.bf16.mxu0 0
      %964 = vmatpush1.bf16.msra.mxu0 0
      %965 = vmatprep.subr.bf16.mxu0 0
      %966 = vmatpush1.bf16.msra.mxu0 0
      %967 = vmatprep.subr.bf16.mxu0 0
      %968 = vmatpush1.bf16.msra.mxu0 0
      %969 = vmatprep.subr.bf16.mxu0 0
      %970 = vmatpush1.bf16.msra.mxu0 0
      %971 = vmatprep.subr.bf16.mxu0 0
      %972 = vmatpush1.bf16.msra.mxu0 0
      %973 = vmatprep.subr.bf16.mxu0 0
      %974 = vmatpush1.bf16.msra.mxu0 0
      %975 = vmatprep.subr.bf16.mxu0 0
      %976 = vmatpush1.bf16.msra.mxu0 0
      %977 = vmatprep.subr.bf16.mxu0 0
      %978 = vmatpush1.bf16.msra.mxu0 0
      %979 = vmatprep.subr.bf16.mxu0 0
      %980 = vmatpush1.bf16.msra.mxu0 0
      %981 = vmatprep.subr.bf16.mxu0 0
      %982 = vmatpush1.bf16.msra.mxu0 0
      %983 = vmatprep.subr.bf16.mxu0 0
      %984 = vmatpush1.bf16.msra.mxu0 0
      %985 = vmatprep.subr.bf16.mxu0 0
      %986 = vmatpush1.bf16.msra.mxu0 0
      %987 = vmatprep.mubr.bf16.mxu0 0
      %988 = vmatmul.mubr.bf16.gmra.mrb[0].mxu0 %v823
      %v989 = vpop.f32.mrb[0].mxu0
      %v990 = vadd.f32 0.0, %v989
      %v991 = vpop.f32.mrb[0].mxu0
      %v992 = vpop.f32.mrb[0].mxu0
      %v993 = vadd.f32 0.0, %v992
      %v994 = vpop.f32.mrb[0].mxu0
      %995 = vdwg.mxu0
      %v996 = vlaneseq
      %v997 = vshrl.u32 %v996, 7
      %v998 = vsub.s32 0, %v997
      %v999 = vrot.slane %v942, %v998
      %v1000 = vadd.f32 %v990, %v999
      %v1001 = vadd.f32 %v993, %v999
      %v1002 = vld [vmem:[%s2] sm:$0x1]
      %v1003 = vld [vmem:[%s2 + $0x1] sm:$0x1]
      %v1004 = vld [vmem:[%s2 + $0x2] sm:$0x1]
      %v1005 = vld [vmem:[%s2 + $0x3] sm:$0x1]
      %v1006 = vmul.f32 %v801, 0.35355338
      %v1007 = vmul.f32 %v802, 0.35355338
      %v1012 = vlaneseq
      %v1013 = vshrl.u32 %v1012, 7
      %v1014 = vsub.s32 0, %v1013
      %v1015 = vrot.slane %v1002, %v1014
      %v1016 = vlaneseq
      %v1017 = vshrl.u32 %v1016, 7
      %v1018 = vsub.s32 0, %v1017
      %v1019 = vrot.slane %v1003, %v1018
      %v1020 = vlaneseq
      %v1021 = vshrl.u32 %v1020, 7
      %v1022 = vsub.s32 0, %v1021
      %v1023 = vrot.slane %v1004, %v1022
      %v1024 = vlaneseq
      %v1025 = vshrl.u32 %v1024, 7
      %v1026 = vsub.s32 0, %v1025
      %v1027 = vrot.slane %v1005, %v1026
      %v1032 = vmul.f32 %v1006, %v1015
      %v1033 = vmul.f32 %v1006, %v1019
      %v1034 = vmul.f32 %v1006, %v1023
      %v1035 = vmul.f32 %v1006, %v1027
      %v1036 = vmul.f32 %v1007, %v1015
      %v1037 = vmul.f32 %v1007, %v1019
      %v1038 = vmul.f32 %v1007, %v1023
      %v1039 = vmul.f32 %v1007, %v1027
      %v1040 = vmul.f32 %v935, %v1015
      %v1041 = vmul.f32 %v935, %v1019
      %v1042 = vmul.f32 %v935, %v1023
      %v1043 = vmul.f32 %v935, %v1027
      %v1044 = vmul.f32 %v936, %v1015
      %v1045 = vmul.f32 %v936, %v1019
      %v1046 = vmul.f32 %v936, %v1023
      %v1047 = vmul.f32 %v936, %v1027
      %v1048 = vmul.f32 %v1000, %v1015
      %v1049 = vmul.f32 %v1000, %v1019
      %v1050 = vmul.f32 %v1000, %v1023
      %v1051 = vmul.f32 %v1000, %v1027
      %v1052 = vmul.f32 %v1001, %v1015
      %v1053 = vmul.f32 %v1001, %v1019
      %v1054 = vmul.f32 %v1001, %v1023
      %v1055 = vmul.f32 %v1001, %v1027
      %v1056 = vpack.c.bf16 %v1032, %v1032
      %v1057 = vpack.c.bf16 %v1033, %v1033
      %v1058 = vpack.c.bf16 %v1034, %v1034
      %v1059 = vpack.c.bf16 %v1035, %v1035
      %v1060 = vpack.c.bf16 %v1036, %v1036
      %v1061 = vpack.c.bf16 %v1037, %v1037
      %v1062 = vpack.c.bf16 %v1038, %v1038
      %v1063 = vpack.c.bf16 %v1039, %v1039
      %v1064 = vpack.c.bf16 %v870, %v870
      %v1065 = vpack.c.bf16 %v871, %v871
      %v1067 = vsel %vm752, %v1056, 0
      %v1070 = vsel %vm752, %v1064, 0
      %1072 = vmatprep.subr.bf16.mxu0 0
      %1073 = vmatpush1.bf16.xpose.msra.mxu0 %v1070
      %1074 = vmatprep.subr.bf16.mxu0 0
      %1075 = vmatpush1.bf16.xpose.msra.mxu0 0
      %1076 = vmatprep.subr.bf16.mxu0 0
      %1077 = vmatpush1.bf16.xpose.msra.mxu0 0
      %1078 = vmatprep.subr.bf16.mxu0 0
      %1079 = vmatpush1.bf16.xpose.msra.mxu0 0
      %1080 = vmatprep.subr.bf16.mxu0 0
      %1081 = vmatpush1.bf16.xpose.msra.mxu0 0
      %1082 = vmatprep.subr.bf16.mxu0 0
      %1083 = vmatpush1.bf16.xpose.msra.mxu0 0
      %1084 = vmatprep.subr.bf16.mxu0 0
      %1085 = vmatpush1.bf16.xpose.msra.mxu0 0
      %1086 = vmatprep.subr.bf16.mxu0 0
      %1087 = vmatpush1.bf16.xpose.msra.mxu0 0
      %1088 = vmatprep.subr.bf16.mxu0 0
      %1089 = vmatpush1.bf16.xpose.msra.mxu0 0
      %1090 = vmatprep.subr.bf16.mxu0 0
      %1091 = vmatpush1.bf16.xpose.msra.mxu0 0
      %1092 = vmatprep.subr.bf16.mxu0 0
      %1093 = vmatpush1.bf16.xpose.msra.mxu0 0
      %1094 = vmatprep.subr.bf16.mxu0 0
      %1095 = vmatpush1.bf16.xpose.msra.mxu0 0
      %1096 = vmatprep.subr.bf16.mxu0 0
      %1097 = vmatpush1.bf16.xpose.msra.mxu0 0
      %1098 = vmatprep.subr.bf16.mxu0 0
      %1099 = vmatpush1.bf16.xpose.msra.mxu0 0
      %1100 = vmatprep.subr.bf16.mxu0 0
      %1101 = vmatpush1.bf16.xpose.msra.mxu0 0
      %1102 = vmatprep.subr.bf16.mxu0 0
      %1103 = vmatpush1.bf16.xpose.msra.mxu0 0
      %1104 = vmatprep.mubr.bf16.mxu0 0
      %1105 = vmatmul.mubr.bf16.gmra.mrb[0].mxu0 %v1067
      %v1106 = vpop.f32.mrb[0].mxu0
      %v1107 = vadd.f32 0.0, %v1106
      %v1108 = vpop.f32.mrb[0].mxu0
      %v1109 = vpop.f32.mrb[0].mxu0
      %v1110 = vpop.f32.mrb[0].mxu0
      %1111 = vdwg.mxu0
      %v1113 = vsel %vm752, %v1057, 0
      %1115 = vmatprep.subr.bf16.mxu0 0
      %1116 = vmatpush1.bf16.xpose.msra.mxu0 %v1070
      %1117 = vmatprep.subr.bf16.mxu0 0
      %1118 = vmatpush1.bf16.xpose.msra.mxu0 0
      %1119 = vmatprep.subr.bf16.mxu0 0
      %1120 = vmatpush1.bf16.xpose.msra.mxu0 0
      %1121 = vmatprep.subr.bf16.mxu0 0
      %1122 = vmatpush1.bf16.xpose.msra.mxu0 0
      %1123 = vmatprep.subr.bf16.mxu0 0
      %1124 = vmatpush1.bf16.xpose.msra.mxu0 0
      %1125 = vmatprep.subr.bf16.mxu0 0
      %1126 = vmatpush1.bf16.xpose.msra.mxu0 0
      %1127 = vmatprep.subr.bf16.mxu0 0
      %1128 = vmatpush1.bf16.xpose.msra.mxu0 0
      %1129 = vmatprep.subr.bf16.mxu0 0
      %1130 = vmatpush1.bf16.xpose.msra.mxu0 0
      %1131 = vmatprep.subr.bf16.mxu0 0
      %1132 = vmatpush1.bf16.xpose.msra.mxu0 0
      %1133 = vmatprep.subr.bf16.mxu0 0
      %1134 = vmatpush1.bf16.xpose.msra.mxu0 0
      %1135 = vmatprep.subr.bf16.mxu0 0
      %1136 = vmatpush1.bf16.xpose.msra.mxu0 0
      %1137 = vmatprep.subr.bf16.mxu0 0
      %1138 = vmatpush1.bf16.xpose.msra.mxu0 0
      %1139 = vmatprep.subr.bf16.mxu0 0
      %1140 = vmatpush1.bf16.xpose.msra.mxu0 0
      %1141 = vmatprep.subr.bf16.mxu0 0
      %1142 = vmatpush1.bf16.xpose.msra.mxu0 0
      %1143 = vmatprep.subr.bf16.mxu0 0
      %1144 = vmatpush1.bf16.xpose.msra.mxu0 0
      %1145 = vmatprep.subr.bf16.mxu0 0
      %1146 = vmatpush1.bf16.xpose.msra.mxu0 0
      %1147 = vmatprep.mubr.bf16.mxu0 0
      %1148 = vmatmul.mubr.bf16.gmra.mrb[0].mxu0 %v1113
      %v1149 = vpop.f32.mrb[0].mxu0
      %v1150 = vadd.f32 0.0, %v1149
      %v1151 = vpop.f32.mrb[0].mxu0
      %v1152 = vpop.f32.mrb[0].mxu0
      %v1153 = vpop.f32.mrb[0].mxu0
      %1154 = vdwg.mxu0
      %v1156 = vsel %vm752, %v1058, 0
      %1158 = vmatprep.subr.bf16.mxu0 0
      %1159 = vmatpush1.bf16.xpose.msra.mxu0 %v1070
      %1160 = vmatprep.subr.bf16.mxu0 0
      %1161 = vmatpush1.bf16.xpose.msra.mxu0 0
      %1162 = vmatprep.subr.bf16.mxu0 0
      %1163 = vmatpush1.bf16.xpose.msra.mxu0 0
      %1164 = vmatprep.subr.bf16.mxu0 0
      %1165 = vmatpush1.bf16.xpose.msra.mxu0 0
      %1166 = vmatprep.subr.bf16.mxu0 0
      %1167 = vmatpush1.bf16.xpose.msra.mxu0 0
      %1168 = vmatprep.subr.bf16.mxu0 0
      %1169 = vmatpush1.bf16.xpose.msra.mxu0 0
      %1170 = vmatprep.subr.bf16.mxu0 0
      %1171 = vmatpush1.bf16.xpose.msra.mxu0 0
      %1172 = vmatprep.subr.bf16.mxu0 0
      %1173 = vmatpush1.bf16.xpose.msra.mxu0 0
      %1174 = vmatprep.subr.bf16.mxu0 0
      %1175 = vmatpush1.bf16.xpose.msra.mxu0 0
      %1176 = vmatprep.subr.bf16.mxu0 0
      %1177 = vmatpush1.bf16.xpose.msra.mxu0 0
      %1178 = vmatprep.subr.bf16.mxu0 0
      %1179 = vmatpush1.bf16.xpose.msra.mxu0 0
      %1180 = vmatprep.subr.bf16.mxu0 0
      %1181 = vmatpush1.bf16.xpose.msra.mxu0 0
      %1182 = vmatprep.subr.bf16.mxu0 0
      %1183 = vmatpush1.bf16.xpose.msra.mxu0 0
      %1184 = vmatprep.subr.bf16.mxu0 0
      %1185 = vmatpush1.bf16.xpose.msra.mxu0 0
      %1186 = vmatprep.subr.bf16.mxu0 0
      %1187 = vmatpush1.bf16.xpose.msra.mxu0 0
      %1188 = vmatprep.subr.bf16.mxu0 0
      %1189 = vmatpush1.bf16.xpose.msra.mxu0 0
      %1190 = vmatprep.mubr.bf16.mxu0 0
      %1191 = vmatmul.mubr.bf16.gmra.mrb[0].mxu0 %v1156
      %v1192 = vpop.f32.mrb[0].mxu0
      %v1193 = vadd.f32 0.0, %v1192
      %v1194 = vpop.f32.mrb[0].mxu0
      %v1195 = vpop.f32.mrb[0].mxu0
      %v1196 = vpop.f32.mrb[0].mxu0
      %1197 = vdwg.mxu0
      %v1199 = vsel %vm752, %v1059, 0
      %1201 = vmatprep.subr.bf16.mxu0 0
      %1202 = vmatpush1.bf16.xpose.msra.mxu0 %v1070
      %1203 = vmatprep.subr.bf16.mxu0 0
      %1204 = vmatpush1.bf16.xpose.msra.mxu0 0
      %1205 = vmatprep.subr.bf16.mxu0 0
      %1206 = vmatpush1.bf16.xpose.msra.mxu0 0
      %1207 = vmatprep.subr.bf16.mxu0 0
      %1208 = vmatpush1.bf16.xpose.msra.mxu0 0
      %1209 = vmatprep.subr.bf16.mxu0 0
      %1210 = vmatpush1.bf16.xpose.msra.mxu0 0
      %1211 = vmatprep.subr.bf16.mxu0 0
      %1212 = vmatpush1.bf16.xpose.msra.mxu0 0
      %1213 = vmatprep.subr.bf16.mxu0 0
      %1214 = vmatpush1.bf16.xpose.msra.mxu0 0
      %1215 = vmatprep.subr.bf16.mxu0 0
      %1216 = vmatpush1.bf16.xpose.msra.mxu0 0
      %1217 = vmatprep.subr.bf16.mxu0 0
      %1218 = vmatpush1.bf16.xpose.msra.mxu0 0
      %1219 = vmatprep.subr.bf16.mxu0 0
      %1220 = vmatpush1.bf16.xpose.msra.mxu0 0
      %1221 = vmatprep.subr.bf16.mxu0 0
      %1222 = vmatpush1.bf16.xpose.msra.mxu0 0
      %1223 = vmatprep.subr.bf16.mxu0 0
      %1224 = vmatpush1.bf16.xpose.msra.mxu0 0
      %1225 = vmatprep.subr.bf16.mxu0 0
      %1226 = vmatpush1.bf16.xpose.msra.mxu0 0
      %1227 = vmatprep.subr.bf16.mxu0 0
      %1228 = vmatpush1.bf16.xpose.msra.mxu0 0
      %1229 = vmatprep.subr.bf16.mxu0 0
      %1230 = vmatpush1.bf16.xpose.msra.mxu0 0
      %1231 = vmatprep.subr.bf16.mxu0 0
      %1232 = vmatpush1.bf16.xpose.msra.mxu0 0
      %1233 = vmatprep.mubr.bf16.mxu0 0
      %1234 = vmatmul.mubr.bf16.gmra.mrb[0].mxu0 %v1199
      %v1235 = vpop.f32.mrb[0].mxu0
      %v1236 = vadd.f32 0.0, %v1235
      %v1237 = vpop.f32.mrb[0].mxu0
      %v1238 = vpop.f32.mrb[0].mxu0
      %v1239 = vpop.f32.mrb[0].mxu0
      %1240 = vdwg.mxu0
      %v1242 = vsel %vm752, %v1060, 0
      %v1245 = vsel %vm752, %v1065, 0
      %1247 = vmatprep.subr.bf16.mxu0 0
      %1248 = vmatpush1.bf16.xpose.msra.mxu0 %v1245
      %1249 = vmatprep.subr.bf16.mxu0 0
      %1250 = vmatpush1.bf16.xpose.msra.mxu0 0
      %1251 = vmatprep.subr.bf16.mxu0 0
      %1252 = vmatpush1.bf16.xpose.msra.mxu0 0
      %1253 = vmatprep.subr.bf16.mxu0 0
      %1254 = vmatpush1.bf16.xpose.msra.mxu0 0
      %1255 = vmatprep.subr.bf16.mxu0 0
      %1256 = vmatpush1.bf16.xpose.msra.mxu0 0
      %1257 = vmatprep.subr.bf16.mxu0 0
      %1258 = vmatpush1.bf16.xpose.msra.mxu0 0
      %1259 = vmatprep.subr.bf16.mxu0 0
      %1260 = vmatpush1.bf16.xpose.msra.mxu0 0
      %1261 = vmatprep.subr.bf16.mxu0 0
      %1262 = vmatpush1.bf16.xpose.msra.mxu0 0
      %1263 = vmatprep.subr.bf16.mxu0 0
      %1264 = vmatpush1.bf16.xpose.msra.mxu0 0
      %1265 = vmatprep.subr.bf16.mxu0 0
      %1266 = vmatpush1.bf16.xpose.msra.mxu0 0
      %1267 = vmatprep.subr.bf16.mxu0 0
      %1268 = vmatpush1.bf16.xpose.msra.mxu0 0
      %1269 = vmatprep.subr.bf16.mxu0 0
      %1270 = vmatpush1.bf16.xpose.msra.mxu0 0
      %1271 = vmatprep.subr.bf16.mxu0 0
      %1272 = vmatpush1.bf16.xpose.msra.mxu0 0
      %1273 = vmatprep.subr.bf16.mxu0 0
      %1274 = vmatpush1.bf16.xpose.msra.mxu0 0
      %1275 = vmatprep.subr.bf16.mxu0 0
      %1276 = vmatpush1.bf16.xpose.msra.mxu0 0
      %1277 = vmatprep.subr.bf16.mxu0 0
      %1278 = vmatpush1.bf16.xpose.msra.mxu0 0
      %1279 = vmatprep.mubr.bf16.mxu0 0
      %1280 = vmatmul.mubr.bf16.gmra.mrb[0].mxu0 %v1242
      %v1281 = vpop.f32.mrb[0].mxu0
      %v1282 = vadd.f32 0.0, %v1281
      %v1283 = vpop.f32.mrb[0].mxu0
      %v1284 = vpop.f32.mrb[0].mxu0
      %v1285 = vpop.f32.mrb[0].mxu0
      %1286 = vdwg.mxu0
      %v1288 = vsel %vm752, %v1061, 0
      %1290 = vmatprep.subr.bf16.mxu0 0
      %1291 = vmatpush1.bf16.xpose.msra.mxu0 %v1245
      %1292 = vmatprep.subr.bf16.mxu0 0
      %1293 = vmatpush1.bf16.xpose.msra.mxu0 0
      %1294 = vmatprep.subr.bf16.mxu0 0
      %1295 = vmatpush1.bf16.xpose.msra.mxu0 0
      %1296 = vmatprep.subr.bf16.mxu0 0
      %1297 = vmatpush1.bf16.xpose.msra.mxu0 0
      %1298 = vmatprep.subr.bf16.mxu0 0
      %1299 = vmatpush1.bf16.xpose.msra.mxu0 0
      %1300 = vmatprep.subr.bf16.mxu0 0
      %1301 = vmatpush1.bf16.xpose.msra.mxu0 0
      %1302 = vmatprep.subr.bf16.mxu0 0
      %1303 = vmatpush1.bf16.xpose.msra.mxu0 0
      %1304 = vmatprep.subr.bf16.mxu0 0
      %1305 = vmatpush1.bf16.xpose.msra.mxu0 0
      %1306 = vmatprep.subr.bf16.mxu0 0
      %1307 = vmatpush1.bf16.xpose.msra.mxu0 0
      %1308 = vmatprep.subr.bf16.mxu0 0
      %1309 = vmatpush1.bf16.xpose.msra.mxu0 0
      %1310 = vmatprep.subr.bf16.mxu0 0
      %1311 = vmatpush1.bf16.xpose.msra.mxu0 0
      %1312 = vmatprep.subr.bf16.mxu0 0
      %1313 = vmatpush1.bf16.xpose.msra.mxu0 0
      %1314 = vmatprep.subr.bf16.mxu0 0
      %1315 = vmatpush1.bf16.xpose.msra.mxu0 0
      %1316 = vmatprep.subr.bf16.mxu0 0
      %1317 = vmatpush1.bf16.xpose.msra.mxu0 0
      %1318 = vmatprep.subr.bf16.mxu0 0
      %1319 = vmatpush1.bf16.xpose.msra.mxu0 0
      %1320 = vmatprep.subr.bf16.mxu0 0
      %1321 = vmatpush1.bf16.xpose.msra.mxu0 0
      %1322 = vmatprep.mubr.bf16.mxu0 0
      %1323 = vmatmul.mubr.bf16.gmra.mrb[0].mxu0 %v1288
      %v1324 = vpop.f32.mrb[0].mxu0
      %v1325 = vadd.f32 0.0, %v1324
      %v1326 = vpop.f32.mrb[0].mxu0
      %v1327 = vpop.f32.mrb[0].mxu0
      %v1328 = vpop.f32.mrb[0].mxu0
      %1329 = vdwg.mxu0
      %v1331 = vsel %vm752, %v1062, 0
      %1333 = vmatprep.subr.bf16.mxu0 0
      %1334 = vmatpush1.bf16.xpose.msra.mxu0 %v1245
      %1335 = vmatprep.subr.bf16.mxu0 0
      %1336 = vmatpush1.bf16.xpose.msra.mxu0 0
      %1337 = vmatprep.subr.bf16.mxu0 0
      %1338 = vmatpush1.bf16.xpose.msra.mxu0 0
      %1339 = vmatprep.subr.bf16.mxu0 0
      %1340 = vmatpush1.bf16.xpose.msra.mxu0 0
      %1341 = vmatprep.subr.bf16.mxu0 0
      %1342 = vmatpush1.bf16.xpose.msra.mxu0 0
      %1343 = vmatprep.subr.bf16.mxu0 0
      %1344 = vmatpush1.bf16.xpose.msra.mxu0 0
      %1345 = vmatprep.subr.bf16.mxu0 0
      %1346 = vmatpush1.bf16.xpose.msra.mxu0 0
      %1347 = vmatprep.subr.bf16.mxu0 0
      %1348 = vmatpush1.bf16.xpose.msra.mxu0 0
      %1349 = vmatprep.subr.bf16.mxu0 0
      %1350 = vmatpush1.bf16.xpose.msra.mxu0 0
      %1351 = vmatprep.subr.bf16.mxu0 0
      %1352 = vmatpush1.bf16.xpose.msra.mxu0 0
      %1353 = vmatprep.subr.bf16.mxu0 0
      %1354 = vmatpush1.bf16.xpose.msra.mxu0 0
      %1355 = vmatprep.subr.bf16.mxu0 0
      %1356 = vmatpush1.bf16.xpose.msra.mxu0 0
      %1357 = vmatprep.subr.bf16.mxu0 0
      %1358 = vmatpush1.bf16.xpose.msra.mxu0 0
      %1359 = vmatprep.subr.bf16.mxu0 0
      %1360 = vmatpush1.bf16.xpose.msra.mxu0 0
      %1361 = vmatprep.subr.bf16.mxu0 0
      %1362 = vmatpush1.bf16.xpose.msra.mxu0 0
      %1363 = vmatprep.subr.bf16.mxu0 0
      %1364 = vmatpush1.bf16.xpose.msra.mxu0 0
      %1365 = vmatprep.mubr.bf16.mxu0 0
      %1366 = vmatmul.mubr.bf16.gmra.mrb[0].mxu0 %v1331
      %v1367 = vpop.f32.mrb[0].mxu0
      %v1368 = vadd.f32 0.0, %v1367
      %v1369 = vpop.f32.mrb[0].mxu0
      %v1370 = vpop.f32.mrb[0].mxu0
      %v1371 = vpop.f32.mrb[0].mxu0
      %1372 = vdwg.mxu0
      %v1374 = vsel %vm752, %v1063, 0
      %1376 = vmatprep.subr.bf16.mxu0 0
      %1377 = vmatpush1.bf16.xpose.msra.mxu0 %v1245
      %1378 = vmatprep.subr.bf16.mxu0 0
      %1379 = vmatpush1.bf16.xpose.msra.mxu0 0
      %1380 = vmatprep.subr.bf16.mxu0 0
      %1381 = vmatpush1.bf16.xpose.msra.mxu0 0
      %1382 = vmatprep.subr.bf16.mxu0 0
      %1383 = vmatpush1.bf16.xpose.msra.mxu0 0
      %1384 = vmatprep.subr.bf16.mxu0 0
      %1385 = vmatpush1.bf16.xpose.msra.mxu0 0
      %1386 = vmatprep.subr.bf16.mxu0 0
      %1387 = vmatpush1.bf16.xpose.msra.mxu0 0
      %1388 = vmatprep.subr.bf16.mxu0 0
      %1389 = vmatpush1.bf16.xpose.msra.mxu0 0
      %1390 = vmatprep.subr.bf16.mxu0 0
      %1391 = vmatpush1.bf16.xpose.msra.mxu0 0
      %1392 = vmatprep.subr.bf16.mxu0 0
      %1393 = vmatpush1.bf16.xpose.msra.mxu0 0
      %1394 = vmatprep.subr.bf16.mxu0 0
      %1395 = vmatpush1.bf16.xpose.msra.mxu0 0
      %1396 = vmatprep.subr.bf16.mxu0 0
      %1397 = vmatpush1.bf16.xpose.msra.mxu0 0
      %1398 = vmatprep.subr.bf16.mxu0 0
      %1399 = vmatpush1.bf16.xpose.msra.mxu0 0
      %1400 = vmatprep.subr.bf16.mxu0 0
      %1401 = vmatpush1.bf16.xpose.msra.mxu0 0
      %1402 = vmatprep.subr.bf16.mxu0 0
      %1403 = vmatpush1.bf16.xpose.msra.mxu0 0
      %1404 = vmatprep.subr.bf16.mxu0 0
      %1405 = vmatpush1.bf16.xpose.msra.mxu0 0
      %1406 = vmatprep.subr.bf16.mxu0 0
      %1407 = vmatpush1.bf16.xpose.msra.mxu0 0
      %1408 = vmatprep.mubr.bf16.mxu0 0
      %1409 = vmatmul.mubr.bf16.gmra.mrb[0].mxu0 %v1374
      %v1410 = vpop.f32.mrb[0].mxu0
      %v1411 = vadd.f32 0.0, %v1410
      %v1412 = vpop.f32.mrb[0].mxu0
      %v1413 = vpop.f32.mrb[0].mxu0
      %v1414 = vpop.f32.mrb[0].mxu0
      %1415 = vdwg.mxu0
      %1416 = vxpose.xlu0.b32.start [1/16] %v1107, 128
      %1417 = vxpose.xlu0.b32.cont [2/16] 0.0, 128
      %1418 = vxpose.xlu0.b32.cont [3/16] 0.0, 128
      %1419 = vxpose.xlu0.b32.cont [4/16] 0.0, 128
      %1420 = vxpose.xlu0.b32.cont [5/16] 0.0, 128
      %1421 = vxpose.xlu0.b32.cont [6/16] 0.0, 128
      %1422 = vxpose.xlu0.b32.cont [7/16] 0.0, 128
      %1423 = vxpose.xlu0.b32.cont [8/16] 0.0, 128
      %1424 = vxpose.xlu0.b32.cont [9/16] 0.0, 128
      %1425 = vxpose.xlu0.b32.cont [10/16] 0.0, 128
      %1426 = vxpose.xlu0.b32.cont [11/16] 0.0, 128
      %1427 = vxpose.xlu0.b32.cont [12/16] 0.0, 128
      %1428 = vxpose.xlu0.b32.cont [13/16] 0.0, 128
      %1429 = vxpose.xlu0.b32.cont [14/16] 0.0, 128
      %1430 = vxpose.xlu0.b32.cont [15/16] 0.0, 128
      %1431 = vxpose.xlu0.b32.end [16/16] 0.0, 128
      %v1432 = vpop.trf.xlu0
      %v1433 = vpop.trf.xlu0
      %v1434 = vpop.trf.xlu0
      %v1435 = vpop.trf.xlu0
      %v1436 = vpop.trf.xlu0
      %v1437 = vpop.trf.xlu0
      %v1438 = vpop.trf.xlu0
      %v1439 = vpop.trf.xlu0
      %v1440 = vpop.trf.xlu0
      %v1441 = vpop.trf.xlu0
      %v1442 = vpop.trf.xlu0
      %v1443 = vpop.trf.xlu0
      %v1444 = vpop.trf.xlu0
      %v1445 = vpop.trf.xlu0
      %v1446 = vpop.trf.xlu0
      %v1447 = vpop.trf.xlu0
      %1448 = vxpose.xlu0.b32.start [1/16] %v1150, 128
      %1449 = vxpose.xlu0.b32.cont [2/16] 0.0, 128
      %1450 = vxpose.xlu0.b32.cont [3/16] 0.0, 128
      %1451 = vxpose.xlu0.b32.cont [4/16] 0.0, 128
      %1452 = vxpose.xlu0.b32.cont [5/16] 0.0, 128
      %1453 = vxpose.xlu0.b32.cont [6/16] 0.0, 128
      %1454 = vxpose.xlu0.b32.cont [7/16] 0.0, 128
      %1455 = vxpose.xlu0.b32.cont [8/16] 0.0, 128
      %1456 = vxpose.xlu0.b32.cont [9/16] 0.0, 128
      %1457 = vxpose.xlu0.b32.cont [10/16] 0.0, 128
      %1458 = vxpose.xlu0.b32.cont [11/16] 0.0, 128
      %1459 = vxpose.xlu0.b32.cont [12/16] 0.0, 128
      %1460 = vxpose.xlu0.b32.cont [13/16] 0.0, 128
      %1461 = vxpose.xlu0.b32.cont [14/16] 0.0, 128
      %1462 = vxpose.xlu0.b32.cont [15/16] 0.0, 128
      %1463 = vxpose.xlu0.b32.end [16/16] 0.0, 128
      %v1464 = vpop.trf.xlu0
      %v1465 = vpop.trf.xlu0
      %v1466 = vpop.trf.xlu0
      %v1467 = vpop.trf.xlu0
      %v1468 = vpop.trf.xlu0
      %v1469 = vpop.trf.xlu0
      %v1470 = vpop.trf.xlu0
      %v1471 = vpop.trf.xlu0
      %v1472 = vpop.trf.xlu0
      %v1473 = vpop.trf.xlu0
      %v1474 = vpop.trf.xlu0
      %v1475 = vpop.trf.xlu0
      %v1476 = vpop.trf.xlu0
      %v1477 = vpop.trf.xlu0
      %v1478 = vpop.trf.xlu0
      %v1479 = vpop.trf.xlu0
      %1480 = vxpose.xlu0.b32.start [1/16] %v1193, 128
      %1481 = vxpose.xlu0.b32.cont [2/16] 0.0, 128
      %1482 = vxpose.xlu0.b32.cont [3/16] 0.0, 128
      %1483 = vxpose.xlu0.b32.cont [4/16] 0.0, 128
      %1484 = vxpose.xlu0.b32.cont [5/16] 0.0, 128
      %1485 = vxpose.xlu0.b32.cont [6/16] 0.0, 128
      %1486 = vxpose.xlu0.b32.cont [7/16] 0.0, 128
      %1487 = vxpose.xlu0.b32.cont [8/16] 0.0, 128
      %1488 = vxpose.xlu0.b32.cont [9/16] 0.0, 128
      %1489 = vxpose.xlu0.b32.cont [10/16] 0.0, 128
      %1490 = vxpose.xlu0.b32.cont [11/16] 0.0, 128
      %1491 = vxpose.xlu0.b32.cont [12/16] 0.0, 128
      %1492 = vxpose.xlu0.b32.cont [13/16] 0.0, 128
      %1493 = vxpose.xlu0.b32.cont [14/16] 0.0, 128
      %1494 = vxpose.xlu0.b32.cont [15/16] 0.0, 128
      %1495 = vxpose.xlu0.b32.end [16/16] 0.0, 128
      %v1496 = vpop.trf.xlu0
      %v1497 = vpop.trf.xlu0
      %v1498 = vpop.trf.xlu0
      %v1499 = vpop.trf.xlu0
      %v1500 = vpop.trf.xlu0
      %v1501 = vpop.trf.xlu0
      %v1502 = vpop.trf.xlu0
      %v1503 = vpop.trf.xlu0
      %v1504 = vpop.trf.xlu0
      %v1505 = vpop.trf.xlu0
      %v1506 = vpop.trf.xlu0
      %v1507 = vpop.trf.xlu0
      %v1508 = vpop.trf.xlu0
      %v1509 = vpop.trf.xlu0
      %v1510 = vpop.trf.xlu0
      %v1511 = vpop.trf.xlu0
      %1512 = vxpose.xlu0.b32.start [1/16] %v1236, 128
      %1513 = vxpose.xlu0.b32.cont [2/16] 0.0, 128
      %1514 = vxpose.xlu0.b32.cont [3/16] 0.0, 128
      %1515 = vxpose.xlu0.b32.cont [4/16] 0.0, 128
      %1516 = vxpose.xlu0.b32.cont [5/16] 0.0, 128
      %1517 = vxpose.xlu0.b32.cont [6/16] 0.0, 128
      %1518 = vxpose.xlu0.b32.cont [7/16] 0.0, 128
      %1519 = vxpose.xlu0.b32.cont [8/16] 0.0, 128
      %1520 = vxpose.xlu0.b32.cont [9/16] 0.0, 128
      %1521 = vxpose.xlu0.b32.cont [10/16] 0.0, 128
      %1522 = vxpose.xlu0.b32.cont [11/16] 0.0, 128
      %1523 = vxpose.xlu0.b32.cont [12/16] 0.0, 128
      %1524 = vxpose.xlu0.b32.cont [13/16] 0.0, 128
      %1525 = vxpose.xlu0.b32.cont [14/16] 0.0, 128
      %1526 = vxpose.xlu0.b32.cont [15/16] 0.0, 128
      %1527 = vxpose.xlu0.b32.end [16/16] 0.0, 128
      %v1528 = vpop.trf.xlu0
      %v1529 = vpop.trf.xlu0
      %v1530 = vpop.trf.xlu0
      %v1531 = vpop.trf.xlu0
      %v1532 = vpop.trf.xlu0
      %v1533 = vpop.trf.xlu0
      %v1534 = vpop.trf.xlu0
      %v1535 = vpop.trf.xlu0
      %v1536 = vpop.trf.xlu0
      %v1537 = vpop.trf.xlu0
      %v1538 = vpop.trf.xlu0
      %v1539 = vpop.trf.xlu0
      %v1540 = vpop.trf.xlu0
      %v1541 = vpop.trf.xlu0
      %v1542 = vpop.trf.xlu0
      %v1543 = vpop.trf.xlu0
      %1544 = vxpose.xlu0.b32.start [1/16] %v1282, 128
      %1545 = vxpose.xlu0.b32.cont [2/16] 0.0, 128
      %1546 = vxpose.xlu0.b32.cont [3/16] 0.0, 128
      %1547 = vxpose.xlu0.b32.cont [4/16] 0.0, 128
      %1548 = vxpose.xlu0.b32.cont [5/16] 0.0, 128
      %1549 = vxpose.xlu0.b32.cont [6/16] 0.0, 128
      %1550 = vxpose.xlu0.b32.cont [7/16] 0.0, 128
      %1551 = vxpose.xlu0.b32.cont [8/16] 0.0, 128
      %1552 = vxpose.xlu0.b32.cont [9/16] 0.0, 128
      %1553 = vxpose.xlu0.b32.cont [10/16] 0.0, 128
      %1554 = vxpose.xlu0.b32.cont [11/16] 0.0, 128
      %1555 = vxpose.xlu0.b32.cont [12/16] 0.0, 128
      %1556 = vxpose.xlu0.b32.cont [13/16] 0.0, 128
      %1557 = vxpose.xlu0.b32.cont [14/16] 0.0, 128
      %1558 = vxpose.xlu0.b32.cont [15/16] 0.0, 128
      %1559 = vxpose.xlu0.b32.end [16/16] 0.0, 128
      %v1560 = vpop.trf.xlu0
      %v1561 = vpop.trf.xlu0
      %v1562 = vpop.trf.xlu0
      %v1563 = vpop.trf.xlu0
      %v1564 = vpop.trf.xlu0
      %v1565 = vpop.trf.xlu0
      %v1566 = vpop.trf.xlu0
      %v1567 = vpop.trf.xlu0
      %v1568 = vpop.trf.xlu0
      %v1569 = vpop.trf.xlu0
      %v1570 = vpop.trf.xlu0
      %v1571 = vpop.trf.xlu0
      %v1572 = vpop.trf.xlu0
      %v1573 = vpop.trf.xlu0
      %v1574 = vpop.trf.xlu0
      %v1575 = vpop.trf.xlu0
      %1576 = vxpose.xlu0.b32.start [1/16] %v1325, 128
      %1577 = vxpose.xlu0.b32.cont [2/16] 0.0, 128
      %1578 = vxpose.xlu0.b32.cont [3/16] 0.0, 128
      %1579 = vxpose.xlu0.b32.cont [4/16] 0.0, 128
      %1580 = vxpose.xlu0.b32.cont [5/16] 0.0, 128
      %1581 = vxpose.xlu0.b32.cont [6/16] 0.0, 128
      %1582 = vxpose.xlu0.b32.cont [7/16] 0.0, 128
      %1583 = vxpose.xlu0.b32.cont [8/16] 0.0, 128
      %1584 = vxpose.xlu0.b32.cont [9/16] 0.0, 128
      %1585 = vxpose.xlu0.b32.cont [10/16] 0.0, 128
      %1586 = vxpose.xlu0.b32.cont [11/16] 0.0, 128
      %1587 = vxpose.xlu0.b32.cont [12/16] 0.0, 128
      %1588 = vxpose.xlu0.b32.cont [13/16] 0.0, 128
      %1589 = vxpose.xlu0.b32.cont [14/16] 0.0, 128
      %1590 = vxpose.xlu0.b32.cont [15/16] 0.0, 128
      %1591 = vxpose.xlu0.b32.end [16/16] 0.0, 128
      %v1592 = vpop.trf.xlu0
      %v1593 = vpop.trf.xlu0
      %v1594 = vpop.trf.xlu0
      %v1595 = vpop.trf.xlu0
      %v1596 = vpop.trf.xlu0
      %v1597 = vpop.trf.xlu0
      %v1598 = vpop.trf.xlu0
      %v1599 = vpop.trf.xlu0
      %v1600 = vpop.trf.xlu0
      %v1601 = vpop.trf.xlu0
      %v1602 = vpop.trf.xlu0
      %v1603 = vpop.trf.xlu0
      %v1604 = vpop.trf.xlu0
      %v1605 = vpop.trf.xlu0
      %v1606 = vpop.trf.xlu0
      %v1607 = vpop.trf.xlu0
      %1608 = vxpose.xlu0.b32.start [1/16] %v1368, 128
      %1609 = vxpose.xlu0.b32.cont [2/16] 0.0, 128
      %1610 = vxpose.xlu0.b32.cont [3/16] 0.0, 128
      %1611 = vxpose.xlu0.b32.cont [4/16] 0.0, 128
      %1612 = vxpose.xlu0.b32.cont [5/16] 0.0, 128
      %1613 = vxpose.xlu0.b32.cont [6/16] 0.0, 128
      %1614 = vxpose.xlu0.b32.cont [7/16] 0.0, 128
      %1615 = vxpose.xlu0.b32.cont [8/16] 0.0, 128
      %1616 = vxpose.xlu0.b32.cont [9/16] 0.0, 128
      %1617 = vxpose.xlu0.b32.cont [10/16] 0.0, 128
      %1618 = vxpose.xlu0.b32.cont [11/16] 0.0, 128
      %1619 = vxpose.xlu0.b32.cont [12/16] 0.0, 128
      %1620 = vxpose.xlu0.b32.cont [13/16] 0.0, 128
      %1621 = vxpose.xlu0.b32.cont [14/16] 0.0, 128
      %1622 = vxpose.xlu0.b32.cont [15/16] 0.0, 128
      %1623 = vxpose.xlu0.b32.end [16/16] 0.0, 128
      %v1624 = vpop.trf.xlu0
      %v1625 = vpop.trf.xlu0
      %v1626 = vpop.trf.xlu0
      %v1627 = vpop.trf.xlu0
      %v1628 = vpop.trf.xlu0
      %v1629 = vpop.trf.xlu0
      %v1630 = vpop.trf.xlu0
      %v1631 = vpop.trf.xlu0
      %v1632 = vpop.trf.xlu0
      %v1633 = vpop.trf.xlu0
      %v1634 = vpop.trf.xlu0
      %v1635 = vpop.trf.xlu0
      %v1636 = vpop.trf.xlu0
      %v1637 = vpop.trf.xlu0
      %v1638 = vpop.trf.xlu0
      %v1639 = vpop.trf.xlu0
      %1640 = vxpose.xlu0.b32.start [1/16] %v1411, 128
      %1641 = vxpose.xlu0.b32.cont [2/16] 0.0, 128
      %1642 = vxpose.xlu0.b32.cont [3/16] 0.0, 128
      %1643 = vxpose.xlu0.b32.cont [4/16] 0.0, 128
      %1644 = vxpose.xlu0.b32.cont [5/16] 0.0, 128
      %1645 = vxpose.xlu0.b32.cont [6/16] 0.0, 128
      %1646 = vxpose.xlu0.b32.cont [7/16] 0.0, 128
      %1647 = vxpose.xlu0.b32.cont [8/16] 0.0, 128
      %1648 = vxpose.xlu0.b32.cont [9/16] 0.0, 128
      %1649 = vxpose.xlu0.b32.cont [10/16] 0.0, 128
      %1650 = vxpose.xlu0.b32.cont [11/16] 0.0, 128
      %1651 = vxpose.xlu0.b32.cont [12/16] 0.0, 128
      %1652 = vxpose.xlu0.b32.cont [13/16] 0.0, 128
      %1653 = vxpose.xlu0.b32.cont [14/16] 0.0, 128
      %1654 = vxpose.xlu0.b32.cont [15/16] 0.0, 128
      %1655 = vxpose.xlu0.b32.end [16/16] 0.0, 128
      %v1656 = vpop.trf.xlu0
      %v1657 = vpop.trf.xlu0
      %v1658 = vpop.trf.xlu0
      %v1659 = vpop.trf.xlu0
      %v1660 = vpop.trf.xlu0
      %v1661 = vpop.trf.xlu0
      %v1662 = vpop.trf.xlu0
      %v1663 = vpop.trf.xlu0
      %v1664 = vpop.trf.xlu0
      %v1665 = vpop.trf.xlu0
      %v1666 = vpop.trf.xlu0
      %v1667 = vpop.trf.xlu0
      %v1668 = vpop.trf.xlu0
      %v1669 = vpop.trf.xlu0
      %v1670 = vpop.trf.xlu0
      %v1671 = vpop.trf.xlu0
      %vm1672 = vcmask 64512
      %v1673 = vsel %vm1672, %v1107, -inf
      %1674 = vmax.xlane.f32.xlu0 %v1673
      %v1675 = vpop.xlane.xlu0 %1674
      %v1676 = vsel %vm1672, %v1150, -inf
      %1677 = vmax.xlane.f32.xlu0 %v1676
      %v1678 = vpop.xlane.xlu0 %1677
      %v1679 = vsel %vm1672, %v1193, -inf
      %1680 = vmax.xlane.f32.xlu0 %v1679
      %v1681 = vpop.xlane.xlu0 %1680
      %v1682 = vsel %vm1672, %v1236, -inf
      %1683 = vmax.xlane.f32.xlu0 %v1682
      %v1684 = vpop.xlane.xlu0 %1683
      %v1685 = vsel %vm1672, %v1282, -inf
      %1686 = vmax.xlane.f32.xlu0 %v1685
      %v1687 = vpop.xlane.xlu0 %1686
      %v1688 = vsel %vm1672, %v1325, -inf
      %1689 = vmax.xlane.f32.xlu0 %v1688
      %v1690 = vpop.xlane.xlu0 %1689
      %v1691 = vsel %vm1672, %v1368, -inf
      %1692 = vmax.xlane.f32.xlu0 %v1691
      %v1693 = vpop.xlane.xlu0 %1692
      %v1694 = vsel %vm1672, %v1411, -inf
      %1695 = vmax.xlane.f32.xlu0 %v1694
      %v1696 = vpop.xlane.xlu0 %1695
      %v1697 = vsub.f32 %v1107, %v1675
      %v1698 = vsub.f32 %v1150, %v1678
      %v1699 = vsub.f32 %v1193, %v1681
      %v1700 = vsub.f32 %v1236, %v1684
      %v1701 = vsub.f32 %v1282, %v1687
      %v1702 = vsub.f32 %v1325, %v1690
      %v1703 = vsub.f32 %v1368, %v1693
      %v1704 = vsub.f32 %v1411, %v1696
      %v1705 = vmul.f32 %v1697, 1.442695
      %v1706 = vpow.pop %v1705
      %v1707 = vmul.f32 %v1698, 1.442695
      %v1708 = vpow.pop %v1707
      %v1709 = vmul.f32 %v1699, 1.442695
      %v1710 = vpow.pop %v1709
      %v1711 = vmul.f32 %v1700, 1.442695
      %v1712 = vpow.pop %v1711
      %v1713 = vmul.f32 %v1701, 1.442695
      %v1714 = vpow.pop %v1713
      %v1715 = vmul.f32 %v1702, 1.442695
      %v1716 = vpow.pop %v1715
      %v1717 = vmul.f32 %v1703, 1.442695
      %v1718 = vpow.pop %v1717
      %v1719 = vmul.f32 %v1704, 1.442695
      %v1720 = vpow.pop %v1719
      %v1721 = vsel %vm1672, %v1706, 0.0
      %1722 = vadd.xlane.f32.xlu0 %v1721
      %v1723 = vpop.xlane.xlu0 %1722
      %v1724 = vsel %vm1672, %v1708, 0.0
      %1725 = vadd.xlane.f32.xlu0 %v1724
      %v1726 = vpop.xlane.xlu0 %1725
      %v1727 = vsel %vm1672, %v1710, 0.0
      %1728 = vadd.xlane.f32.xlu0 %v1727
      %v1729 = vpop.xlane.xlu0 %1728
      %v1730 = vsel %vm1672, %v1712, 0.0
      %1731 = vadd.xlane.f32.xlu0 %v1730
      %v1732 = vpop.xlane.xlu0 %1731
      %v1733 = vsel %vm1672, %v1714, 0.0
      %1734 = vadd.xlane.f32.xlu0 %v1733
      %v1735 = vpop.xlane.xlu0 %1734
      %v1736 = vsel %vm1672, %v1716, 0.0
      %1737 = vadd.xlane.f32.xlu0 %v1736
      %v1738 = vpop.xlane.xlu0 %1737
      %v1739 = vsel %vm1672, %v1718, 0.0
      %1740 = vadd.xlane.f32.xlu0 %v1739
      %v1741 = vpop.xlane.xlu0 %1740
      %v1742 = vsel %vm1672, %v1720, 0.0
      %1743 = vadd.xlane.f32.xlu0 %v1742
      %v1744 = vpop.xlane.xlu0 %1743
      %v1745 = vrcp.pop %v1723
      %v1746 = vrcp.pop %v1726
      %v1747 = vrcp.pop %v1729
      %v1748 = vrcp.pop %v1732
      %v1749 = vrcp.pop %v1735
      %v1750 = vrcp.pop %v1738
      %v1751 = vrcp.pop %v1741
      %v1752 = vrcp.pop %v1744
      %v1753 = vmul.f32 %v1706, %v1745
      %v1754 = vmul.f32 %v1708, %v1746
      %v1755 = vmul.f32 %v1710, %v1747
      %v1756 = vmul.f32 %v1712, %v1748
      %v1757 = vmul.f32 %v1714, %v1749
      %v1758 = vmul.f32 %v1716, %v1750
      %v1759 = vmul.f32 %v1718, %v1751
      %v1760 = vmul.f32 %v1720, %v1752
      %v1761 = vsel %vm1672, %v1432, -inf
      %1762 = vmax.xlane.f32.xlu0 %v1761
      %v1763 = vpop.xlane.xlu0 %1762
      %v1764 = vsel %vm1672, %v1464, -inf
      %1765 = vmax.xlane.f32.xlu0 %v1764
      %v1766 = vpop.xlane.xlu0 %1765
      %v1767 = vsel %vm1672, %v1496, -inf
      %1768 = vmax.xlane.f32.xlu0 %v1767
      %v1769 = vpop.xlane.xlu0 %1768
      %v1770 = vsel %vm1672, %v1528, -inf
      %1771 = vmax.xlane.f32.xlu0 %v1770
      %v1772 = vpop.xlane.xlu0 %1771
      %v1773 = vsel %vm1672, %v1560, -inf
      %1774 = vmax.xlane.f32.xlu0 %v1773
      %v1775 = vpop.xlane.xlu0 %1774
      %v1776 = vsel %vm1672, %v1592, -inf
      %1777 = vmax.xlane.f32.xlu0 %v1776
      %v1778 = vpop.xlane.xlu0 %1777
      %v1779 = vsel %vm1672, %v1624, -inf
      %1780 = vmax.xlane.f32.xlu0 %v1779
      %v1781 = vpop.xlane.xlu0 %1780
      %v1782 = vsel %vm1672, %v1656, -inf
      %1783 = vmax.xlane.f32.xlu0 %v1782
      %v1784 = vpop.xlane.xlu0 %1783
      %v1785 = vsub.f32 %v1432, %v1763
      %v1786 = vsub.f32 %v1464, %v1766
      %v1787 = vsub.f32 %v1496, %v1769
      %v1788 = vsub.f32 %v1528, %v1772
      %v1789 = vsub.f32 %v1560, %v1775
      %v1790 = vsub.f32 %v1592, %v1778
      %v1791 = vsub.f32 %v1624, %v1781
      %v1792 = vsub.f32 %v1656, %v1784
      %v1793 = vmul.f32 %v1785, 1.442695
      %v1794 = vpow.pop %v1793
      %v1795 = vmul.f32 %v1786, 1.442695
      %v1796 = vpow.pop %v1795
      %v1797 = vmul.f32 %v1787, 1.442695
      %v1798 = vpow.pop %v1797
      %v1799 = vmul.f32 %v1788, 1.442695
      %v1800 = vpow.pop %v1799
      %v1801 = vmul.f32 %v1789, 1.442695
      %v1802 = vpow.pop %v1801
      %v1803 = vmul.f32 %v1790, 1.442695
      %v1804 = vpow.pop %v1803
      %v1805 = vmul.f32 %v1791, 1.442695
      %v1806 = vpow.pop %v1805
      %v1807 = vmul.f32 %v1792, 1.442695
      %v1808 = vpow.pop %v1807
      %v1809 = vsel %vm1672, %v1794, 0.0
      %1810 = vadd.xlane.f32.xlu0 %v1809
      %v1811 = vpop.xlane.xlu0 %1810
      %v1812 = vsel %vm1672, %v1796, 0.0
      %1813 = vadd.xlane.f32.xlu0 %v1812
      %v1814 = vpop.xlane.xlu0 %1813
      %v1815 = vsel %vm1672, %v1798, 0.0
      %1816 = vadd.xlane.f32.xlu0 %v1815
      %v1817 = vpop.xlane.xlu0 %1816
      %v1818 = vsel %vm1672, %v1800, 0.0
      %1819 = vadd.xlane.f32.xlu0 %v1818
      %v1820 = vpop.xlane.xlu0 %1819
      %v1821 = vsel %vm1672, %v1802, 0.0
      %1822 = vadd.xlane.f32.xlu0 %v1821
      %v1823 = vpop.xlane.xlu0 %1822
      %v1824 = vsel %vm1672, %v1804, 0.0
      %1825 = vadd.xlane.f32.xlu0 %v1824
      %v1826 = vpop.xlane.xlu0 %1825
      %v1827 = vsel %vm1672, %v1806, 0.0
      %1828 = vadd.xlane.f32.xlu0 %v1827
      %v1829 = vpop.xlane.xlu0 %1828
      %v1830 = vsel %vm1672, %v1808, 0.0
      %1831 = vadd.xlane.f32.xlu0 %v1830
      %v1832 = vpop.xlane.xlu0 %1831
      %v1833 = vrcp.pop %v1811
      %v1834 = vrcp.pop %v1814
      %v1835 = vrcp.pop %v1817
      %v1836 = vrcp.pop %v1820
      %v1837 = vrcp.pop %v1823
      %v1838 = vrcp.pop %v1826
      %v1839 = vrcp.pop %v1829
      %v1840 = vrcp.pop %v1832
      %v1841 = vmul.f32 %v1794, %v1833
      %v1842 = vmul.f32 %v1796, %v1834
      %v1843 = vmul.f32 %v1798, %v1835
      %v1844 = vmul.f32 %v1800, %v1836
      %v1845 = vmul.f32 %v1802, %v1837
      %v1846 = vmul.f32 %v1804, %v1838
      %v1847 = vmul.f32 %v1806, %v1839
      %v1848 = vmul.f32 %v1808, %v1840
      %v1849 = vpack.c.bf16 %v1841, %v1841
      %v1850 = vpack.c.bf16 %v1842, %v1842
      %v1851 = vpack.c.bf16 %v1843, %v1843
      %v1852 = vpack.c.bf16 %v1844, %v1844
      %v1853 = vpack.c.bf16 %v1845, %v1845
      %v1854 = vpack.c.bf16 %v1846, %v1846
      %v1855 = vpack.c.bf16 %v1847, %v1847
      %v1856 = vpack.c.bf16 %v1848, %v1848
      %v1857 = vpack.c.bf16 %v1040, %v1040
      %v1858 = vpack.c.bf16 %v1041, %v1041
      %v1859 = vpack.c.bf16 %v1042, %v1042
      %v1860 = vpack.c.bf16 %v1043, %v1043
      %v1861 = vpack.c.bf16 %v1044, %v1044
      %v1862 = vpack.c.bf16 %v1045, %v1045
      %v1863 = vpack.c.bf16 %v1046, %v1046
      %v1864 = vpack.c.bf16 %v1047, %v1047
      %v1866 = vsel %vm1672, %v1849, 0
      %vm1868 = vcmask 1043456
      %v1870 = vsel %vm1868, %v1857, 0
      %1872 = vmatprep.subr.bf16.mxu0 0
      %1873 = vmatpush1.bf16.msra.mxu0 %v1870
      %1874 = vmatprep.subr.bf16.mxu0 0
      %1875 = vmatpush1.bf16.msra.mxu0 0
      %1876 = vmatprep.subr.bf16.mxu0 0
      %1877 = vmatpush1.bf16.msra.mxu0 0
      %1878 = vmatprep.subr.bf16.mxu0 0
      %1879 = vmatpush1.bf16.msra.mxu0 0
      %1880 = vmatprep.subr.bf16.mxu0 0
      %1881 = vmatpush1.bf16.msra.mxu0 0
      %1882 = vmatprep.subr.bf16.mxu0 0
      %1883 = vmatpush1.bf16.msra.mxu0 0
      %1884 = vmatprep.subr.bf16.mxu0 0
      %1885 = vmatpush1.bf16.msra.mxu0 0
      %1886 = vmatprep.subr.bf16.mxu0 0
      %1887 = vmatpush1.bf16.msra.mxu0 0
      %1888 = vmatprep.subr.bf16.mxu0 0
      %1889 = vmatpush1.bf16.msra.mxu0 0
      %1890 = vmatprep.subr.bf16.mxu0 0
      %1891 = vmatpush1.bf16.msra.mxu0 0
      %1892 = vmatprep.subr.bf16.mxu0 0
      %1893 = vmatpush1.bf16.msra.mxu0 0
      %1894 = vmatprep.subr.bf16.mxu0 0
      %1895 = vmatpush1.bf16.msra.mxu0 0
      %1896 = vmatprep.subr.bf16.mxu0 0
      %1897 = vmatpush1.bf16.msra.mxu0 0
      %1898 = vmatprep.subr.bf16.mxu0 0
      %1899 = vmatpush1.bf16.msra.mxu0 0
      %1900 = vmatprep.subr.bf16.mxu0 0
      %1901 = vmatpush1.bf16.msra.mxu0 0
      %1902 = vmatprep.subr.bf16.mxu0 0
      %1903 = vmatpush1.bf16.msra.mxu0 0
      %1904 = vmatprep.mubr.bf16.mxu0 0
      %1905 = vmatmul.mubr.bf16.gmra.mrb[0].mxu0 %v1866
      %v1906 = vpop.f32.mrb[0].mxu0
      %v1907 = vadd.f32 0.0, %v1906
      %v1908 = vpop.f32.mrb[0].mxu0
      %v1909 = vpop.f32.mrb[0].mxu0
      %v1910 = vpop.f32.mrb[0].mxu0
      %1911 = vdwg.mxu0
      %v1913 = vsel %vm1672, %v1850, 0
      %v1916 = vsel %vm1868, %v1858, 0
      %1918 = vmatprep.subr.bf16.mxu0 0
      %1919 = vmatpush1.bf16.msra.mxu0 %v1916
      %1920 = vmatprep.subr.bf16.mxu0 0
      %1921 = vmatpush1.bf16.msra.mxu0 0
      %1922 = vmatprep.subr.bf16.mxu0 0
      %1923 = vmatpush1.bf16.msra.mxu0 0
      %1924 = vmatprep.subr.bf16.mxu0 0
      %1925 = vmatpush1.bf16.msra.mxu0 0
      %1926 = vmatprep.subr.bf16.mxu0 0
      %1927 = vmatpush1.bf16.msra.mxu0 0
      %1928 = vmatprep.subr.bf16.mxu0 0
      %1929 = vmatpush1.bf16.msra.mxu0 0
      %1930 = vmatprep.subr.bf16.mxu0 0
      %1931 = vmatpush1.bf16.msra.mxu0 0
      %1932 = vmatprep.subr.bf16.mxu0 0
      %1933 = vmatpush1.bf16.msra.mxu0 0
      %1934 = vmatprep.subr.bf16.mxu0 0
      %1935 = vmatpush1.bf16.msra.mxu0 0
      %1936 = vmatprep.subr.bf16.mxu0 0
      %1937 = vmatpush1.bf16.msra.mxu0 0
      %1938 = vmatprep.subr.bf16.mxu0 0
      %1939 = vmatpush1.bf16.msra.mxu0 0
      %1940 = vmatprep.subr.bf16.mxu0 0
      %1941 = vmatpush1.bf16.msra.mxu0 0
      %1942 = vmatprep.subr.bf16.mxu0 0
      %1943 = vmatpush1.bf16.msra.mxu0 0
      %1944 = vmatprep.subr.bf16.mxu0 0
      %1945 = vmatpush1.bf16.msra.mxu0 0
      %1946 = vmatprep.subr.bf16.mxu0 0
      %1947 = vmatpush1.bf16.msra.mxu0 0
      %1948 = vmatprep.subr.bf16.mxu0 0
      %1949 = vmatpush1.bf16.msra.mxu0 0
      %1950 = vmatprep.mubr.bf16.mxu0 0
      %1951 = vmatmul.mubr.bf16.gmra.mrb[0].mxu0 %v1913
      %v1952 = vpop.f32.mrb[0].mxu0
      %v1953 = vadd.f32 0.0, %v1952
      %v1954 = vpop.f32.mrb[0].mxu0
      %v1955 = vpop.f32.mrb[0].mxu0
      %v1956 = vpop.f32.mrb[0].mxu0
      %1957 = vdwg.mxu0
      %v1959 = vsel %vm1672, %v1851, 0
      %v1962 = vsel %vm1868, %v1859, 0
      %1964 = vmatprep.subr.bf16.mxu0 0
      %1965 = vmatpush1.bf16.msra.mxu0 %v1962
      %1966 = vmatprep.subr.bf16.mxu0 0
      %1967 = vmatpush1.bf16.msra.mxu0 0
      %1968 = vmatprep.subr.bf16.mxu0 0
      %1969 = vmatpush1.bf16.msra.mxu0 0
      %1970 = vmatprep.subr.bf16.mxu0 0
      %1971 = vmatpush1.bf16.msra.mxu0 0
      %1972 = vmatprep.subr.bf16.mxu0 0
      %1973 = vmatpush1.bf16.msra.mxu0 0
      %1974 = vmatprep.subr.bf16.mxu0 0
      %1975 = vmatpush1.bf16.msra.mxu0 0
      %1976 = vmatprep.subr.bf16.mxu0 0
      %1977 = vmatpush1.bf16.msra.mxu0 0
      %1978 = vmatprep.subr.bf16.mxu0 0
      %1979 = vmatpush1.bf16.msra.mxu0 0
      %1980 = vmatprep.subr.bf16.mxu0 0
      %1981 = vmatpush1.bf16.msra.mxu0 0
      %1982 = vmatprep.subr.bf16.mxu0 0
      %1983 = vmatpush1.bf16.msra.mxu0 0
      %1984 = vmatprep.subr.bf16.mxu0 0
      %1985 = vmatpush1.bf16.msra.mxu0 0
      %1986 = vmatprep.subr.bf16.mxu0 0
      %1987 = vmatpush1.bf16.msra.mxu0 0
      %1988 = vmatprep.subr.bf16.mxu0 0
      %1989 = vmatpush1.bf16.msra.mxu0 0
      %1990 = vmatprep.subr.bf16.mxu0 0
      %1991 = vmatpush1.bf16.msra.mxu0 0
      %1992 = vmatprep.subr.bf16.mxu0 0
      %1993 = vmatpush1.bf16.msra.mxu0 0
      %1994 = vmatprep.subr.bf16.mxu0 0
      %1995 = vmatpush1.bf16.msra.mxu0 0
      %1996 = vmatprep.mubr.bf16.mxu0 0
      %1997 = vmatmul.mubr.bf16.gmra.mrb[0].mxu0 %v1959
      %v1998 = vpop.f32.mrb[0].mxu0
      %v1999 = vadd.f32 0.0, %v1998
      %v2000 = vpop.f32.mrb[0].mxu0
      %v2001 = vpop.f32.mrb[0].mxu0
      %v2002 = vpop.f32.mrb[0].mxu0
      %2003 = vdwg.mxu0
      %v2005 = vsel %vm1672, %v1852, 0
      %v2008 = vsel %vm1868, %v1860, 0
      %2010 = vmatprep.subr.bf16.mxu0 0
      %2011 = vmatpush1.bf16.msra.mxu0 %v2008
      %2012 = vmatprep.subr.bf16.mxu0 0
      %2013 = vmatpush1.bf16.msra.mxu0 0
      %2014 = vmatprep.subr.bf16.mxu0 0
      %2015 = vmatpush1.bf16.msra.mxu0 0
      %2016 = vmatprep.subr.bf16.mxu0 0
      %2017 = vmatpush1.bf16.msra.mxu0 0
      %2018 = vmatprep.subr.bf16.mxu0 0
      %2019 = vmatpush1.bf16.msra.mxu0 0
      %2020 = vmatprep.subr.bf16.mxu0 0
      %2021 = vmatpush1.bf16.msra.mxu0 0
      %2022 = vmatprep.subr.bf16.mxu0 0
      %2023 = vmatpush1.bf16.msra.mxu0 0
      %2024 = vmatprep.subr.bf16.mxu0 0
      %2025 = vmatpush1.bf16.msra.mxu0 0
      %2026 = vmatprep.subr.bf16.mxu0 0
      %2027 = vmatpush1.bf16.msra.mxu0 0
      %2028 = vmatprep.subr.bf16.mxu0 0
      %2029 = vmatpush1.bf16.msra.mxu0 0
      %2030 = vmatprep.subr.bf16.mxu0 0
      %2031 = vmatpush1.bf16.msra.mxu0 0
      %2032 = vmatprep.subr.bf16.mxu0 0
      %2033 = vmatpush1.bf16.msra.mxu0 0
      %2034 = vmatprep.subr.bf16.mxu0 0
      %2035 = vmatpush1.bf16.msra.mxu0 0
      %2036 = vmatprep.subr.bf16.mxu0 0
      %2037 = vmatpush1.bf16.msra.mxu0 0
      %2038 = vmatprep.subr.bf16.mxu0 0
      %2039 = vmatpush1.bf16.msra.mxu0 0
      %2040 = vmatprep.subr.bf16.mxu0 0
      %2041 = vmatpush1.bf16.msra.mxu0 0
      %2042 = vmatprep.mubr.bf16.mxu0 0
      %2043 = vmatmul.mubr.bf16.gmra.mrb[0].mxu0 %v2005
      %v2044 = vpop.f32.mrb[0].mxu0
      %v2045 = vadd.f32 0.0, %v2044
      %v2046 = vpop.f32.mrb[0].mxu0
      %v2047 = vpop.f32.mrb[0].mxu0
      %v2048 = vpop.f32.mrb[0].mxu0
      %2049 = vdwg.mxu0
      %v2051 = vsel %vm1672, %v1853, 0
      %v2054 = vsel %vm1868, %v1861, 0
      %2056 = vmatprep.subr.bf16.mxu0 0
      %2057 = vmatpush1.bf16.msra.mxu0 %v2054
      %2058 = vmatprep.subr.bf16.mxu0 0
      %2059 = vmatpush1.bf16.msra.mxu0 0
      %2060 = vmatprep.subr.bf16.mxu0 0
      %2061 = vmatpush1.bf16.msra.mxu0 0
      %2062 = vmatprep.subr.bf16.mxu0 0
      %2063 = vmatpush1.bf16.msra.mxu0 0
      %2064 = vmatprep.subr.bf16.mxu0 0
      %2065 = vmatpush1.bf16.msra.mxu0 0
      %2066 = vmatprep.subr.bf16.mxu0 0
      %2067 = vmatpush1.bf16.msra.mxu0 0
      %2068 = vmatprep.subr.bf16.mxu0 0
      %2069 = vmatpush1.bf16.msra.mxu0 0
      %2070 = vmatprep.subr.bf16.mxu0 0
      %2071 = vmatpush1.bf16.msra.mxu0 0
      %2072 = vmatprep.subr.bf16.mxu0 0
      %2073 = vmatpush1.bf16.msra.mxu0 0
      %2074 = vmatprep.subr.bf16.mxu0 0
      %2075 = vmatpush1.bf16.msra.mxu0 0
      %2076 = vmatprep.subr.bf16.mxu0 0
      %2077 = vmatpush1.bf16.msra.mxu0 0
      %2078 = vmatprep.subr.bf16.mxu0 0
      %2079 = vmatpush1.bf16.msra.mxu0 0
      %2080 = vmatprep.subr.bf16.mxu0 0
      %2081 = vmatpush1.bf16.msra.mxu0 0
      %2082 = vmatprep.subr.bf16.mxu0 0
      %2083 = vmatpush1.bf16.msra.mxu0 0
      %2084 = vmatprep.subr.bf16.mxu0 0
      %2085 = vmatpush1.bf16.msra.mxu0 0
      %2086 = vmatprep.subr.bf16.mxu0 0
      %2087 = vmatpush1.bf16.msra.mxu0 0
      %2088 = vmatprep.mubr.bf16.mxu0 0
      %2089 = vmatmul.mubr.bf16.gmra.mrb[0].mxu0 %v2051
      %v2090 = vpop.f32.mrb[0].mxu0
      %v2091 = vadd.f32 0.0, %v2090
      %v2092 = vpop.f32.mrb[0].mxu0
      %v2093 = vpop.f32.mrb[0].mxu0
      %v2094 = vpop.f32.mrb[0].mxu0
      %2095 = vdwg.mxu0
      %v2097 = vsel %vm1672, %v1854, 0
      %v2100 = vsel %vm1868, %v1862, 0
      %2102 = vmatprep.subr.bf16.mxu0 0
      %2103 = vmatpush1.bf16.msra.mxu0 %v2100
      %2104 = vmatprep.subr.bf16.mxu0 0
      %2105 = vmatpush1.bf16.msra.mxu0 0
      %2106 = vmatprep.subr.bf16.mxu0 0
      %2107 = vmatpush1.bf16.msra.mxu0 0
      %2108 = vmatprep.subr.bf16.mxu0 0
      %2109 = vmatpush1.bf16.msra.mxu0 0
      %2110 = vmatprep.subr.bf16.mxu0 0
      %2111 = vmatpush1.bf16.msra.mxu0 0
      %2112 = vmatprep.subr.bf16.mxu0 0
      %2113 = vmatpush1.bf16.msra.mxu0 0
      %2114 = vmatprep.subr.bf16.mxu0 0
      %2115 = vmatpush1.bf16.msra.mxu0 0
      %2116 = vmatprep.subr.bf16.mxu0 0
      %2117 = vmatpush1.bf16.msra.mxu0 0
      %2118 = vmatprep.subr.bf16.mxu0 0
      %2119 = vmatpush1.bf16.msra.mxu0 0
      %2120 = vmatprep.subr.bf16.mxu0 0
      %2121 = vmatpush1.bf16.msra.mxu0 0
      %2122 = vmatprep.subr.bf16.mxu0 0
      %2123 = vmatpush1.bf16.msra.mxu0 0
      %2124 = vmatprep.subr.bf16.mxu0 0
      %2125 = vmatpush1.bf16.msra.mxu0 0
      %2126 = vmatprep.subr.bf16.mxu0 0
      %2127 = vmatpush1.bf16.msra.mxu0 0
      %2128 = vmatprep.subr.bf16.mxu0 0
      %2129 = vmatpush1.bf16.msra.mxu0 0
      %2130 = vmatprep.subr.bf16.mxu0 0
      %2131 = vmatpush1.bf16.msra.mxu0 0
      %2132 = vmatprep.subr.bf16.mxu0 0
      %2133 = vmatpush1.bf16.msra.mxu0 0
      %2134 = vmatprep.mubr.bf16.mxu0 0
      %2135 = vmatmul.mubr.bf16.gmra.mrb[0].mxu0 %v2097
      %v2136 = vpop.f32.mrb[0].mxu0
      %v2137 = vadd.f32 0.0, %v2136
      %v2138 = vpop.f32.mrb[0].mxu0
      %v2139 = vpop.f32.mrb[0].mxu0
      %v2140 = vpop.f32.mrb[0].mxu0
      %2141 = vdwg.mxu0
      %v2143 = vsel %vm1672, %v1855, 0
      %v2146 = vsel %vm1868, %v1863, 0
      %2148 = vmatprep.subr.bf16.mxu0 0
      %2149 = vmatpush1.bf16.msra.mxu0 %v2146
      %2150 = vmatprep.subr.bf16.mxu0 0
      %2151 = vmatpush1.bf16.msra.mxu0 0
      %2152 = vmatprep.subr.bf16.mxu0 0
      %2153 = vmatpush1.bf16.msra.mxu0 0
      %2154 = vmatprep.subr.bf16.mxu0 0
      %2155 = vmatpush1.bf16.msra.mxu0 0
      %2156 = vmatprep.subr.bf16.mxu0 0
      %2157 = vmatpush1.bf16.msra.mxu0 0
      %2158 = vmatprep.subr.bf16.mxu0 0
      %2159 = vmatpush1.bf16.msra.mxu0 0
      %2160 = vmatprep.subr.bf16.mxu0 0
      %2161 = vmatpush1.bf16.msra.mxu0 0
      %2162 = vmatprep.subr.bf16.mxu0 0
      %2163 = vmatpush1.bf16.msra.mxu0 0
      %2164 = vmatprep.subr.bf16.mxu0 0
      %2165 = vmatpush1.bf16.msra.mxu0 0
      %2166 = vmatprep.subr.bf16.mxu0 0
      %2167 = vmatpush1.bf16.msra.mxu0 0
      %2168 = vmatprep.subr.bf16.mxu0 0
      %2169 = vmatpush1.bf16.msra.mxu0 0
      %2170 = vmatprep.subr.bf16.mxu0 0
      %2171 = vmatpush1.bf16.msra.mxu0 0
      %2172 = vmatprep.subr.bf16.mxu0 0
      %2173 = vmatpush1.bf16.msra.mxu0 0
      %2174 = vmatprep.subr.bf16.mxu0 0
      %2175 = vmatpush1.bf16.msra.mxu0 0
      %2176 = vmatprep.subr.bf16.mxu0 0
      %2177 = vmatpush1.bf16.msra.mxu0 0
      %2178 = vmatprep.subr.bf16.mxu0 0
      %2179 = vmatpush1.bf16.msra.mxu0 0
      %2180 = vmatprep.mubr.bf16.mxu0 0
      %2181 = vmatmul.mubr.bf16.gmra.mrb[0].mxu0 %v2143
      %v2182 = vpop.f32.mrb[0].mxu0
      %v2183 = vadd.f32 0.0, %v2182
      %v2184 = vpop.f32.mrb[0].mxu0
      %v2185 = vpop.f32.mrb[0].mxu0
      %v2186 = vpop.f32.mrb[0].mxu0
      %2187 = vdwg.mxu0
      %v2189 = vsel %vm1672, %v1856, 0
      %v2192 = vsel %vm1868, %v1864, 0
      %2194 = vmatprep.subr.bf16.mxu0 0
      %2195 = vmatpush1.bf16.msra.mxu0 %v2192
      %2196 = vmatprep.subr.bf16.mxu0 0
      %2197 = vmatpush1.bf16.msra.mxu0 0
      %2198 = vmatprep.subr.bf16.mxu0 0
      %2199 = vmatpush1.bf16.msra.mxu0 0
      %2200 = vmatprep.subr.bf16.mxu0 0
      %2201 = vmatpush1.bf16.msra.mxu0 0
      %2202 = vmatprep.subr.bf16.mxu0 0
      %2203 = vmatpush1.bf16.msra.mxu0 0
      %2204 = vmatprep.subr.bf16.mxu0 0
      %2205 = vmatpush1.bf16.msra.mxu0 0
      %2206 = vmatprep.subr.bf16.mxu0 0
      %2207 = vmatpush1.bf16.msra.mxu0 0
      %2208 = vmatprep.subr.bf16.mxu0 0
      %2209 = vmatpush1.bf16.msra.mxu0 0
      %2210 = vmatprep.subr.bf16.mxu0 0
      %2211 = vmatpush1.bf16.msra.mxu0 0
      %2212 = vmatprep.subr.bf16.mxu0 0
      %2213 = vmatpush1.bf16.msra.mxu0 0
      %2214 = vmatprep.subr.bf16.mxu0 0
      %2215 = vmatpush1.bf16.msra.mxu0 0
      %2216 = vmatprep.subr.bf16.mxu0 0
      %2217 = vmatpush1.bf16.msra.mxu0 0
      %2218 = vmatprep.subr.bf16.mxu0 0
      %2219 = vmatpush1.bf16.msra.mxu0 0
      %2220 = vmatprep.subr.bf16.mxu0 0
      %2221 = vmatpush1.bf16.msra.mxu0 0
      %2222 = vmatprep.subr.bf16.mxu0 0
      %2223 = vmatpush1.bf16.msra.mxu0 0
      %2224 = vmatprep.subr.bf16.mxu0 0
      %2225 = vmatpush1.bf16.msra.mxu0 0
      %2226 = vmatprep.mubr.bf16.mxu0 0
      %2227 = vmatmul.mubr.bf16.gmra.mrb[0].mxu0 %v2189
      %v2228 = vpop.f32.mrb[0].mxu0
      %v2229 = vadd.f32 0.0, %v2228
      %v2230 = vpop.f32.mrb[0].mxu0
      %v2231 = vpop.f32.mrb[0].mxu0
      %v2232 = vpop.f32.mrb[0].mxu0
      %2233 = vdwg.mxu0
      %v2234 = vpack.c.bf16 %v1753, %v1753
      %v2235 = vpack.c.bf16 %v1754, %v1754
      %v2236 = vpack.c.bf16 %v1755, %v1755
      %v2237 = vpack.c.bf16 %v1756, %v1756
      %v2238 = vpack.c.bf16 %v1757, %v1757
      %v2239 = vpack.c.bf16 %v1758, %v1758
      %v2240 = vpack.c.bf16 %v1759, %v1759
      %v2241 = vpack.c.bf16 %v1760, %v1760
      %v2242 = vpack.c.bf16 %v1048, %v1048
      %v2243 = vpack.c.bf16 %v1049, %v1049
      %v2244 = vpack.c.bf16 %v1050, %v1050
      %v2245 = vpack.c.bf16 %v1051, %v1051
      %v2246 = vpack.c.bf16 %v1052, %v1052
      %v2247 = vpack.c.bf16 %v1053, %v1053
      %v2248 = vpack.c.bf16 %v1054, %v1054
      %v2249 = vpack.c.bf16 %v1055, %v1055
      %v2251 = vsel %vm1672, %v2234, 0
      %v2254 = vsel %vm1868, %v2242, 0
      %2256 = vmatprep.subr.bf16.mxu0 0
      %2257 = vmatpush1.bf16.msra.mxu0 %v2254
      %2258 = vmatprep.subr.bf16.mxu0 0
      %2259 = vmatpush1.bf16.msra.mxu0 0
      %2260 = vmatprep.subr.bf16.mxu0 0
      %2261 = vmatpush1.bf16.msra.mxu0 0
      %2262 = vmatprep.subr.bf16.mxu0 0
      %2263 = vmatpush1.bf16.msra.mxu0 0
      %2264 = vmatprep.subr.bf16.mxu0 0
      %2265 = vmatpush1.bf16.msra.mxu0 0
      %2266 = vmatprep.subr.bf16.mxu0 0
      %2267 = vmatpush1.bf16.msra.mxu0 0
      %2268 = vmatprep.subr.bf16.mxu0 0
      %2269 = vmatpush1.bf16.msra.mxu0 0
      %2270 = vmatprep.subr.bf16.mxu0 0
      %2271 = vmatpush1.bf16.msra.mxu0 0
      %2272 = vmatprep.subr.bf16.mxu0 0
      %2273 = vmatpush1.bf16.msra.mxu0 0
      %2274 = vmatprep.subr.bf16.mxu0 0
      %2275 = vmatpush1.bf16.msra.mxu0 0
      %2276 = vmatprep.subr.bf16.mxu0 0
      %2277 = vmatpush1.bf16.msra.mxu0 0
      %2278 = vmatprep.subr.bf16.mxu0 0
      %2279 = vmatpush1.bf16.msra.mxu0 0
      %2280 = vmatprep.subr.bf16.mxu0 0
      %2281 = vmatpush1.bf16.msra.mxu0 0
      %2282 = vmatprep.subr.bf16.mxu0 0
      %2283 = vmatpush1.bf16.msra.mxu0 0
      %2284 = vmatprep.subr.bf16.mxu0 0
      %2285 = vmatpush1.bf16.msra.mxu0 0
      %2286 = vmatprep.subr.bf16.mxu0 0
      %2287 = vmatpush1.bf16.msra.mxu0 0
      %2288 = vmatprep.mubr.bf16.mxu0 0
      %2289 = vmatmul.mubr.bf16.gmra.mrb[0].mxu0 %v2251
      %v2290 = vpop.f32.mrb[0].mxu0
      %v2291 = vadd.f32 0.0, %v2290
      %v2292 = vpop.f32.mrb[0].mxu0
      %v2293 = vpop.f32.mrb[0].mxu0
      %v2294 = vpop.f32.mrb[0].mxu0
      %2295 = vdwg.mxu0
      %v2297 = vsel %vm1672, %v2235, 0
      %v2300 = vsel %vm1868, %v2243, 0
      %2302 = vmatprep.subr.bf16.mxu0 0
      %2303 = vmatpush1.bf16.msra.mxu0 %v2300
      %2304 = vmatprep.subr.bf16.mxu0 0
      %2305 = vmatpush1.bf16.msra.mxu0 0
      %2306 = vmatprep.subr.bf16.mxu0 0
      %2307 = vmatpush1.bf16.msra.mxu0 0
      %2308 = vmatprep.subr.bf16.mxu0 0
      %2309 = vmatpush1.bf16.msra.mxu0 0
      %2310 = vmatprep.subr.bf16.mxu0 0
      %2311 = vmatpush1.bf16.msra.mxu0 0
      %2312 = vmatprep.subr.bf16.mxu0 0
      %2313 = vmatpush1.bf16.msra.mxu0 0
      %2314 = vmatprep.subr.bf16.mxu0 0
      %2315 = vmatpush1.bf16.msra.mxu0 0
      %2316 = vmatprep.subr.bf16.mxu0 0
      %2317 = vmatpush1.bf16.msra.mxu0 0
      %2318 = vmatprep.subr.bf16.mxu0 0
      %2319 = vmatpush1.bf16.msra.mxu0 0
      %2320 = vmatprep.subr.bf16.mxu0 0
      %2321 = vmatpush1.bf16.msra.mxu0 0
      %2322 = vmatprep.subr.bf16.mxu0 0
      %2323 = vmatpush1.bf16.msra.mxu0 0
      %2324 = vmatprep.subr.bf16.mxu0 0
      %2325 = vmatpush1.bf16.msra.mxu0 0
      %2326 = vmatprep.subr.bf16.mxu0 0
      %2327 = vmatpush1.bf16.msra.mxu0 0
      %2328 = vmatprep.subr.bf16.mxu0 0
      %2329 = vmatpush1.bf16.msra.mxu0 0
      %2330 = vmatprep.subr.bf16.mxu0 0
      %2331 = vmatpush1.bf16.msra.mxu0 0
      %2332 = vmatprep.subr.bf16.mxu0 0
      %2333 = vmatpush1.bf16.msra.mxu0 0
      %2334 = vmatprep.mubr.bf16.mxu0 0
      %2335 = vmatmul.mubr.bf16.gmra.mrb[0].mxu0 %v2297
      %v2336 = vpop.f32.mrb[0].mxu0
      %v2337 = vadd.f32 0.0, %v2336
      %v2338 = vpop.f32.mrb[0].mxu0
      %v2339 = vpop.f32.mrb[0].mxu0
      %v2340 = vpop.f32.mrb[0].mxu0
      %2341 = vdwg.mxu0
      %v2343 = vsel %vm1672, %v2236, 0
      %v2346 = vsel %vm1868, %v2244, 0
      %2348 = vmatprep.subr.bf16.mxu0 0
      %2349 = vmatpush1.bf16.msra.mxu0 %v2346
      %2350 = vmatprep.subr.bf16.mxu0 0
      %2351 = vmatpush1.bf16.msra.mxu0 0
      %2352 = vmatprep.subr.bf16.mxu0 0
      %2353 = vmatpush1.bf16.msra.mxu0 0
      %2354 = vmatprep.subr.bf16.mxu0 0
      %2355 = vmatpush1.bf16.msra.mxu0 0
      %2356 = vmatprep.subr.bf16.mxu0 0
      %2357 = vmatpush1.bf16.msra.mxu0 0
      %2358 = vmatprep.subr.bf16.mxu0 0
      %2359 = vmatpush1.bf16.msra.mxu0 0
      %2360 = vmatprep.subr.bf16.mxu0 0
      %2361 = vmatpush1.bf16.msra.mxu0 0
      %2362 = vmatprep.subr.bf16.mxu0 0
      %2363 = vmatpush1.bf16.msra.mxu0 0
      %2364 = vmatprep.subr.bf16.mxu0 0
      %2365 = vmatpush1.bf16.msra.mxu0 0
      %2366 = vmatprep.subr.bf16.mxu0 0
      %2367 = vmatpush1.bf16.msra.mxu0 0
      %2368 = vmatprep.subr.bf16.mxu0 0
      %2369 = vmatpush1.bf16.msra.mxu0 0
      %2370 = vmatprep.subr.bf16.mxu0 0
      %2371 = vmatpush1.bf16.msra.mxu0 0
      %2372 = vmatprep.subr.bf16.mxu0 0
      %2373 = vmatpush1.bf16.msra.mxu0 0
      %2374 = vmatprep.subr.bf16.mxu0 0
      %2375 = vmatpush1.bf16.msra.mxu0 0
      %2376 = vmatprep.subr.bf16.mxu0 0
      %2377 = vmatpush1.bf16.msra.mxu0 0
      %2378 = vmatprep.subr.bf16.mxu0 0
      %2379 = vmatpush1.bf16.msra.mxu0 0
      %2380 = vmatprep.mubr.bf16.mxu0 0
      %2381 = vmatmul.mubr.bf16.gmra.mrb[0].mxu0 %v2343
      %v2382 = vpop.f32.mrb[0].mxu0
      %v2383 = vadd.f32 0.0, %v2382
      %v2384 = vpop.f32.mrb[0].mxu0
      %v2385 = vpop.f32.mrb[0].mxu0
      %v2386 = vpop.f32.mrb[0].mxu0
      %2387 = vdwg.mxu0
      %v2389 = vsel %vm1672, %v2237, 0
      %v2392 = vsel %vm1868, %v2245, 0
      %2394 = vmatprep.subr.bf16.mxu0 0
      %2395 = vmatpush1.bf16.msra.mxu0 %v2392
      %2396 = vmatprep.subr.bf16.mxu0 0
      %2397 = vmatpush1.bf16.msra.mxu0 0
      %2398 = vmatprep.subr.bf16.mxu0 0
      %2399 = vmatpush1.bf16.msra.mxu0 0
      %2400 = vmatprep.subr.bf16.mxu0 0
      %2401 = vmatpush1.bf16.msra.mxu0 0
      %2402 = vmatprep.subr.bf16.mxu0 0
      %2403 = vmatpush1.bf16.msra.mxu0 0
      %2404 = vmatprep.subr.bf16.mxu0 0
      %2405 = vmatpush1.bf16.msra.mxu0 0
      %2406 = vmatprep.subr.bf16.mxu0 0
      %2407 = vmatpush1.bf16.msra.mxu0 0
      %2408 = vmatprep.subr.bf16.mxu0 0
      %2409 = vmatpush1.bf16.msra.mxu0 0
      %2410 = vmatprep.subr.bf16.mxu0 0
      %2411 = vmatpush1.bf16.msra.mxu0 0
      %2412 = vmatprep.subr.bf16.mxu0 0
      %2413 = vmatpush1.bf16.msra.mxu0 0
      %2414 = vmatprep.subr.bf16.mxu0 0
      %2415 = vmatpush1.bf16.msra.mxu0 0
      %2416 = vmatprep.subr.bf16.mxu0 0
      %2417 = vmatpush1.bf16.msra.mxu0 0
      %2418 = vmatprep.subr.bf16.mxu0 0
      %2419 = vmatpush1.bf16.msra.mxu0 0
      %2420 = vmatprep.subr.bf16.mxu0 0
      %2421 = vmatpush1.bf16.msra.mxu0 0
      %2422 = vmatprep.subr.bf16.mxu0 0
      %2423 = vmatpush1.bf16.msra.mxu0 0
      %2424 = vmatprep.subr.bf16.mxu0 0
      %2425 = vmatpush1.bf16.msra.mxu0 0
      %2426 = vmatprep.mubr.bf16.mxu0 0
      %2427 = vmatmul.mubr.bf16.gmra.mrb[0].mxu0 %v2389
      %v2428 = vpop.f32.mrb[0].mxu0
      %v2429 = vadd.f32 0.0, %v2428
      %v2430 = vpop.f32.mrb[0].mxu0
      %v2431 = vpop.f32.mrb[0].mxu0
      %v2432 = vpop.f32.mrb[0].mxu0
      %2433 = vdwg.mxu0
      %v2435 = vsel %vm1672, %v2238, 0
      %v2438 = vsel %vm1868, %v2246, 0
      %2440 = vmatprep.subr.bf16.mxu0 0
      %2441 = vmatpush1.bf16.msra.mxu0 %v2438
      %2442 = vmatprep.subr.bf16.mxu0 0
      %2443 = vmatpush1.bf16.msra.mxu0 0
      %2444 = vmatprep.subr.bf16.mxu0 0
      %2445 = vmatpush1.bf16.msra.mxu0 0
      %2446 = vmatprep.subr.bf16.mxu0 0
      %2447 = vmatpush1.bf16.msra.mxu0 0
      %2448 = vmatprep.subr.bf16.mxu0 0
      %2449 = vmatpush1.bf16.msra.mxu0 0
      %2450 = vmatprep.subr.bf16.mxu0 0
      %2451 = vmatpush1.bf16.msra.mxu0 0
      %2452 = vmatprep.subr.bf16.mxu0 0
      %2453 = vmatpush1.bf16.msra.mxu0 0
      %2454 = vmatprep.subr.bf16.mxu0 0
      %2455 = vmatpush1.bf16.msra.mxu0 0
      %2456 = vmatprep.subr.bf16.mxu0 0
      %2457 = vmatpush1.bf16.msra.mxu0 0
      %2458 = vmatprep.subr.bf16.mxu0 0
      %2459 = vmatpush1.bf16.msra.mxu0 0
      %2460 = vmatprep.subr.bf16.mxu0 0
      %2461 = vmatpush1.bf16.msra.mxu0 0
      %2462 = vmatprep.subr.bf16.mxu0 0
      %2463 = vmatpush1.bf16.msra.mxu0 0
      %2464 = vmatprep.subr.bf16.mxu0 0
      %2465 = vmatpush1.bf16.msra.mxu0 0
      %2466 = vmatprep.subr.bf16.mxu0 0
      %2467 = vmatpush1.bf16.msra.mxu0 0
      %2468 = vmatprep.subr.bf16.mxu0 0
      %2469 = vmatpush1.bf16.msra.mxu0 0
      %2470 = vmatprep.subr.bf16.mxu0 0
      %2471 = vmatpush1.bf16.msra.mxu0 0
      %2472 = vmatprep.mubr.bf16.mxu0 0
      %2473 = vmatmul.mubr.bf16.gmra.mrb[0].mxu0 %v2435
      %v2474 = vpop.f32.mrb[0].mxu0
      %v2475 = vadd.f32 0.0, %v2474
      %v2476 = vpop.f32.mrb[0].mxu0
      %v2477 = vpop.f32.mrb[0].mxu0
      %v2478 = vpop.f32.mrb[0].mxu0
      %2479 = vdwg.mxu0
      %v2481 = vsel %vm1672, %v2239, 0
      %v2484 = vsel %vm1868, %v2247, 0
      %2486 = vmatprep.subr.bf16.mxu0 0
      %2487 = vmatpush1.bf16.msra.mxu0 %v2484
      %2488 = vmatprep.subr.bf16.mxu0 0
      %2489 = vmatpush1.bf16.msra.mxu0 0
      %2490 = vmatprep.subr.bf16.mxu0 0
      %2491 = vmatpush1.bf16.msra.mxu0 0
      %2492 = vmatprep.subr.bf16.mxu0 0
      %2493 = vmatpush1.bf16.msra.mxu0 0
      %2494 = vmatprep.subr.bf16.mxu0 0
      %2495 = vmatpush1.bf16.msra.mxu0 0
      %2496 = vmatprep.subr.bf16.mxu0 0
      %2497 = vmatpush1.bf16.msra.mxu0 0
      %2498 = vmatprep.subr.bf16.mxu0 0
      %2499 = vmatpush1.bf16.msra.mxu0 0
      %2500 = vmatprep.subr.bf16.mxu0 0
      %2501 = vmatpush1.bf16.msra.mxu0 0
      %2502 = vmatprep.subr.bf16.mxu0 0
      %2503 = vmatpush1.bf16.msra.mxu0 0
      %2504 = vmatprep.subr.bf16.mxu0 0
      %2505 = vmatpush1.bf16.msra.mxu0 0
      %2506 = vmatprep.subr.bf16.mxu0 0
      %2507 = vmatpush1.bf16.msra.mxu0 0
      %2508 = vmatprep.subr.bf16.mxu0 0
      %2509 = vmatpush1.bf16.msra.mxu0 0
      %2510 = vmatprep.subr.bf16.mxu0 0
      %2511 = vmatpush1.bf16.msra.mxu0 0
      %2512 = vmatprep.subr.bf16.mxu0 0
      %2513 = vmatpush1.bf16.msra.mxu0 0
      %2514 = vmatprep.subr.bf16.mxu0 0
      %2515 = vmatpush1.bf16.msra.mxu0 0
      %2516 = vmatprep.subr.bf16.mxu0 0
      %2517 = vmatpush1.bf16.msra.mxu0 0
      %2518 = vmatprep.mubr.bf16.mxu0 0
      %2519 = vmatmul.mubr.bf16.gmra.mrb[0].mxu0 %v2481
      %v2520 = vpop.f32.mrb[0].mxu0
      %v2521 = vadd.f32 0.0, %v2520
      %v2522 = vpop.f32.mrb[0].mxu0
      %v2523 = vpop.f32.mrb[0].mxu0
      %v2524 = vpop.f32.mrb[0].mxu0
      %2525 = vdwg.mxu0
      %v2527 = vsel %vm1672, %v2240, 0
      %v2530 = vsel %vm1868, %v2248, 0
      %2532 = vmatprep.subr.bf16.mxu0 0
      %2533 = vmatpush1.bf16.msra.mxu0 %v2530
      %2534 = vmatprep.subr.bf16.mxu0 0
      %2535 = vmatpush1.bf16.msra.mxu0 0
      %2536 = vmatprep.subr.bf16.mxu0 0
      %2537 = vmatpush1.bf16.msra.mxu0 0
      %2538 = vmatprep.subr.bf16.mxu0 0
      %2539 = vmatpush1.bf16.msra.mxu0 0
      %2540 = vmatprep.subr.bf16.mxu0 0
      %2541 = vmatpush1.bf16.msra.mxu0 0
      %2542 = vmatprep.subr.bf16.mxu0 0
      %2543 = vmatpush1.bf16.msra.mxu0 0
      %2544 = vmatprep.subr.bf16.mxu0 0
      %2545 = vmatpush1.bf16.msra.mxu0 0
      %2546 = vmatprep.subr.bf16.mxu0 0
      %2547 = vmatpush1.bf16.msra.mxu0 0
      %2548 = vmatprep.subr.bf16.mxu0 0
      %2549 = vmatpush1.bf16.msra.mxu0 0
      %2550 = vmatprep.subr.bf16.mxu0 0
      %2551 = vmatpush1.bf16.msra.mxu0 0
      %2552 = vmatprep.subr.bf16.mxu0 0
      %2553 = vmatpush1.bf16.msra.mxu0 0
      %2554 = vmatprep.subr.bf16.mxu0 0
      %2555 = vmatpush1.bf16.msra.mxu0 0
      %2556 = vmatprep.subr.bf16.mxu0 0
      %2557 = vmatpush1.bf16.msra.mxu0 0
      %2558 = vmatprep.subr.bf16.mxu0 0
      %2559 = vmatpush1.bf16.msra.mxu0 0
      %2560 = vmatprep.subr.bf16.mxu0 0
      %2561 = vmatpush1.bf16.msra.mxu0 0
      %2562 = vmatprep.subr.bf16.mxu0 0
      %2563 = vmatpush1.bf16.msra.mxu0 0
      %2564 = vmatprep.mubr.bf16.mxu0 0
      %2565 = vmatmul.mubr.bf16.gmra.mrb[0].mxu0 %v2527
      %v2566 = vpop.f32.mrb[0].mxu0
      %v2567 = vadd.f32 0.0, %v2566
      %v2568 = vpop.f32.mrb[0].mxu0
      %v2569 = vpop.f32.mrb[0].mxu0
      %v2570 = vpop.f32.mrb[0].mxu0
      %2571 = vdwg.mxu0
      %v2573 = vsel %vm1672, %v2241, 0
      %v2576 = vsel %vm1868, %v2249, 0
      %2578 = vmatprep.subr.bf16.mxu0 0
      %2579 = vmatpush1.bf16.msra.mxu0 %v2576
      %2580 = vmatprep.subr.bf16.mxu0 0
      %2581 = vmatpush1.bf16.msra.mxu0 0
      %2582 = vmatprep.subr.bf16.mxu0 0
      %2583 = vmatpush1.bf16.msra.mxu0 0
      %2584 = vmatprep.subr.bf16.mxu0 0
      %2585 = vmatpush1.bf16.msra.mxu0 0
      %2586 = vmatprep.subr.bf16.mxu0 0
      %2587 = vmatpush1.bf16.msra.mxu0 0
      %2588 = vmatprep.subr.bf16.mxu0 0
      %2589 = vmatpush1.bf16.msra.mxu0 0
      %2590 = vmatprep.subr.bf16.mxu0 0
      %2591 = vmatpush1.bf16.msra.mxu0 0
      %2592 = vmatprep.subr.bf16.mxu0 0
      %2593 = vmatpush1.bf16.msra.mxu0 0
      %2594 = vmatprep.subr.bf16.mxu0 0
      %2595 = vmatpush1.bf16.msra.mxu0 0
      %2596 = vmatprep.subr.bf16.mxu0 0
      %2597 = vmatpush1.bf16.msra.mxu0 0
      %2598 = vmatprep.subr.bf16.mxu0 0
      %2599 = vmatpush1.bf16.msra.mxu0 0
      %2600 = vmatprep.subr.bf16.mxu0 0
      %2601 = vmatpush1.bf16.msra.mxu0 0
      %2602 = vmatprep.subr.bf16.mxu0 0
      %2603 = vmatpush1.bf16.msra.mxu0 0
      %2604 = vmatprep.subr.bf16.mxu0 0
      %2605 = vmatpush1.bf16.msra.mxu0 0
      %2606 = vmatprep.subr.bf16.mxu0 0
      %2607 = vmatpush1.bf16.msra.mxu0 0
      %2608 = vmatprep.subr.bf16.mxu0 0
      %2609 = vmatpush1.bf16.msra.mxu0 0
      %2610 = vmatprep.mubr.bf16.mxu0 0
      %2611 = vmatmul.mubr.bf16.gmra.mrb[0].mxu0 %v2573
      %v2612 = vpop.f32.mrb[0].mxu0
      %v2613 = vadd.f32 0.0, %v2612
      %v2614 = vpop.f32.mrb[0].mxu0
      %v2615 = vpop.f32.mrb[0].mxu0
      %v2616 = vpop.f32.mrb[0].mxu0
      %2617 = vdwg.mxu0
      %v2618 = vsel %vm752, %v1907, 0.0
      %v2619 = vsel %vm752, %v1953, 0.0
      %v2620 = vadd.f32 %v2618, %v2619
      %v2621 = vsel %vm752, %v1999, 0.0
      %v2622 = vadd.f32 %v2620, %v2621
      %v2623 = vsel %vm752, %v2045, 0.0
      %v2624 = vadd.f32 %v2622, %v2623
      %v2625 = vsel %vm752, %v2091, 0.0
      %v2626 = vsel %vm752, %v2137, 0.0
      %v2627 = vadd.f32 %v2625, %v2626
      %v2628 = vsel %vm752, %v2183, 0.0
      %v2629 = vadd.f32 %v2627, %v2628
      %v2630 = vsel %vm752, %v2229, 0.0
      %v2631 = vadd.f32 %v2629, %v2630
      %v2632 = vsel %vm752, %v2291, 0.0
      %v2633 = vsel %vm752, %v2337, 0.0
      %v2634 = vadd.f32 %v2632, %v2633
      %v2635 = vsel %vm752, %v2383, 0.0
      %v2636 = vadd.f32 %v2634, %v2635
      %v2637 = vsel %vm752, %v2429, 0.0
      %v2638 = vadd.f32 %v2636, %v2637
      %v2639 = vsel %vm752, %v2475, 0.0
      %v2640 = vsel %vm752, %v2521, 0.0
      %v2641 = vadd.f32 %v2639, %v2640
      %v2642 = vsel %vm752, %v2567, 0.0
      %v2643 = vadd.f32 %v2641, %v2642
      %v2644 = vsel %vm752, %v2613, 0.0
      %v2645 = vadd.f32 %v2643, %v2644
      %s2646 = scalar_lea.vmem %s647, 64
      %v2647 = vld [vmem:[%s2646] sm:$0xf]
      %v2648 = vld [vmem:[%s2646 + $0x4] sm:$0xf]
      %v2649 = vld [vmem:[%s2646 + $0x8] sm:$0xf]
      %v2650 = vld [vmem:[%s2646 + $0xc] sm:$0xf]
      %v2651 = vld [vmem:[%s655 + $0x4] sm:$0x1]
      %v2652 = vpack.c.bf16 %v2631, %v2624
      %v2657 = vunpack.c.l.b16 %v2647
      %v2658 = vunpack.c.l.b16 %v2648
      %v2659 = vunpack.c.l.b16 %v2649
      %v2660 = vunpack.c.l.b16 %v2650
      %v2661 = vpack.c.b16 %v2658, %v2657
      %v2662 = vpack.c.b16 %v2660, %v2659
      %v2666 = vsel %vm752, %v2652, 0
      %2668 = vmatprep.subr.bf16.mxu0 0
      %2669 = vmatpush1.bf16.msra.mxu0 %v2661
      %2670 = vmatprep.subr.bf16.mxu0 0
      %2671 = vmatpush1.bf16.msra.mxu0 %v2662
      %2672 = vmatprep.subr.bf16.mxu0 0
      %2673 = vmatpush1.bf16.msra.mxu0 0
      %2674 = vmatprep.subr.bf16.mxu0 0
      %2675 = vmatpush1.bf16.msra.mxu0 0
      %2676 = vmatprep.subr.bf16.mxu0 0
      %2677 = vmatpush1.bf16.msra.mxu0 0
      %2678 = vmatprep.subr.bf16.mxu0 0
      %2679 = vmatpush1.bf16.msra.mxu0 0
      %2680 = vmatprep.subr.bf16.mxu0 0
      %2681 = vmatpush1.bf16.msra.mxu0 0
      %2682 = vmatprep.subr.bf16.mxu0 0
      %2683 = vmatpush1.bf16.msra.mxu0 0
      %2684 = vmatprep.subr.bf16.mxu0 0
      %2685 = vmatpush1.bf16.msra.mxu0 0
      %2686 = vmatprep.subr.bf16.mxu0 0
      %2687 = vmatpush1.bf16.msra.mxu0 0
      %2688 = vmatprep.subr.bf16.mxu0 0
      %2689 = vmatpush1.bf16.msra.mxu0 0
      %2690 = vmatprep.subr.bf16.mxu0 0
      %2691 = vmatpush1.bf16.msra.mxu0 0
      %2692 = vmatprep.subr.bf16.mxu0 0
      %2693 = vmatpush1.bf16.msra.mxu0 0
      %2694 = vmatprep.subr.bf16.mxu0 0
      %2695 = vmatpush1.bf16.msra.mxu0 0
      %2696 = vmatprep.subr.bf16.mxu0 0
      %2697 = vmatpush1.bf16.msra.mxu0 0
      %2698 = vmatprep.subr.bf16.mxu0 0
      %2699 = vmatpush1.bf16.msra.mxu0 0
      %2700 = vmatprep.mubr.bf16.mxu0 0
      %2701 = vmatmul.mubr.bf16.gmra.mrb[0].mxu0 %v2666
      %v2702 = vpop.f32.mrb[0].mxu0
      %v2703 = vadd.f32 0.0, %v2702
      %v2704 = vpop.f32.mrb[0].mxu0
      %v2705 = vpop.f32.mrb[0].mxu0
      %v2706 = vadd.f32 0.0, %v2705
      %v2707 = vpop.f32.mrb[0].mxu0
      %2708 = vdwg.mxu0
      %v2709 = vlaneseq
      %v2710 = vshrl.u32 %v2709, 7
      %v2711 = vsub.s32 0, %v2710
      %v2712 = vrot.slane %v2651, %v2711
      %v2713 = vadd.f32 %v2703, %v2712
      %v2714 = vadd.f32 %v2706, %v2712
      %v2715 = vadd.f32 %v2713, %v730
      %v2716 = vadd.f32 %v2714, %v731
      %s2717 = scalar_lea.vmem %s647, 80
      %v2718 = vld [vmem:[%s2717] sm:$0xf]
      %v2719 = vld [vmem:[%s2717 + $0x4] sm:$0xf]
      %v2720 = vld [vmem:[%s2717 + $0x8] sm:$0xf]
      %v2721 = vld [vmem:[%s2717 + $0xc] sm:$0xf]
      %v2722 = vld [vmem:[%s655 + $0x5] sm:$0x1]
      %v2723 = vpack.c.bf16 %v2645, %v2638
      %v2728 = vunpack.c.l.b16 %v2718
      %v2729 = vunpack.c.l.b16 %v2719
      %v2730 = vunpack.c.l.b16 %v2720
      %v2731 = vunpack.c.l.b16 %v2721
      %v2732 = vpack.c.b16 %v2729, %v2728
      %v2733 = vpack.c.b16 %v2731, %v2730
      %v2737 = vsel %vm752, %v2723, 0
      %2739 = vmatprep.subr.bf16.mxu0 0
      %2740 = vmatpush1.bf16.msra.mxu0 %v2732
      %2741 = vmatprep.subr.bf16.mxu0 0
      %2742 = vmatpush1.bf16.msra.mxu0 %v2733
      %2743 = vmatprep.subr.bf16.mxu0 0
      %2744 = vmatpush1.bf16.msra.mxu0 0
      %2745 = vmatprep.subr.bf16.mxu0 0
      %2746 = vmatpush1.bf16.msra.mxu0 0
      %2747 = vmatprep.subr.bf16.mxu0 0
      %2748 = vmatpush1.bf16.msra.mxu0 0
      %2749 = vmatprep.subr.bf16.mxu0 0
      %2750 = vmatpush1.bf16.msra.mxu0 0
      %2751 = vmatprep.subr.bf16.mxu0 0
      %2752 = vmatpush1.bf16.msra.mxu0 0
      %2753 = vmatprep.subr.bf16.mxu0 0
      %2754 = vmatpush1.bf16.msra.mxu0 0
      %2755 = vmatprep.subr.bf16.mxu0 0
      %2756 = vmatpush1.bf16.msra.mxu0 0
      %2757 = vmatprep.subr.bf16.mxu0 0
      %2758 = vmatpush1.bf16.msra.mxu0 0
      %2759 = vmatprep.subr.bf16.mxu0 0
      %2760 = vmatpush1.bf16.msra.mxu0 0
      %2761 = vmatprep.subr.bf16.mxu0 0
      %2762 = vmatpush1.bf16.msra.mxu0 0
      %2763 = vmatprep.subr.bf16.mxu0 0
      %2764 = vmatpush1.bf16.msra.mxu0 0
      %2765 = vmatprep.subr.bf16.mxu0 0
      %2766 = vmatpush1.bf16.msra.mxu0 0
      %2767 = vmatprep.subr.bf16.mxu0 0
      %2768 = vmatpush1.bf16.msra.mxu0 0
      %2769 = vmatprep.subr.bf16.mxu0 0
      %2770 = vmatpush1.bf16.msra.mxu0 0
      %2771 = vmatprep.mubr.bf16.mxu0 0
      %2772 = vmatmul.mubr.bf16.gmra.mrb[0].mxu0 %v2737
      %v2773 = vpop.f32.mrb[0].mxu0
      %v2774 = vadd.f32 0.0, %v2773
      %v2775 = vpop.f32.mrb[0].mxu0
      %v2776 = vpop.f32.mrb[0].mxu0
      %v2777 = vadd.f32 0.0, %v2776
      %v2778 = vpop.f32.mrb[0].mxu0
      %2779 = vdwg.mxu0
      %v2780 = vlaneseq
      %v2781 = vshrl.u32 %v2780, 7
      %v2782 = vsub.s32 0, %v2781
      %v2783 = vrot.slane %v2722, %v2782
      %v2784 = vadd.f32 %v2774, %v2783
      %v2785 = vadd.f32 %v2777, %v2783
      %v2786 = vadd.f32 %v2784, %v732
      %v2787 = vadd.f32 %v2785, %v733
      %v2788 = vld [vmem:[%s697] sm:$0x1]
      %v2789 = vld [vmem:[%s705] sm:$0x1]
      %v2790 = vsel %vm752, %v2715, 0.0
      %2791 = vadd.xlane.f32.xlu0 %v2790
      %v2792 = vpop.xlane.xlu0 %2791
      %v2793 = vsel %vm752, %v2716, 0.0
      %2794 = vadd.xlane.f32.xlu0 %v2793
      %v2795 = vpop.xlane.xlu0 %2794
      %v2796 = vrcp.pop 32.0
      %v2797 = vmul.f32 %v2792, %v2796
      %v2798 = vmul.f32 %v2795, %v2796
      %v2799 = vsub.f32 %v2715, %v2797
      %v2800 = vsub.f32 %v2716, %v2798
      %v2801 = vmul.f32 %v2799, %v2799
      %v2802 = vmul.f32 %v2800, %v2800
      %v2803 = vsel %vm752, %v2801, 0.0
      %2804 = vadd.xlane.f32.xlu0 %v2803
      %v2805 = vpop.xlane.xlu0 %2804
      %v2806 = vsel %vm752, %v2802, 0.0
      %2807 = vadd.xlane.f32.xlu0 %v2806
      %v2808 = vpop.xlane.xlu0 %2807
      %v2809 = vmul.f32 %v2805, %v2796
      %v2810 = vmul.f32 %v2808, %v2796
      %v2811 = vadd.f32 %v2809, 1e-05
      %v2812 = vadd.f32 %v2810, 1e-05
      %v2813 = vrsqrt.pop %v2811
      %v2814 = vrsqrt.pop %v2812
      %v2815 = vmul.f32 %v2799, %v2813
      %v2816 = vmul.f32 %v2800, %v2814
      %v2817 = vlaneseq
      %v2818 = vshrl.u32 %v2817, 7
      %v2819 = vsub.s32 0, %v2818
      %v2820 = vrot.slane %v2788, %v2819
      %v2821 = vmul.f32 %v2815, %v2820
      %v2822 = vmul.f32 %v2816, %v2820
      %v2823 = vlaneseq
      %v2824 = vshrl.u32 %v2823, 7
      %v2825 = vsub.s32 0, %v2824
      %v2826 = vrot.slane %v2789, %v2825
      %v2827 = vadd.f32 %v2821, %v2826
      %v2828 = vadd.f32 %v2822, %v2826
      %v2829 = vld [vmem:[%s697 + $0x1] sm:$0x1]
      %v2830 = vld [vmem:[%s705 + $0x1] sm:$0x1]
      %v2831 = vsel %vm752, %v2786, 0.0
      %2832 = vadd.xlane.f32.xlu0 %v2831
      %v2833 = vpop.xlane.xlu0 %2832
      %v2834 = vsel %vm752, %v2787, 0.0
      %2835 = vadd.xlane.f32.xlu0 %v2834
      %v2836 = vpop.xlane.xlu0 %2835
      %v2837 = vmul.f32 %v2833, %v2796
      %v2838 = vmul.f32 %v2836, %v2796
      %v2839 = vsub.f32 %v2786, %v2837
      %v2840 = vsub.f32 %v2787, %v2838
      %v2841 = vmul.f32 %v2839, %v2839
      %v2842 = vmul.f32 %v2840, %v2840
      %v2843 = vsel %vm752, %v2841, 0.0
      %2844 = vadd.xlane.f32.xlu0 %v2843
      %v2845 = vpop.xlane.xlu0 %2844
      %v2846 = vsel %vm752, %v2842, 0.0
      %2847 = vadd.xlane.f32.xlu0 %v2846
      %v2848 = vpop.xlane.xlu0 %2847
      %v2849 = vmul.f32 %v2845, %v2796
      %v2850 = vmul.f32 %v2848, %v2796
      %v2851 = vadd.f32 %v2849, 1e-05
      %v2852 = vadd.f32 %v2850, 1e-05
      %v2853 = vrsqrt.pop %v2851
      %v2854 = vrsqrt.pop %v2852
      %v2855 = vmul.f32 %v2839, %v2853
      %v2856 = vmul.f32 %v2840, %v2854
      %v2857 = vlaneseq
      %v2858 = vshrl.u32 %v2857, 7
      %v2859 = vsub.s32 0, %v2858
      %v2860 = vrot.slane %v2829, %v2859
      %v2861 = vmul.f32 %v2855, %v2860
      %v2862 = vmul.f32 %v2856, %v2860
      %v2863 = vlaneseq
      %v2864 = vshrl.u32 %v2863, 7
      %v2865 = vsub.s32 0, %v2864
      %v2866 = vrot.slane %v2830, %v2865
      %v2867 = vadd.f32 %v2861, %v2866
      %v2868 = vadd.f32 %v2862, %v2866
      %v2869 = vld [vmem:[%s664] sm:$0xf]
      %v2870 = vld [vmem:[%s664 + $0x4] sm:$0xf]
      %v2871 = vld [vmem:[%s664 + $0x8] sm:$0xf]
      %v2872 = vld [vmem:[%s664 + $0xc] sm:$0xf]
      %v2873 = vld [vmem:[%s672] sm:$0x1]
      %v2874 = vpack.c.bf16 %v2828, %v2827
      %v2879 = vunpack.c.l.b16 %v2869
      %v2880 = vunpack.c.l.b16 %v2870
      %v2881 = vunpack.c.l.b16 %v2871
      %v2882 = vunpack.c.l.b16 %v2872
      %v2883 = vpack.c.b16 %v2880, %v2879
      %v2884 = vpack.c.b16 %v2882, %v2881
      %v2888 = vsel %vm752, %v2874, 0
      %2890 = vmatprep.subr.bf16.mxu0 0
      %2891 = vmatpush1.bf16.msra.mxu0 %v2883
      %2892 = vmatprep.subr.bf16.mxu0 0
      %2893 = vmatpush1.bf16.msra.mxu0 %v2884
      %2894 = vmatprep.subr.bf16.mxu0 0
      %2895 = vmatpush1.bf16.msra.mxu0 0
      %2896 = vmatprep.subr.bf16.mxu0 0
      %2897 = vmatpush1.bf16.msra.mxu0 0
      %2898 = vmatprep.subr.bf16.mxu0 0
      %2899 = vmatpush1.bf16.msra.mxu0 0
      %2900 = vmatprep.subr.bf16.mxu0 0
      %2901 = vmatpush1.bf16.msra.mxu0 0
      %2902 = vmatprep.subr.bf16.mxu0 0
      %2903 = vmatpush1.bf16.msra.mxu0 0
      %2904 = vmatprep.subr.bf16.mxu0 0
      %2905 = vmatpush1.bf16.msra.mxu0 0
      %2906 = vmatprep.subr.bf16.mxu0 0
      %2907 = vmatpush1.bf16.msra.mxu0 0
      %2908 = vmatprep.subr.bf16.mxu0 0
      %2909 = vmatpush1.bf16.msra.mxu0 0
      %2910 = vmatprep.subr.bf16.mxu0 0
      %2911 = vmatpush1.bf16.msra.mxu0 0
      %2912 = vmatprep.subr.bf16.mxu0 0
      %2913 = vmatpush1.bf16.msra.mxu0 0
      %2914 = vmatprep.subr.bf16.mxu0 0
      %2915 = vmatpush1.bf16.msra.mxu0 0
      %2916 = vmatprep.subr.bf16.mxu0 0
      %2917 = vmatpush1.bf16.msra.mxu0 0
      %2918 = vmatprep.subr.bf16.mxu0 0
      %2919 = vmatpush1.bf16.msra.mxu0 0
      %2920 = vmatprep.subr.bf16.mxu0 0
      %2921 = vmatpush1.bf16.msra.mxu0 0
      %2922 = vmatprep.mubr.bf16.mxu0 0
      %2923 = vmatmul.mubr.bf16.gmra.mrb[0].mxu0 %v2888
      %v2924 = vpop.f32.mrb[0].mxu0
      %v2925 = vadd.f32 0.0, %v2924
      %v2926 = vpop.f32.mrb[0].mxu0
      %v2927 = vpop.f32.mrb[0].mxu0
      %v2928 = vadd.f32 0.0, %v2927
      %v2929 = vpop.f32.mrb[0].mxu0
      %2930 = vdwg.mxu0
      %v2931 = vlaneseq
      %v2932 = vshrl.u32 %v2931, 7
      %v2933 = vsub.s32 0, %v2932
      %v2934 = vrot.slane %v2873, %v2933
      %v2935 = vadd.f32 %v2925, %v2934
      %v2936 = vadd.f32 %v2928, %v2934
      %v2937 = vmax.f32 %v2935, 0.0
      %v2938 = vmax.f32 %v2936, 0.0
      %v2939 = vld [vmem:[%s681] sm:$0xf]
      %v2940 = vld [vmem:[%s681 + $0x4] sm:$0xf]
      %v2941 = vld [vmem:[%s681 + $0x8] sm:$0xf]
      %v2942 = vld [vmem:[%s681 + $0xc] sm:$0xf]
      %v2943 = vld [vmem:[%s681 + $0x10] sm:$0xf]
      %v2944 = vld [vmem:[%s681 + $0x14] sm:$0xf]
      %v2945 = vld [vmem:[%s681 + $0x18] sm:$0xf]
      %v2946 = vld [vmem:[%s681 + $0x1c] sm:$0xf]
      %v2947 = vld [vmem:[%s689] sm:$0x1]
      %v2948 = vpack.c.bf16 %v2938, %v2937
      %v2957 = vunpack.c.l.b16 %v2939
      %v2958 = vunpack.c.l.b16 %v2940
      %v2959 = vunpack.c.l.b16 %v2941
      %v2960 = vunpack.c.l.b16 %v2942
      %v2961 = vunpack.c.l.b16 %v2943
      %v2962 = vunpack.c.l.b16 %v2944
      %v2963 = vunpack.c.l.b16 %v2945
      %v2964 = vunpack.c.l.b16 %v2946
      %v2965 = vpack.c.b16 %v2958, %v2957
      %v2966 = vpack.c.b16 %v2960, %v2959
      %v2967 = vpack.c.b16 %v2962, %v2961
      %v2968 = vpack.c.b16 %v2964, %v2963
      %vm2973 = vcmask 523264
      %v2975 = vsel %vm2973, %v2948, 0
      %2977 = vmatprep.subr.bf16.mxu0 0
      %2978 = vmatpush1.bf16.msra.mxu0 %v2965
      %2979 = vmatprep.subr.bf16.mxu0 0
      %2980 = vmatpush1.bf16.msra.mxu0 %v2966
      %2981 = vmatprep.subr.bf16.mxu0 0
      %2982 = vmatpush1.bf16.msra.mxu0 %v2967
      %2983 = vmatprep.subr.bf16.mxu0 0
      %2984 = vmatpush1.bf16.msra.mxu0 %v2968
      %2985 = vmatprep.subr.bf16.mxu0 0
      %2986 = vmatpush1.bf16.msra.mxu0 0
      %2987 = vmatprep.subr.bf16.mxu0 0
      %2988 = vmatpush1.bf16.msra.mxu0 0
      %2989 = vmatprep.subr.bf16.mxu0 0
      %2990 = vmatpush1.bf16.msra.mxu0 0
      %2991 = vmatprep.subr.bf16.mxu0 0
      %2992 = vmatpush1.bf16.msra.mxu0 0
      %2993 = vmatprep.subr.bf16.mxu0 0
      %2994 = vmatpush1.bf16.msra.mxu0 0
      %2995 = vmatprep.subr.bf16.mxu0 0
      %2996 = vmatpush1.bf16.msra.mxu0 0
      %2997 = vmatprep.subr.bf16.mxu0 0
      %2998 = vmatpush1.bf16.msra.mxu0 0
      %2999 = vmatprep.subr.bf16.mxu0 0
      %3000 = vmatpush1.bf16.msra.mxu0 0
      %3001 = vmatprep.subr.bf16.mxu0 0
      %3002 = vmatpush1.bf16.msra.mxu0 0
      %3003 = vmatprep.subr.bf16.mxu0 0
      %3004 = vmatpush1.bf16.msra.mxu0 0
      %3005 = vmatprep.subr.bf16.mxu0 0
      %3006 = vmatpush1.bf16.msra.mxu0 0
      %3007 = vmatprep.subr.bf16.mxu0 0
      %3008 = vmatpush1.bf16.msra.mxu0 0
      %3009 = vmatprep.mubr.bf16.mxu0 0
      %3010 = vmatmul.mubr.bf16.gmra.mrb[0].mxu0 %v2975
      %v3011 = vpop.f32.mrb[0].mxu0
      %v3012 = vadd.f32 0.0, %v3011
      %v3013 = vpop.f32.mrb[0].mxu0
      %v3014 = vpop.f32.mrb[0].mxu0
      %v3015 = vadd.f32 0.0, %v3014
      %v3016 = vpop.f32.mrb[0].mxu0
      %3017 = vdwg.mxu0
      %v3018 = vlaneseq
      %v3019 = vshrl.u32 %v3018, 7
      %v3020 = vsub.s32 0, %v3019
      %v3021 = vrot.slane %v2947, %v3020
      %v3022 = vadd.f32 %v3012, %v3021
      %v3023 = vadd.f32 %v3015, %v3021
      %s3024 = scalar_lea.vmem %s664, 16
      %v3025 = vld [vmem:[%s3024] sm:$0xf]
      %v3026 = vld [vmem:[%s3024 + $0x4] sm:$0xf]
      %v3027 = vld [vmem:[%s3024 + $0x8] sm:$0xf]
      %v3028 = vld [vmem:[%s3024 + $0xc] sm:$0xf]
      %v3029 = vld [vmem:[%s672 + $0x1] sm:$0x1]
      %v3030 = vpack.c.bf16 %v2868, %v2867
      %v3035 = vunpack.c.l.b16 %v3025
      %v3036 = vunpack.c.l.b16 %v3026
      %v3037 = vunpack.c.l.b16 %v3027
      %v3038 = vunpack.c.l.b16 %v3028
      %v3039 = vpack.c.b16 %v3036, %v3035
      %v3040 = vpack.c.b16 %v3038, %v3037
      %v3044 = vsel %vm752, %v3030, 0
      %3046 = vmatprep.subr.bf16.mxu0 0
      %3047 = vmatpush1.bf16.msra.mxu0 %v3039
      %3048 = vmatprep.subr.bf16.mxu0 0
      %3049 = vmatpush1.bf16.msra.mxu0 %v3040
      %3050 = vmatprep.subr.bf16.mxu0 0
      %3051 = vmatpush1.bf16.msra.mxu0 0
      %3052 = vmatprep.subr.bf16.mxu0 0
      %3053 = vmatpush1.bf16.msra.mxu0 0
      %3054 = vmatprep.subr.bf16.mxu0 0
      %3055 = vmatpush1.bf16.msra.mxu0 0
      %3056 = vmatprep.subr.bf16.mxu0 0
      %3057 = vmatpush1.bf16.msra.mxu0 0
      %3058 = vmatprep.subr.bf16.mxu0 0
      %3059 = vmatpush1.bf16.msra.mxu0 0
      %3060 = vmatprep.subr.bf16.mxu0 0
      %3061 = vmatpush1.bf16.msra.mxu0 0
      %3062 = vmatprep.subr.bf16.mxu0 0
      %3063 = vmatpush1.bf16.msra.mxu0 0
      %3064 = vmatprep.subr.bf16.mxu0 0
      %3065 = vmatpush1.bf16.msra.mxu0 0
      %3066 = vmatprep.subr.bf16.mxu0 0
      %3067 = vmatpush1.bf16.msra.mxu0 0
      %3068 = vmatprep.subr.bf16.mxu0 0
      %3069 = vmatpush1.bf16.msra.mxu0 0
      %3070 = vmatprep.subr.bf16.mxu0 0
      %3071 = vmatpush1.bf16.msra.mxu0 0
      %3072 = vmatprep.subr.bf16.mxu0 0
      %3073 = vmatpush1.bf16.msra.mxu0 0
      %3074 = vmatprep.subr.bf16.mxu0 0
      %3075 = vmatpush1.bf16.msra.mxu0 0
      %3076 = vmatprep.subr.bf16.mxu0 0
      %3077 = vmatpush1.bf16.msra.mxu0 0
      %3078 = vmatprep.mubr.bf16.mxu0 0
      %3079 = vmatmul.mubr.bf16.gmra.mrb[0].mxu0 %v3044
      %v3080 = vpop.f32.mrb[0].mxu0
      %v3081 = vadd.f32 0.0, %v3080
      %v3082 = vpop.f32.mrb[0].mxu0
      %v3083 = vpop.f32.mrb[0].mxu0
      %v3084 = vadd.f32 0.0, %v3083
      %v3085 = vpop.f32.mrb[0].mxu0
      %3086 = vdwg.mxu0
      %v3087 = vlaneseq
      %v3088 = vshrl.u32 %v3087, 7
      %v3089 = vsub.s32 0, %v3088
      %v3090 = vrot.slane %v3029, %v3089
      %v3091 = vadd.f32 %v3081, %v3090
      %v3092 = vadd.f32 %v3084, %v3090
      %v3093 = vmax.f32 %v3091, 0.0
      %v3094 = vmax.f32 %v3092, 0.0
      %s3095 = scalar_lea.vmem %s681, 32
      %v3096 = vld [vmem:[%s3095] sm:$0xf]
      %v3097 = vld [vmem:[%s3095 + $0x4] sm:$0xf]
      %v3098 = vld [vmem:[%s3095 + $0x8] sm:$0xf]
      %v3099 = vld [vmem:[%s3095 + $0xc] sm:$0xf]
      %v3100 = vld [vmem:[%s3095 + $0x10] sm:$0xf]
      %v3101 = vld [vmem:[%s3095 + $0x14] sm:$0xf]
      %v3102 = vld [vmem:[%s3095 + $0x18] sm:$0xf]
      %v3103 = vld [vmem:[%s3095 + $0x1c] sm:$0xf]
      %v3104 = vld [vmem:[%s689 + $0x1] sm:$0x1]
      %v3105 = vpack.c.bf16 %v3094, %v3093
      %v3114 = vunpack.c.l.b16 %v3096
      %v3115 = vunpack.c.l.b16 %v3097
      %v3116 = vunpack.c.l.b16 %v3098
      %v3117 = vunpack.c.l.b16 %v3099
      %v3118 = vunpack.c.l.b16 %v3100
      %v3119 = vunpack.c.l.b16 %v3101
      %v3120 = vunpack.c.l.b16 %v3102
      %v3121 = vunpack.c.l.b16 %v3103
      %v3122 = vpack.c.b16 %v3115, %v3114
      %v3123 = vpack.c.b16 %v3117, %v3116
      %v3124 = vpack.c.b16 %v3119, %v3118
      %v3125 = vpack.c.b16 %v3121, %v3120
      %v3131 = vsel %vm2973, %v3105, 0
      %3133 = vmatprep.subr.bf16.mxu0 0
      %3134 = vmatpush1.bf16.msra.mxu0 %v3122
      %3135 = vmatprep.subr.bf16.mxu0 0
      %3136 = vmatpush1.bf16.msra.mxu0 %v3123
      %3137 = vmatprep.subr.bf16.mxu0 0
      %3138 = vmatpush1.bf16.msra.mxu0 %v3124
      %3139 = vmatprep.subr.bf16.mxu0 0
      %3140 = vmatpush1.bf16.msra.mxu0 %v3125
      %3141 = vmatprep.subr.bf16.mxu0 0
      %3142 = vmatpush1.bf16.msra.mxu0 0
      %3143 = vmatprep.subr.bf16.mxu0 0
      %3144 = vmatpush1.bf16.msra.mxu0 0
      %3145 = vmatprep.subr.bf16.mxu0 0
      %3146 = vmatpush1.bf16.msra.mxu0 0
      %3147 = vmatprep.subr.bf16.mxu0 0
      %3148 = vmatpush1.bf16.msra.mxu0 0
      %3149 = vmatprep.subr.bf16.mxu0 0
      %3150 = vmatpush1.bf16.msra.mxu0 0
      %3151 = vmatprep.subr.bf16.mxu0 0
      %3152 = vmatpush1.bf16.msra.mxu0 0
      %3153 = vmatprep.subr.bf16.mxu0 0
      %3154 = vmatpush1.bf16.msra.mxu0 0
      %3155 = vmatprep.subr.bf16.mxu0 0
      %3156 = vmatpush1.bf16.msra.mxu0 0
      %3157 = vmatprep.subr.bf16.mxu0 0
      %3158 = vmatpush1.bf16.msra.mxu0 0
      %3159 = vmatprep.subr.bf16.mxu0 0
      %3160 = vmatpush1.bf16.msra.mxu0 0
      %3161 = vmatprep.subr.bf16.mxu0 0
      %3162 = vmatpush1.bf16.msra.mxu0 0
      %3163 = vmatprep.subr.bf16.mxu0 0
      %3164 = vmatpush1.bf16.msra.mxu0 0
      %3165 = vmatprep.mubr.bf16.mxu0 0
      %3166 = vmatmul.mubr.bf16.gmra.mrb[0].mxu0 %v3131
      %v3167 = vpop.f32.mrb[0].mxu0
      %v3168 = vadd.f32 0.0, %v3167
      %v3169 = vpop.f32.mrb[0].mxu0
      %v3170 = vpop.f32.mrb[0].mxu0
      %v3171 = vadd.f32 0.0, %v3170
      %v3172 = vpop.f32.mrb[0].mxu0
      %3173 = vdwg.mxu0
      %v3174 = vlaneseq
      %v3175 = vshrl.u32 %v3174, 7
      %v3176 = vsub.s32 0, %v3175
      %v3177 = vrot.slane %v3104, %v3176
      %v3178 = vadd.f32 %v3168, %v3177
      %v3179 = vadd.f32 %v3171, %v3177
      %v3180 = vadd.f32 %v3022, %v2715
      %v3181 = vadd.f32 %v3023, %v2716
      %3182 = vst.msk [vmem:[%s710] sm:$0xff] %vm752, %v3180
      %3183 = vst.msk [vmem:[%s710 + $0x8] sm:$0xff] %vm752, %v3181
      %v3184 = vadd.f32 %v3178, %v2786
      %v3185 = vadd.f32 %v3179, %v2787
      %3186 = vst.msk [vmem:[%s715] sm:$0xff] %vm752, %v3184
      %3187 = vst.msk [vmem:[%s715 + $0x8] sm:$0xff] %vm752, %v3185
      %p3188 = scmp.lt.s32.totalorder %s28, 2
      %s3189 = scalar_select %p3188, %s28, 2
      %s3190 = smul.addr %s3189, 2
      %s3191 = smul.addr %s3190, 8
      %s3192 = scalar_lea.vmem %s11, %s3191
      %p3193 = scmp.lt.s32.totalorder %s28, 2
      %s3194 = scalar_select %p3193, %s28, 2
      %s3195 = smul.addr %s3194, 2
      %s3196 = smul.addr %s3195, 8
      %s3197 = scalar_lea.vmem %s12, %s3196
      // Predicated region
      $region69: #{dual_modality_enhanced_forward.1} parent=63 // pred_check
        %p3198 = pneg %p351
      $region70: #{dual_modality_enhanced_forward.1} parent=63 // pred_check_branch
        %3200 = sbr.rel (%p3198) target = $region72
      $region71: #{dual_modality_enhanced_forward.1} parent=63 // pred_region
        _
      $region72: #{dual_modality_enhanced_forward.1} parent=63 // pred_fallthru
        _
      // Predicated region
      $region73: #{dual_modality_enhanced_forward.1} parent=63 // pred_check
        %p3201 = pneg %p377
      $region74: #{dual_modality_enhanced_forward.1} parent=63 // pred_check_branch
        %3203 = sbr.rel (%p3201) target = $region76
      $region75: #{dual_modality_enhanced_forward.1} parent=63 // pred_region
        _
      $region76: #{dual_modality_enhanced_forward.1} parent=63 // pred_fallthru
        _
    $region64: #{dual_modality_enhanced_forward.1} parent=5 // pred_fallthru
      _
    %p3204 = scmp.le.s32.totalorder 2, %s19
    // Predicated region
    $region77: #{dual_modality_enhanced_forward.1} parent=5 // pred_check
      %p3205 = pneg %p3204
    $region78: #{dual_modality_enhanced_forward.1} parent=5 // pred_check_branch
      %3207 = sbr.rel (%p3205) target = $region80
    $region79: #{dual_modality_enhanced_forward.1} parent=5 // pred_region
      %s3208 = ssub.s32 %s19, 2
      // Predicated region
      $region81: #{dual_modality_enhanced_forward.1} parent=79 // pred_check
        %p3209 = pneg %p357
      $region82: #{dual_modality_enhanced_forward.1} parent=79 // pred_check_branch
        %3211 = sbr.rel (%p3209) target = $region84
      $region83: #{dual_modality_enhanced_forward.1} parent=79 // pred_region
        %p3212 = scmp.lt.s32.totalorder %s30, 2
        %s3213 = scalar_select %p3212, %s30, 2
        %s3214 = smul.addr %s3213, 2
        %s3215 = smul.addr %s3214, 8
        %s3216 = scalar_lea.vmem %s11, %s3215
      $region84: #{dual_modality_enhanced_forward.1} parent=79 // pred_fallthru
        _
      // Predicated region
      $region85: #{dual_modality_enhanced_forward.1} parent=79 // pred_check
        %p3217 = pneg %p383
      $region86: #{dual_modality_enhanced_forward.1} parent=79 // pred_check_branch
        %3219 = sbr.rel (%p3217) target = $region88
      $region87: #{dual_modality_enhanced_forward.1} parent=79 // pred_region
        %p3220 = scmp.lt.s32.totalorder %s30, 2
        %s3221 = scalar_select %p3220, %s30, 2
        %s3222 = smul.addr %s3221, 2
        %s3223 = smul.addr %s3222, 8
        %s3224 = scalar_lea.vmem %s12, %s3223
      $region88: #{dual_modality_enhanced_forward.1} parent=79 // pred_fallthru
        _
    $region80: #{dual_modality_enhanced_forward.1} parent=5 // pred_fallthru
      _
  $region6: #{dual_modality_enhanced_forward.1} parent=0 // loop_footer
    %s23 = sadd.s32 1, %s19
  $region7: #{dual_modality_enhanced_forward.1} parent=0 // loop_footer_branch
    %18 = sbr.rel target = $region3
  $region8: #{dual_modality_enhanced_forward.1} parent=0 // loop_exit
    _

</llo_original>
